<compile_context>
chip_gen: v7x
topology: tpu7x:2x2x1
jax: 0.10.0
libtpu: 0.0.40
codegen_flags: <defaults>
</compile_context>

<pallas_src>
import jax
import jax.numpy as jnp
from jax import lax
from jax.experimental import pallas as pl
from jax.experimental.pallas import tpu as pltpu


_G = 8  # conv3 spatial positions processed per Kernel-B grid step (sublane pack)


# ----------------------------------------------------------------------------
# helpers
# ----------------------------------------------------------------------------
def _round_up(v, m):
    return (v + m - 1) // m * m


def _conv_out(n, k, s):
    return (n - k) // s + 1


def _pick_tile_m(m, cap):
    """Row tile: multiple of 16 (bf16 sublane pack).  One dense tile for small
    M (splitting rows only starves the MXU and doubles step overhead); `cap`
    for large M so per-step overhead amortizes and v7x still gets >=2 parallel
    row tiles once M >= 2*cap."""
    mp = _round_up(max(m, 1), 16)
    return mp if mp <= cap else cap


# ----------------------------------------------------------------------------
# Kernel A: fused  y = relu(x @ w + b)   (bf16 in, f32 accumulate, bf16 out)
# Used for conv1 / conv2 (im2col patches @ pre-transposed weight matrix).
# ----------------------------------------------------------------------------
def _matmul_bias_relu_kernel(x_ref, w_ref, b_ref, o_ref):
    acc = jnp.dot(x_ref[...], w_ref[...], preferred_element_type=jnp.float32)
    o_ref[...] = jnp.maximum(acc + b_ref[...], 0.0).astype(o_ref.dtype)


def matmul_bias_relu(x_bf16, w_bf16, b_f32):
    """relu(x @ w + b).  x:(M,K) bf16, w:(K,Np) bf16 (pre-padded, Np%128==0),
    b:(1,Np) f32.  Returns PADDED (Mp, Np) bf16; caller slices."""
    M, K = x_bf16.shape
    K2, Np = w_bf16.shape
    assert K == K2 and b_f32.shape == (1, Np) and Np % 128 == 0

    TM = _pick_tile_m(M, 512)          # big row tiles: grid-step overhead << HBM time
    Mp = _round_up(M, TM)
    TN = 128
    xp = x_bf16 if Mp == M else jnp.pad(x_bf16, ((0, Mp - M), (0, 0)))
    grid = (Mp // TM, Np // TN)

    return pl.pallas_call(
        _matmul_bias_relu_kernel,
        out_shape=jax.ShapeDtypeStruct((Mp, Np), jnp.bfloat16),
        grid_spec=pltpu.PrefetchScalarGridSpec(
            num_scalar_prefetch=0,
            grid=grid,
            in_specs=[
                pl.BlockSpec((TM, K), lambda i, j: (i, 0)),
                pl.BlockSpec((K, TN), lambda i, j: (0, j)),
                pl.BlockSpec((1, TN), lambda i, j: (0, j)),
            ],
            out_specs=pl.BlockSpec((TM, TN), lambda i, j: (i, j)),
        ),
        compiler_params=pltpu.CompilerParams(
            dimension_semantics=("parallel", "parallel"),
            vmem_limit_bytes=32 * 1024 * 1024),
    )(xp, w_bf16, b_f32)


# ----------------------------------------------------------------------------
# Kernel B: fused tail  conv3(+ReLU) -> flatten -> fc1(+ReLU) -> fc2
# Grid = (batch tiles [parallel], conv3 spatial-position BLOCKS [arbitrary]).
# Each step handles G=8 positions: G conv3 dots (K=CKp, 128-aligned lane slices
# of the patch block) packed into a (tm, G*64) VMEM buffer, then ONE fc1
# partial dot with K = G*64 = 512.  The 512-wide hidden pre-activation lives
# only in a VMEM f32 scratch accumulator and never touches HBM.
# ----------------------------------------------------------------------------
def fused_conv3_fc(p3, w3, b3, w1f, b1, w2, b2, *, tm, G, ckp):
    """p3:(Mp, Pp*ckp) bf16, batch-major conv3 patches (position-major, feature
    minor inside each row; feature dim zero-padded 576->ckp).
    w3:(ckp, C3) bf16, w1f:(Pp*C3, H1) bf16 (p-major/c-minor row order, padded
    positions zeroed), w2:(H1, NA) bf16.  Returns (Mp, NA) f32 (padded)."""
    Mp, PC = p3.shape
    CKp, C3 = w3.shape
    H1 = w1f.shape[1]
    NA = w2.shape[1]
    assert CKp == ckp and Mp % tm == 0 and PC % (G * ckp) == 0
    Pb = PC // (G * ckp)
    assert w1f.shape[0] == Pb * G * C3
    GC = G * C3
    grid = (Mp // tm, Pb)

    def kernel(p3_ref, w3_ref, b3_ref, w1_ref, b1_ref, w2_ref, b2_ref,
               o_ref, h_acc, c3_buf):
        pb = pl.program_id(1)

        @pl.when(pb == 0)
        def _():
            h_acc[...] = jnp.zeros_like(h_acc)

        # conv3 (+bias+ReLU) for G spatial positions, packed into (tm, G*C3).
        for g in range(G):                                   # static unroll
            xg = p3_ref[:, g * CKp:(g + 1) * CKp]            # 128-aligned slice
            cg = jnp.dot(xg, w3_ref[...], preferred_element_type=jnp.float32)
            cg = jnp.maximum(cg + b3_ref[...], 0.0)
            c3_buf[:, g * C3:(g + 1) * C3] = cg.astype(jnp.bfloat16)

        # fc1 partial contraction: K = G*C3 = 512 fills the 256-deep MXU.
        h_acc[...] += jnp.dot(c3_buf[...], w1_ref[...],
                              preferred_element_type=jnp.float32)

        @pl.when(pb == pl.num_programs(1) - 1)
        def _():
            h = jnp.maximum(h_acc[...] + b1_ref[...], 0.0).astype(jnp.bfloat16)
            q = jnp.dot(h, w2_ref[...], preferred_element_type=jnp.float32)
            o_ref[...] = q + b2_ref[...]

    return pl.pallas_call(
        kernel,
        out_shape=jax.ShapeDtypeStruct((Mp, NA), jnp.float32),
        grid_spec=pltpu.PrefetchScalarGridSpec(
            num_scalar_prefetch=0,
            grid=grid,
            in_specs=[
                pl.BlockSpec((tm, G * ckp), lambda i, p: (i, p)),
                pl.BlockSpec((CKp, C3), lambda i, p: (0, 0)),
                pl.BlockSpec((1, C3), lambda i, p: (0, 0)),
                pl.BlockSpec((GC, H1), lambda i, p: (p, 0)),
                pl.BlockSpec((1, H1), lambda i, p: (0, 0)),
                pl.BlockSpec((H1, NA), lambda i, p: (0, 0)),
                pl.BlockSpec((1, NA), lambda i, p: (0, 0)),
            ],
            out_specs=pl.BlockSpec((tm, NA), lambda i, p: (i, 0)),
            scratch_shapes=[pltpu.VMEM((tm, H1), jnp.float32),
                            pltpu.VMEM((tm, GC), jnp.bfloat16)],
        ),
        compiler_params=pltpu.CompilerParams(
            dimension_semantics=("parallel", "arbitrary"),
            vmem_limit_bytes=32 * 1024 * 1024),
    )(p3, w3, b3, w1f, b1, w2, b2)


# ----------------------------------------------------------------------------
# Conv glue: im2col (XLA-side, bf16) with (kh, kw, c) patch ordering
# ----------------------------------------------------------------------------
def _im2col(x_nhwc, K, S):
    N, H, W, C = x_nhwc.shape
    Ho = (H - K) // S + 1
    Wo = (W - K) // S + 1
    cols = []
    for kh in range(K):
        for kw in range(K):
            cols.append(x_nhwc[:, kh:kh + (Ho - 1) * S + 1:S,
                                  kw:kw + (Wo - 1) * S + 1:S, :])
    patches = jnp.concatenate(cols, axis=-1)        # (N, Ho, Wo, K*K*C)
    return patches, (Ho, Wo)


# ----------------------------------------------------------------------------
# One-time parameter preparation (all constant-tensor work hoisted out of fwd)
# ----------------------------------------------------------------------------
def prepare_params(p, input_hw):
    h, w = input_hw
    h1, w1 = _conv_out(h, 8, 4), _conv_out(w, 8, 4)
    h2, w2 = _conv_out(h1, 4, 2), _conv_out(w1, 4, 2)
    h3, w3 = _conv_out(h2, 3, 1), _conv_out(w2, 3, 1)
    P = h3 * w3
    Pp = _round_up(P, _G)

    def conv_mat(wname, bname, pad_out_to=None, pad_k_to=None):
        W = p[wname]                                            # (O, I, K, K)
        O, I, K, _ = W.shape
        KK = K * K * I
        Wm = jnp.transpose(W, (2, 3, 1, 0)).reshape(KK, O)      # (kh,kw,c) rows
        Kp = pad_k_to if pad_k_to else KK
        Op = pad_out_to if pad_out_to else O
        Wm = jnp.pad(Wm, ((0, Kp - KK), (0, Op - O))).astype(jnp.bfloat16)
        b = jnp.pad(p[bname], (0, Op - O)).reshape(1, Op).astype(jnp.float32)
        return Wm, b

    c1 = p['conv1_w'].shape[0]
    c2 = p['conv2_w'].shape[0]
    C3 = p['conv3_w'].shape[0]
    w1m, b1m = conv_mat('conv1_w', 'conv1_b', pad_out_to=_round_up(c1, 128))
    w2m, b2m = conv_mat('conv2_w', 'conv2_b', pad_out_to=_round_up(c2, 128))
    CK3 = 3 * 3 * c2
    CKp = _round_up(CK3, 128)                                   # 576 -> 640
    w3m, b3m = conv_mat('conv3_w', 'conv3_b', pad_k_to=CKp)     # (640, 64)

    H1 = p['fc1_w'].shape[0]
    assert p['fc1_w'].shape[1] == C3 * P
    # PyTorch NCHW flatten order is f = c*P + p; re-order rows to (p-major,
    # c-minor) and zero-pad the spatial dim to Pp so padded positions (and the
    # garbage conv3 values computed for them) contribute nothing to fc1.
    w1f = p['fc1_w'].T.reshape(C3, P, H1).transpose(1, 0, 2)    # (P, C3, H1)
    w1f = jnp.pad(w1f, ((0, Pp - P), (0, 0), (0, 0)))
    w1f = w1f.reshape(Pp * C3, H1).astype(jnp.bfloat16)
    b1f = p['fc1_b'].reshape(1, H1).astype(jnp.float32)

    n_act = p['fc2_w'].shape[0]
    NA = _round_up(n_act, 128)
    w2f = jnp.pad(p['fc2_w'].T, ((0, 0), (0, NA - n_act))).astype(jnp.bfloat16)
    b2f = jnp.pad(p['fc2_b'], (0, NA - n_act)).reshape(1, NA).astype(jnp.float32)

    prep = dict(w1m=w1m, b1m=b1m, w2m=w2m, b2m=b2m, w3m=w3m, b3m=b3m,
                w1f=w1f, b1f=b1f, w2f=w2f, b2f=b2f)
    cfg = dict(c1=int(c1), c2=int(c2), P=int(P), Pp=int(Pp),
               CK3=int(CK3), CKp=int(CKp), n_actions=int(n_act))
    return prep, cfg


def make_mario_forward(params, input_hw):
    prep, cfg = prepare_params(params, input_hw)
    c1, c2 = cfg['c1'], cfg['c2']
    P, Pp, CK3, CKp = cfg['P'], cfg['Pp'], cfg['CK3'], cfg['CKp']
    n_actions = cfg['n_actions']

    def forward(x_nchw):
        x = jnp.transpose(x_nchw, (0, 2, 3, 1)).astype(jnp.bfloat16)  # NHWC bf16
        N = x.shape[0]

        # conv1 + ReLU
        pat, (ho, wo) = _im2col(x, 8, 4)
        m = N * ho * wo
        y = matmul_bias_relu(pat.reshape(m, -1), prep['w1m'], prep['b1m'])
        x = y[:m, :c1].reshape(N, ho, wo, c1)

        # conv2 + ReLU
        pat, (ho, wo) = _im2col(x, 4, 2)
        m = N * ho * wo
        y = matmul_bias_relu(pat.reshape(m, -1), prep['w2m'], prep['b2m'])
        x = y[:m, :c2].reshape(N, ho, wo, c2)

        # conv3 + ReLU + flatten + fc1 + ReLU + fc2 (single fused kernel).
        # Patches stay batch-major (no transpose copy); pad batch/positions/
        # features once and present as a 2-D lane-dense slab.
        pat, (ho, wo) = _im2col(x, 3, 1)
        assert ho * wo == P
        tm = _pick_tile_m(N, 256)
        Mp = _round_up(N, tm)
        p3 = jnp.pad(pat.reshape(N, P, CK3),
                     ((0, Mp - N), (0, Pp - P), (0, CKp - CK3)))
        p3 = p3.reshape(Mp, Pp * CKp)
        q = fused_conv3_fc(p3, prep['w3m'], prep['b3m'], prep['w1f'],
                           prep['b1f'], prep['w2f'], prep['b2f'],
                           tm=tm, G=_G, ckp=CKp)
        return q[:N, :n_actions]

    return jax.jit(forward)


# ----------------------------------------------------------------------------
# Deterministic parameter construction + pure-JAX f32 reference
# ----------------------------------------------------------------------------
def init_params(key, c_in, h, w, n_actions):
    h1, w1 = _conv_out(h, 8, 4), _conv_out(w, 8, 4)
    h2, w2 = _conv_out(h1, 4, 2), _conv_out(w1, 4, 2)
    h3, w3 = _conv_out(h2, 3, 1), _conv_out(w2, 3, 1)
    flat = 64 * h3 * w3
    ks = jax.random.split(key, 10)

    def norm(k, shape, scale=0.05):
        return scale * jax.random.normal(k, shape, dtype=jnp.float32)

    return {
        'conv1_w': norm(ks[0], (32, c_in, 8, 8)), 'conv1_b': norm(ks[1], (32,)),
        'conv2_w': norm(ks[2], (64, 32, 4, 4)),   'conv2_b': norm(ks[3], (64,)),
        'conv3_w': norm(ks[4], (64, 64, 3, 3)),   'conv3_b': norm(ks[5], (64,)),
        'fc1_w':   norm(ks[6], (512, flat)),      'fc1_b':   norm(ks[7], (512,)),
        'fc2_w':   norm(ks[8], (n_actions, 512)), 'fc2_b':   norm(ks[9], (n_actions,)),
    }


def ref_forward(x_nchw, p):
    y = x_nchw.astype(jnp.float32)
    for name, s in (('conv1', 4), ('conv2', 2), ('conv3', 1)):
        w, b = p[name + '_w'], p[name + '_b']
        y = lax.conv_general_dilated(
            y, w, window_strides=(s, s), padding='VALID',
            dimension_numbers=('NCHW', 'OIHW', 'NCHW'))
        y = jax.nn.relu(y + b[None, :, None, None])
    f = y.reshape(y.shape[0], -1)
    h = jax.nn.relu(f @ p['fc1_w'].T + p['fc1_b'])
    return h @ p['fc2_w'].T + p['fc2_b']


if __name__ == "__main__":
    # Small input consistent with the CNN strides: conv outputs are 12x12 ->
    # 5x5 -> 3x3, so P=9 -> Pp=16 and the fused-tail P-block accumulation
    # (2 grid steps of G=8 positions) is actually exercised.
    B, C, H, W = 2, 4, 52, 52
    n_actions = 5

    key = jax.random.PRNGKey(0)
    kx, kp = jax.random.split(key)
    x = jax.random.normal(kx, (B, C, H, W), dtype=jnp.float32)
    params = init_params(kp, C, H, W, n_actions)

    fwd = make_mario_forward(params, (H, W))
    out = jax.block_until_ready(fwd(x))

    ref = ref_forward(x, params)
    assert out.shape == (B, n_actions), out.shape
    assert bool(jnp.all(jnp.isfinite(out)))
    assert bool(jnp.allclose(out, ref, rtol=5e-2, atol=5e-2)), (out, ref)

    print("KERNEL_OK")
</pallas_src>

<mosaic_0001>
module attributes {stable_mosaic.version = 11 : i64} {
  func.func @_matmul_bias_relu_kernel(%arg0: i32, %arg1: i32, %arg2: memref<288x256xbf16, #tpu.memory_space<vmem>>, %arg3: memref<256x128xbf16, #tpu.memory_space<vmem>>, %arg4: memref<1x128xf32, #tpu.memory_space<vmem>>, %arg5: memref<288x128xbf16, #tpu.memory_space<vmem>>) attributes {dimension_semantics = [#tpu.dimension_semantics<parallel>, #tpu.dimension_semantics<parallel>], iteration_bounds = array<i64: 1, 1>, scalar_prefetch = 0 : i64, scratch_operands = 0 : i64, tpu.core_type = #tpu.core_type<tc>, window_params = [{transform_indices = @transform_0, window_bounds = array<i64: 288, 256>}, {transform_indices = @transform_1, window_bounds = array<i64: 256, 128>}, {transform_indices = @transform_2, window_bounds = array<i64: 1, 128>}, {transform_indices = @transform_3, window_bounds = array<i64: 288, 128>}]} {
    %c0 = arith.constant 0 : index
    %c0_0 = arith.constant 0 : index
    %0 = vector.load %arg2[%c0, %c0_0] : memref<288x256xbf16, #tpu.memory_space<vmem>>, vector<288x256xbf16>
    %c0_1 = arith.constant 0 : index
    %c0_2 = arith.constant 0 : index
    %1 = vector.load %arg3[%c0_1, %c0_2] : memref<256x128xbf16, #tpu.memory_space<vmem>>, vector<256x128xbf16>
    %cst = arith.constant dense<0.000000e+00> : vector<288x128xf32>
    %2 = tpu.matmul %0, %1, %cst {dimension_numbers = #tpu.dot_dimension_numbers<[1], [0], [0], [1], [0, 0, 1, 1], [], []>} : vector<288x256xbf16>, vector<256x128xbf16>, vector<288x128xf32> -> vector<288x128xf32>
    %c0_3 = arith.constant 0 : index
    %c0_4 = arith.constant 0 : index
    %3 = vector.load %arg4[%c0_3, %c0_4] : memref<1x128xf32, #tpu.memory_space<vmem>>, vector<1x128xf32>
    %4 = vector.broadcast %3 : vector<1x128xf32> to vector<288x128xf32>
    %5 = arith.addf %2, %4 : vector<288x128xf32>
    %cst_5 = arith.constant 0.000000e+00 : f32
    %6 = vector.broadcast %cst_5 : f32 to vector<288x128xf32>
    %7 = arith.maximumf %5, %6 : vector<288x128xf32>
    %8 = arith.truncf %7 : vector<288x128xf32> to vector<288x128xbf16>
    %c0_6 = arith.constant 0 : index
    %c0_7 = arith.constant 0 : index
    %9 = vector.load %arg5[%c0_6, %c0_7] : memref<288x128xbf16, #tpu.memory_space<vmem>>, vector<288x128xbf16>
    tpu.vector_store %arg5[%c0_6, %c0_7], %8 {strides = array<i32>} : memref<288x128xbf16, #tpu.memory_space<vmem>>, vector<288x128xbf16>,
    return
  }
  func.func @transform_0(%arg0: i32, %arg1: i32) -> (i32, i32) {
    %c0_i32 = arith.constant 0 : i32
    %c0_i32_0 = arith.constant 0 : i32
    return %arg0, %c0_i32 : i32, i32
  }
  func.func @transform_1(%arg0: i32, %arg1: i32) -> (i32, i32) {
    %c0_i32 = arith.constant 0 : i32
    %c0_i32_0 = arith.constant 0 : i32
    return %c0_i32, %arg1 : i32, i32
  }
  func.func @transform_2(%arg0: i32, %arg1: i32) -> (i32, i32) {
    %c0_i32 = arith.constant 0 : i32
    %c0_i32_0 = arith.constant 0 : i32
    return %c0_i32, %arg1 : i32, i32
  }
  func.func @transform_3(%arg0: i32, %arg1: i32) -> (i32, i32) {
    %c0_i32 = arith.constant 0 : i32
    return %arg0, %arg1 : i32, i32
  }
}

module attributes {stable_mosaic.version = 11 : i64} {
  func.func @_matmul_bias_relu_kernel(%arg0: i32, %arg1: i32, %arg2: memref<64x512xbf16, #tpu.memory_space<vmem>>, %arg3: memref<512x128xbf16, #tpu.memory_space<vmem>>, %arg4: memref<1x128xf32, #tpu.memory_space<vmem>>, %arg5: memref<64x128xbf16, #tpu.memory_space<vmem>>) attributes {dimension_semantics = [#tpu.dimension_semantics<parallel>, #tpu.dimension_semantics<parallel>], iteration_bounds = array<i64: 1, 1>, scalar_prefetch = 0 : i64, scratch_operands = 0 : i64, tpu.core_type = #tpu.core_type<tc>, window_params = [{transform_indices = @transform_0, window_bounds = array<i64: 64, 512>}, {transform_indices = @transform_1, window_bounds = array<i64: 512, 128>}, {transform_indices = @transform_2, window_bounds = array<i64: 1, 128>}, {transform_indices = @transform_3, window_bounds = array<i64: 64, 128>}]} {
    %c0 = arith.constant 0 : index
    %c0_0 = arith.constant 0 : index
    %0 = vector.load %arg2[%c0, %c0_0] : memref<64x512xbf16, #tpu.memory_space<vmem>>, vector<64x512xbf16>
    %c0_1 = arith.constant 0 : index
    %c0_2 = arith.constant 0 : index
    %1 = vector.load %arg3[%c0_1, %c0_2] : memref<512x128xbf16, #tpu.memory_space<vmem>>, vector<512x128xbf16>
    %cst = arith.constant dense<0.000000e+00> : vector<64x128xf32>
    %2 = tpu.matmul %0, %1, %cst {dimension_numbers = #tpu.dot_dimension_numbers<[1], [0], [0], [1], [0, 0, 1, 1], [], []>} : vector<64x512xbf16>, vector<512x128xbf16>, vector<64x128xf32> -> vector<64x128xf32>
    %c0_3 = arith.constant 0 : index
    %c0_4 = arith.constant 0 : index
    %3 = vector.load %arg4[%c0_3, %c0_4] : memref<1x128xf32, #tpu.memory_space<vmem>>, vector<1x128xf32>
    %4 = vector.broadcast %3 : vector<1x128xf32> to vector<64x128xf32>
    %5 = arith.addf %2, %4 : vector<64x128xf32>
    %cst_5 = arith.constant 0.000000e+00 : f32
    %6 = vector.broadcast %cst_5 : f32 to vector<64x128xf32>
    %7 = arith.maximumf %5, %6 : vector<64x128xf32>
    %8 = arith.truncf %7 : vector<64x128xf32> to vector<64x128xbf16>
    %c0_6 = arith.constant 0 : index
    %c0_7 = arith.constant 0 : index
    %9 = vector.load %arg5[%c0_6, %c0_7] : memref<64x128xbf16, #tpu.memory_space<vmem>>, vector<64x128xbf16>
    tpu.vector_store %arg5[%c0_6, %c0_7], %8 {strides = array<i32>} : memref<64x128xbf16, #tpu.memory_space<vmem>>, vector<64x128xbf16>,
    return
  }
  func.func @transform_0(%arg0: i32, %arg1: i32) -> (i32, i32) {
    %c0_i32 = arith.constant 0 : i32
    %c0_i32_0 = arith.constant 0 : i32
    return %arg0, %c0_i32 : i32, i32
  }
  func.func @transform_1(%arg0: i32, %arg1: i32) -> (i32, i32) {
    %c0_i32 = arith.constant 0 : i32
    %c0_i32_0 = arith.constant 0 : i32
    return %c0_i32, %arg1 : i32, i32
  }
  func.func @transform_2(%arg0: i32, %arg1: i32) -> (i32, i32) {
    %c0_i32 = arith.constant 0 : i32
    %c0_i32_0 = arith.constant 0 : i32
    return %c0_i32, %arg1 : i32, i32
  }
  func.func @transform_3(%arg0: i32, %arg1: i32) -> (i32, i32) {
    %c0_i32 = arith.constant 0 : i32
    return %arg0, %arg1 : i32, i32
  }
}

module attributes {stable_mosaic.version = 11 : i64} {
  func.func @kernel(%arg0: i32, %arg1: i32, %arg2: memref<16x5120xbf16, #tpu.memory_space<vmem>>, %arg3: memref<640x64xbf16, #tpu.memory_space<vmem>>, %arg4: memref<1x64xf32, #tpu.memory_space<vmem>>, %arg5: memref<512x512xbf16, #tpu.memory_space<vmem>>, %arg6: memref<1x512xf32, #tpu.memory_space<vmem>>, %arg7: memref<512x128xbf16, #tpu.memory_space<vmem>>, %arg8: memref<1x128xf32, #tpu.memory_space<vmem>>, %arg9: memref<16x128xf32, #tpu.memory_space<vmem>>, %arg10: memref<16x512xf32, #tpu.memory_space<vmem>>, %arg11: memref<16x512xbf16, #tpu.memory_space<vmem>>) attributes {dimension_semantics = [#tpu.dimension_semantics<parallel>, #tpu.dimension_semantics<arbitrary>], iteration_bounds = array<i64: 1, 2>, scalar_prefetch = 0 : i64, scratch_operands = 2 : i64, tpu.core_type = #tpu.core_type<tc>, window_params = [{transform_indices = @transform_0, window_bounds = array<i64: 16, 5120>}, {pipeline_mode = #tpu.pipeline_mode<synchronous>, transform_indices = @transform_1, window_bounds = array<i64: 640, 64>}, {pipeline_mode = #tpu.pipeline_mode<synchronous>, transform_indices = @transform_2, window_bounds = array<i64: 1, 64>}, {transform_indices = @transform_3, window_bounds = array<i64: 512, 512>}, {pipeline_mode = #tpu.pipeline_mode<synchronous>, transform_indices = @transform_4, window_bounds = array<i64: 1, 512>}, {pipeline_mode = #tpu.pipeline_mode<synchronous>, transform_indices = @transform_5, window_bounds = array<i64: 512, 128>}, {pipeline_mode = #tpu.pipeline_mode<synchronous>, transform_indices = @transform_6, window_bounds = array<i64: 1, 128>}, {transform_indices = @transform_7, window_bounds = array<i64: 16, 128>}]} {
    %c0_i32 = arith.constant 0 : i32
    %0 = arith.cmpi eq, %arg1, %c0_i32 : i32
    %1 = arith.extui %0 : i1 to i32
    %c0_i32_0 = arith.constant 0 : i32
    %2 = arith.cmpi ne, %1, %c0_i32_0 : i32
    scf.if %2 {
      %cst_75 = arith.constant 0.000000e+00 : f32
      %92 = vector.broadcast %cst_75 : f32 to vector<16x512xf32>
      %c0_76 = arith.constant 0 : index
      %c0_77 = arith.constant 0 : index
      %93 = vector.load %arg10[%c0_76, %c0_77] : memref<16x512xf32, #tpu.memory_space<vmem>>, vector<16x512xf32>
      tpu.vector_store %arg10[%c0_76, %c0_77], %92 {strides = array<i32>} : memref<16x512xf32, #tpu.memory_space<vmem>>, vector<16x512xf32>,
    } else {
    }
    %c0 = arith.constant 0 : index
    %c0_1 = arith.constant 0 : index
    %3 = vector.load %arg2[%c0, %c0_1] : memref<16x5120xbf16, #tpu.memory_space<vmem>>, vector<16x640xbf16>
    %c0_2 = arith.constant 0 : index
    %c0_3 = arith.constant 0 : index
    %4 = vector.load %arg3[%c0_2, %c0_3] : memref<640x64xbf16, #tpu.memory_space<vmem>>, vector<640x64xbf16>
    %cst = arith.constant dense<0.000000e+00> : vector<16x64xf32>
    %5 = tpu.matmul %3, %4, %cst {dimension_numbers = #tpu.dot_dimension_numbers<[1], [0], [0], [1], [0, 0, 1, 1], [], []>} : vector<16x640xbf16>, vector<640x64xbf16>, vector<16x64xf32> -> vector<16x64xf32>
    %c0_4 = arith.constant 0 : index
    %c0_5 = arith.constant 0 : index
    %6 = vector.load %arg4[%c0_4, %c0_5] : memref<1x64xf32, #tpu.memory_space<vmem>>, vector<1x64xf32>
    %7 = vector.broadcast %6 : vector<1x64xf32> to vector<16x64xf32>
    %8 = arith.addf %5, %7 : vector<16x64xf32>
    %cst_6 = arith.constant 0.000000e+00 : f32
    %9 = vector.broadcast %cst_6 : f32 to vector<16x64xf32>
    %10 = arith.maximumf %8, %9 : vector<16x64xf32>
    %11 = arith.truncf %10 : vector<16x64xf32> to vector<16x64xbf16>
    %c0_7 = arith.constant 0 : index
    %c0_8 = arith.constant 0 : index
    %12 = vector.load %arg11[%c0_7, %c0_8] : memref<16x512xbf16, #tpu.memory_space<vmem>>, vector<16x64xbf16>
    tpu.vector_store %arg11[%c0_7, %c0_8], %11 {strides = array<i32>} : memref<16x512xbf16, #tpu.memory_space<vmem>>, vector<16x64xbf16>,
    %c0_9 = arith.constant 0 : index
    %c640 = arith.constant 640 : index
    %13 = vector.load %arg2[%c0_9, %c640] : memref<16x5120xbf16, #tpu.memory_space<vmem>>, vector<16x640xbf16>
    %c0_10 = arith.constant 0 : index
    %c0_11 = arith.constant 0 : index
    %14 = vector.load %arg3[%c0_10, %c0_11] : memref<640x64xbf16, #tpu.memory_space<vmem>>, vector<640x64xbf16>
    %cst_12 = arith.constant dense<0.000000e+00> : vector<16x64xf32>
    %15 = tpu.matmul %13, %14, %cst_12 {dimension_numbers = #tpu.dot_dimension_numbers<[1], [0], [0], [1], [0, 0, 1, 1], [], []>} : vector<16x640xbf16>, vector<640x64xbf16>, vector<16x64xf32> -> vector<16x64xf32>
    %c0_13 = arith.constant 0 : index
    %c0_14 = arith.constant 0 : index
    %16 = vector.load %arg4[%c0_13, %c0_14] : memref<1x64xf32, #tpu.memory_space<vmem>>, vector<1x64xf32>
    %17 = vector.broadcast %16 : vector<1x64xf32> to vector<16x64xf32>
    %18 = arith.addf %15, %17 : vector<16x64xf32>
    %cst_15 = arith.constant 0.000000e+00 : f32
    %19 = vector.broadcast %cst_15 : f32 to vector<16x64xf32>
    %20 = arith.maximumf %18, %19 : vector<16x64xf32>
    %21 = arith.truncf %20 : vector<16x64xf32> to vector<16x64xbf16>
    %c0_16 = arith.constant 0 : index
    %c64 = arith.constant 64 : index
    %22 = vector.load %arg11[%c0_16, %c64] : memref<16x512xbf16, #tpu.memory_space<vmem>>, vector<16x64xbf16>
    tpu.vector_store %arg11[%c0_16, %c64], %21 {strides = array<i32>} : memref<16x512xbf16, #tpu.memory_space<vmem>>, vector<16x64xbf16>,
    %c0_17 = arith.constant 0 : index
    %c1280 = arith.constant 1280 : index
    %23 = vector.load %arg2[%c0_17, %c1280] : memref<16x5120xbf16, #tpu.memory_space<vmem>>, vector<16x640xbf16>
    %c0_18 = arith.constant 0 : index
    %c0_19 = arith.constant 0 : index
    %24 = vector.load %arg3[%c0_18, %c0_19] : memref<640x64xbf16, #tpu.memory_space<vmem>>, vector<640x64xbf16>
    %cst_20 = arith.constant dense<0.000000e+00> : vector<16x64xf32>
    %25 = tpu.matmul %23, %24, %cst_20 {dimension_numbers = #tpu.dot_dimension_numbers<[1], [0], [0], [1], [0, 0, 1, 1], [], []>} : vector<16x640xbf16>, vector<640x64xbf16>, vector<16x64xf32> -> vector<16x64xf32>
    %c0_21 = arith.constant 0 : index
    %c0_22 = arith.constant 0 : index
    %26 = vector.load %arg4[%c0_21, %c0_22] : memref<1x64xf32, #tpu.memory_space<vmem>>, vector<1x64xf32>
    %27 = vector.broadcast %26 : vector<1x64xf32> to vector<16x64xf32>
    %28 = arith.addf %25, %27 : vector<16x64xf32>
    %cst_23 = arith.constant 0.000000e+00 : f32
    %29 = vector.broadcast %cst_23 : f32 to vector<16x64xf32>
    %30 = arith.maximumf %28, %29 : vector<16x64xf32>
    %31 = arith.truncf %30 : vector<16x64xf32> to vector<16x64xbf16>
    %c0_24 = arith.constant 0 : index
    %c128 = arith.constant 128 : index
    %32 = vector.load %arg11[%c0_24, %c128] : memref<16x512xbf16, #tpu.memory_space<vmem>>, vector<16x64xbf16>
    tpu.vector_store %arg11[%c0_24, %c128], %31 {strides = array<i32>} : memref<16x512xbf16, #tpu.memory_space<vmem>>, vector<16x64xbf16>,
    %c0_25 = arith.constant 0 : index
    %c1920 = arith.constant 1920 : index
    %33 = vector.load %arg2[%c0_25, %c1920] : memref<16x5120xbf16, #tpu.memory_space<vmem>>, vector<16x640xbf16>
    %c0_26 = arith.constant 0 : index
    %c0_27 = arith.constant 0 : index
    %34 = vector.load %arg3[%c0_26, %c0_27] : memref<640x64xbf16, #tpu.memory_space<vmem>>, vector<640x64xbf16>
    %cst_28 = arith.constant dense<0.000000e+00> : vector<16x64xf32>
    %35 = tpu.matmul %33, %34, %cst_28 {dimension_numbers = #tpu.dot_dimension_numbers<[1], [0], [0], [1], [0, 0, 1, 1], [], []>} : vector<16x640xbf16>, vector<640x64xbf16>, vector<16x64xf32> -> vector<16x64xf32>
    %c0_29 = arith.constant 0 : index
    %c0_30 = arith.constant 0 : index
    %36 = vector.load %arg4[%c0_29, %c0_30] : memref<1x64xf32, #tpu.memory_space<vmem>>, vector<1x64xf32>
    %37 = vector.broadcast %36 : vector<1x64xf32> to vector<16x64xf32>
    %38 = arith.addf %35, %37 : vector<16x64xf32>
    %cst_31 = arith.constant 0.000000e+00 : f32
    %39 = vector.broadcast %cst_31 : f32 to vector<16x64xf32>
    %40 = arith.maximumf %38, %39 : vector<16x64xf32>
    %41 = arith.truncf %40 : vector<16x64xf32> to vector<16x64xbf16>
    %c0_32 = arith.constant 0 : index
    %c192 = arith.constant 192 : index
    %42 = vector.load %arg11[%c0_32, %c192] : memref<16x512xbf16, #tpu.memory_space<vmem>>, vector<16x64xbf16>
    tpu.vector_store %arg11[%c0_32, %c192], %41 {strides = array<i32>} : memref<16x512xbf16, #tpu.memory_space<vmem>>, vector<16x64xbf16>,
    %c0_33 = arith.constant 0 : index
    %c2560 = arith.constant 2560 : index
    %43 = vector.load %arg2[%c0_33, %c2560] : memref<16x5120xbf16, #tpu.memory_space<vmem>>, vector<16x640xbf16>
    %c0_34 = arith.constant 0 : index
    %c0_35 = arith.constant 0 : index
    %44 = vector.load %arg3[%c0_34, %c0_35] : memref<640x64xbf16, #tpu.memory_space<vmem>>, vector<640x64xbf16>
    %cst_36 = arith.constant dense<0.000000e+00> : vector<16x64xf32>
    %45 = tpu.matmul %43, %44, %cst_36 {dimension_numbers = #tpu.dot_dimension_numbers<[1], [0], [0], [1], [0, 0, 1, 1], [], []>} : vector<16x640xbf16>, vector<640x64xbf16>, vector<16x64xf32> -> vector<16x64xf32>
    %c0_37 = arith.constant 0 : index
    %c0_38 = arith.constant 0 : index
    %46 = vector.load %arg4[%c0_37, %c0_38] : memref<1x64xf32, #tpu.memory_space<vmem>>, vector<1x64xf32>
    %47 = vector.broadcast %46 : vector<1x64xf32> to vector<16x64xf32>
    %48 = arith.addf %45, %47 : vector<16x64xf32>
    %cst_39 = arith.constant 0.000000e+00 : f32
    %49 = vector.broadcast %cst_39 : f32 to vector<16x64xf32>
    %50 = arith.maximumf %48, %49 : vector<16x64xf32>
    %51 = arith.truncf %50 : vector<16x64xf32> to vector<16x64xbf16>
    %c0_40 = arith.constant 0 : index
    %c256 = arith.constant 256 : index
    %52 = vector.load %arg11[%c0_40, %c256] : memref<16x512xbf16, #tpu.memory_space<vmem>>, vector<16x64xbf16>
    tpu.vector_store %arg11[%c0_40, %c256], %51 {strides = array<i32>} : memref<16x512xbf16, #tpu.memory_space<vmem>>, vector<16x64xbf16>,
    %c0_41 = arith.constant 0 : index
    %c3200 = arith.constant 3200 : index
    %53 = vector.load %arg2[%c0_41, %c3200] : memref<16x5120xbf16, #tpu.memory_space<vmem>>, vector<16x640xbf16>
    %c0_42 = arith.constant 0 : index
    %c0_43 = arith.constant 0 : index
    %54 = vector.load %arg3[%c0_42, %c0_43] : memref<640x64xbf16, #tpu.memory_space<vmem>>, vector<640x64xbf16>
    %cst_44 = arith.constant dense<0.000000e+00> : vector<16x64xf32>
    %55 = tpu.matmul %53, %54, %cst_44 {dimension_numbers = #tpu.dot_dimension_numbers<[1], [0], [0], [1], [0, 0, 1, 1], [], []>} : vector<16x640xbf16>, vector<640x64xbf16>, vector<16x64xf32> -> vector<16x64xf32>
    %c0_45 = arith.constant 0 : index
    %c0_46 = arith.constant 0 : index
    %56 = vector.load %arg4[%c0_45, %c0_46] : memref<1x64xf32, #tpu.memory_space<vmem>>, vector<1x64xf32>
    %57 = vector.broadcast %56 : vector<1x64xf32> to vector<16x64xf32>
    %58 = arith.addf %55, %57 : vector<16x64xf32>
    %cst_47 = arith.constant 0.000000e+00 : f32
    %59 = vector.broadcast %cst_47 : f32 to vector<16x64xf32>
    %60 = arith.maximumf %58, %59 : vector<16x64xf32>
    %61 = arith.truncf %60 : vector<16x64xf32> to vector<16x64xbf16>
    %c0_48 = arith.constant 0 : index
    %c320 = arith.constant 320 : index
    %62 = vector.load %arg11[%c0_48, %c320] : memref<16x512xbf16, #tpu.memory_space<vmem>>, vector<16x64xbf16>
    tpu.vector_store %arg11[%c0_48, %c320], %61 {strides = array<i32>} : memref<16x512xbf16, #tpu.memory_space<vmem>>, vector<16x64xbf16>,
    %c0_49 = arith.constant 0 : index
    %c3840 = arith.constant 3840 : index
    %63 = vector.load %arg2[%c0_49, %c3840] : memref<16x5120xbf16, #tpu.memory_space<vmem>>, vector<16x640xbf16>
    %c0_50 = arith.constant 0 : index
    %c0_51 = arith.constant 0 : index
    %64 = vector.load %arg3[%c0_50, %c0_51] : memref<640x64xbf16, #tpu.memory_space<vmem>>, vector<640x64xbf16>
    %cst_52 = arith.constant dense<0.000000e+00> : vector<16x64xf32>
    %65 = tpu.matmul %63, %64, %cst_52 {dimension_numbers = #tpu.dot_dimension_numbers<[1], [0], [0], [1], [0, 0, 1, 1], [], []>} : vector<16x640xbf16>, vector<640x64xbf16>, vector<16x64xf32> -> vector<16x64xf32>
    %c0_53 = arith.constant 0 : index
    %c0_54 = arith.constant 0 : index
    %66 = vector.load %arg4[%c0_53, %c0_54] : memref<1x64xf32, #tpu.memory_space<vmem>>, vector<1x64xf32>
    %67 = vector.broadcast %66 : vector<1x64xf32> to vector<16x64xf32>
    %68 = arith.addf %65, %67 : vector<16x64xf32>
    %cst_55 = arith.constant 0.000000e+00 : f32
    %69 = vector.broadcast %cst_55 : f32 to vector<16x64xf32>
    %70 = arith.maximumf %68, %69 : vector<16x64xf32>
    %71 = arith.truncf %70 : vector<16x64xf32> to vector<16x64xbf16>
    %c0_56 = arith.constant 0 : index
    %c384 = arith.constant 384 : index
    %72 = vector.load %arg11[%c0_56, %c384] : memref<16x512xbf16, #tpu.memory_space<vmem>>, vector<16x64xbf16>
    tpu.vector_store %arg11[%c0_56, %c384], %71 {strides = array<i32>} : memref<16x512xbf16, #tpu.memory_space<vmem>>, vector<16x64xbf16>,
    %c0_57 = arith.constant 0 : index
    %c4480 = arith.constant 4480 : index
    %73 = vector.load %arg2[%c0_57, %c4480] : memref<16x5120xbf16, #tpu.memory_space<vmem>>, vector<16x640xbf16>
    %c0_58 = arith.constant 0 : index
    %c0_59 = arith.constant 0 : index
    %74 = vector.load %arg3[%c0_58, %c0_59] : memref<640x64xbf16, #tpu.memory_space<vmem>>, vector<640x64xbf16>
    %cst_60 = arith.constant dense<0.000000e+00> : vector<16x64xf32>
    %75 = tpu.matmul %73, %74, %cst_60 {dimension_numbers = #tpu.dot_dimension_numbers<[1], [0], [0], [1], [0, 0, 1, 1], [], []>} : vector<16x640xbf16>, vector<640x64xbf16>, vector<16x64xf32> -> vector<16x64xf32>
    %c0_61 = arith.constant 0 : index
    %c0_62 = arith.constant 0 : index
    %76 = vector.load %arg4[%c0_61, %c0_62] : memref<1x64xf32, #tpu.memory_space<vmem>>, vector<1x64xf32>
    %77 = vector.broadcast %76 : vector<1x64xf32> to vector<16x64xf32>
    %78 = arith.addf %75, %77 : vector<16x64xf32>
    %cst_63 = arith.constant 0.000000e+00 : f32
    %79 = vector.broadcast %cst_63 : f32 to vector<16x64xf32>
    %80 = arith.maximumf %78, %79 : vector<16x64xf32>
    %81 = arith.truncf %80 : vector<16x64xf32> to vector<16x64xbf16>
    %c0_64 = arith.constant 0 : index
    %c448 = arith.constant 448 : index
    %82 = vector.load %arg11[%c0_64, %c448] : memref<16x512xbf16, #tpu.memory_space<vmem>>, vector<16x64xbf16>
    tpu.vector_store %arg11[%c0_64, %c448], %81 {strides = array<i32>} : memref<16x512xbf16, #tpu.memory_space<vmem>>, vector<16x64xbf16>,
    %c0_65 = arith.constant 0 : index
    %c0_66 = arith.constant 0 : index
    %83 = vector.load %arg10[%c0_65, %c0_66] : memref<16x512xf32, #tpu.memory_space<vmem>>, vector<16x512xf32>
    %c0_67 = arith.constant 0 : index
    %c0_68 = arith.constant 0 : index
    %84 = vector.load %arg11[%c0_67, %c0_68] : memref<16x512xbf16, #tpu.memory_space<vmem>>, vector<16x512xbf16>
    %c0_69 = arith.constant 0 : index
    %c0_70 = arith.constant 0 : index
    %85 = vector.load %arg5[%c0_69, %c0_70] : memref<512x512xbf16, #tpu.memory_space<vmem>>, vector<512x512xbf16>
    %cst_71 = arith.constant dense<0.000000e+00> : vector<16x512xf32>
    %86 = tpu.matmul %84, %85, %cst_71 {dimension_numbers = #tpu.dot_dimension_numbers<[1], [0], [0], [1], [0, 0, 1, 1], [], []>} : vector<16x512xbf16>, vector<512x512xbf16>, vector<16x512xf32> -> vector<16x512xf32>
    %87 = arith.addf %83, %86 : vector<16x512xf32>
    %c0_72 = arith.constant 0 : index
    %c0_73 = arith.constant 0 : index
    %88 = vector.load %arg10[%c0_72, %c0_73] : memref<16x512xf32, #tpu.memory_space<vmem>>, vector<16x512xf32>
    tpu.vector_store %arg10[%c0_72, %c0_73], %87 {strides = array<i32>} : memref<16x512xf32, #tpu.memory_space<vmem>>, vector<16x512xf32>,
    %c1_i32 = arith.constant 1 : i32
    %89 = arith.cmpi eq, %arg1, %c1_i32 : i32
    %90 = arith.extui %89 : i1 to i32
    %c0_i32_74 = arith.constant 0 : i32
    %91 = arith.cmpi ne, %90, %c0_i32_74 : i32
    scf.if %91 {
      %c0_75 = arith.constant 0 : index
      %c0_76 = arith.constant 0 : index
      %92 = vector.load %arg10[%c0_75, %c0_76] : memref<16x512xf32, #tpu.memory_space<vmem>>, vector<16x512xf32>
      %c0_77 = arith.constant 0 : index
      %c0_78 = arith.constant 0 : index
      %93 = vector.load %arg6[%c0_77, %c0_78] : memref<1x512xf32, #tpu.memory_space<vmem>>, vector<1x512xf32>
      %94 = vector.broadcast %93 : vector<1x512xf32> to vector<16x512xf32>
      %95 = arith.addf %92, %94 : vector<16x512xf32>
      %cst_79 = arith.constant 0.000000e+00 : f32
      %96 = vector.broadcast %cst_79 : f32 to vector<16x512xf32>
      %97 = arith.maximumf %95, %96 : vector<16x512xf32>
      %98 = arith.truncf %97 : vector<16x512xf32> to vector<16x512xbf16>
      %c0_80 = arith.constant 0 : index
      %c0_81 = arith.constant 0 : index
      %99 = vector.load %arg7[%c0_80, %c0_81] : memref<512x128xbf16, #tpu.memory_space<vmem>>, vector<512x128xbf16>
      %cst_82 = arith.constant dense<0.000000e+00> : vector<16x128xf32>
      %100 = tpu.matmul %98, %99, %cst_82 {dimension_numbers = #tpu.dot_dimension_numbers<[1], [0], [0], [1], [0, 0, 1, 1], [], []>} : vector<16x512xbf16>, vector<512x128xbf16>, vector<16x128xf32> -> vector<16x128xf32>
      %c0_83 = arith.constant 0 : index
      %c0_84 = arith.constant 0 : index
      %101 = vector.load %arg8[%c0_83, %c0_84] : memref<1x128xf32, #tpu.memory_space<vmem>>, vector<1x128xf32>
      %102 = vector.broadcast %101 : vector<1x128xf32> to vector<16x128xf32>
      %103 = arith.addf %100, %102 : vector<16x128xf32>
      %c0_85 = arith.constant 0 : index
      %c0_86 = arith.constant 0 : index
      %104 = vector.load %arg9[%c0_85, %c0_86] : memref<16x128xf32, #tpu.memory_space<vmem>>, vector<16x128xf32>
      tpu.vector_store %arg9[%c0_85, %c0_86], %103 {strides = array<i32>} : memref<16x128xf32, #tpu.memory_space<vmem>>, vector<16x128xf32>,
    } else {
    }
    return
  }
  func.func @transform_0(%arg0: i32, %arg1: i32) -> (i32, i32) {
    %c0_i32 = arith.constant 0 : i32
    return %arg0, %arg1 : i32, i32
  }
  func.func @transform_1(%arg0: i32, %arg1: i32) -> (i32, i32) {
    %c0_i32 = arith.constant 0 : i32
    %c0_i32_0 = arith.constant 0 : i32
    %c0_i32_1 = arith.constant 0 : i32
    return %c0_i32, %c0_i32_0 : i32, i32
  }
  func.func @transform_2(%arg0: i32, %arg1: i32) -> (i32, i32) {
    %c0_i32 = arith.constant 0 : i32
    %c0_i32_0 = arith.constant 0 : i32
    %c0_i32_1 = arith.constant 0 : i32
    return %c0_i32, %c0_i32_0 : i32, i32
  }
  func.func @transform_3(%arg0: i32, %arg1: i32) -> (i32, i32) {
    %c0_i32 = arith.constant 0 : i32
    %c0_i32_0 = arith.constant 0 : i32
    return %arg1, %c0_i32 : i32, i32
  }
  func.func @transform_4(%arg0: i32, %arg1: i32) -> (i32, i32) {
    %c0_i32 = arith.constant 0 : i32
    %c0_i32_0 = arith.constant 0 : i32
    %c0_i32_1 = arith.constant 0 : i32
    return %c0_i32, %c0_i32_0 : i32, i32
  }
  func.func @transform_5(%arg0: i32, %arg1: i32) -> (i32, i32) {
    %c0_i32 = arith.constant 0 : i32
    %c0_i32_0 = arith.constant 0 : i32
    %c0_i32_1 = arith.constant 0 : i32
    return %c0_i32, %c0_i32_0 : i32, i32
  }
  func.func @transform_6(%arg0: i32, %arg1: i32) -> (i32, i32) {
    %c0_i32 = arith.constant 0 : i32
    %c0_i32_0 = arith.constant 0 : i32
    %c0_i32_1 = arith.constant 0 : i32
    return %c0_i32, %c0_i32_0 : i32, i32
  }
  func.func @transform_7(%arg0: i32, %arg1: i32) -> (i32, i32) {
    %c0_i32 = arith.constant 0 : i32
    %c0_i32_0 = arith.constant 0 : i32
    return %arg0, %c0_i32 : i32, i32
  }
}

</mosaic_0001>

<llo_original>
// kernel: forward.3
$region0: #{forward.3}
  #allocation0 [shape = 'u32[]', space=smem, size = 0x4, offset = 0x4, fixed_abs, tag = 'smem constant byte address 0x4 - core index']
  #allocation1 [shape = 'u32[144,128]{1,0:T(1,128)}', space=vmem, size = 0x12000, scoped, tag = 'internal scratch']
  %s0 = inlined_call_operand.vmem [shape: bf16[288,256], index: 0, kind: input, shape index: {}]
  %s1 = inlined_call_operand.vmem [shape: bf16[256,128], index: 1, kind: input, shape index: {}]
  %s2 = inlined_call_operand.vmem [shape: f32[1,128], index: 2, kind: input, shape index: {}]
  %s3 = inlined_call_operand.vmem [shape: bf16[288,128], index: 3, kind: output, shape index: {}]
  %s4 = sld [smem:[#allocation0]]
  $region22: #{forward.3} parent=0
    _
  %s6 = ssub.s32 1, %s4
  %s7 = scalar_select 0, %s6, %s4
  // Predicated region
  $region2: #{forward.3} parent=0 // pred_check
    _
  $region3: #{forward.3} parent=0 // pred_check_branch
    %9 = sbr.rel (0) target = $region5
  $region4: #{forward.3} parent=0 // pred_region
    _
  $region5: #{forward.3} parent=0 // pred_fallthru
    _
  // Predicated region
  $region6: #{forward.3} parent=0 // pred_check
    _
  $region7: #{forward.3} parent=0 // pred_check_branch
    %11 = sbr.rel (0) target = $region9
  $region8: #{forward.3} parent=0 // pred_region
    _
  $region9: #{forward.3} parent=0 // pred_fallthru
    _
  // Predicated region
  $region10: #{forward.3} parent=0 // pred_check
    _
  $region11: #{forward.3} parent=0 // pred_check_branch
    %13 = sbr.rel (0) target = $region13
  $region12: #{forward.3} parent=0 // pred_region
    _
  $region13: #{forward.3} parent=0 // pred_fallthru
    _
  %v15 = vld [vmem:[%s0] sm:$0xff]
  %v16 = vld [vmem:[%s0 + $0x8] sm:$0xff]
  %v17 = vld [vmem:[%s0 + $0x10] sm:$0xff]
  %v18 = vld [vmem:[%s0 + $0x18] sm:$0xff]
  %v19 = vld [vmem:[%s0 + $0x20] sm:$0xff]
  %v20 = vld [vmem:[%s0 + $0x28] sm:$0xff]
  %v21 = vld [vmem:[%s0 + $0x30] sm:$0xff]
  %v22 = vld [vmem:[%s0 + $0x38] sm:$0xff]
  %v23 = vld [vmem:[%s0 + $0x40] sm:$0xff]
  %v24 = vld [vmem:[%s0 + $0x48] sm:$0xff]
  %v25 = vld [vmem:[%s0 + $0x50] sm:$0xff]
  %v26 = vld [vmem:[%s0 + $0x58] sm:$0xff]
  %v27 = vld [vmem:[%s0 + $0x60] sm:$0xff]
  %v28 = vld [vmem:[%s0 + $0x68] sm:$0xff]
  %v29 = vld [vmem:[%s0 + $0x70] sm:$0xff]
  %v30 = vld [vmem:[%s0 + $0x78] sm:$0xff]
  %v31 = vld [vmem:[%s0 + $0x80] sm:$0xff]
  %v32 = vld [vmem:[%s0 + $0x88] sm:$0xff]
  %v33 = vld [vmem:[%s0 + $0x90] sm:$0xff]
  %v34 = vld [vmem:[%s0 + $0x98] sm:$0xff]
  %v35 = vld [vmem:[%s0 + $0xa0] sm:$0xff]
  %v36 = vld [vmem:[%s0 + $0xa8] sm:$0xff]
  %v37 = vld [vmem:[%s0 + $0xb0] sm:$0xff]
  %v38 = vld [vmem:[%s0 + $0xb8] sm:$0xff]
  %v39 = vld [vmem:[%s0 + $0xc0] sm:$0xff]
  %v40 = vld [vmem:[%s0 + $0xc8] sm:$0xff]
  %v41 = vld [vmem:[%s0 + $0xd0] sm:$0xff]
  %v42 = vld [vmem:[%s0 + $0xd8] sm:$0xff]
  %v43 = vld [vmem:[%s0 + $0xe0] sm:$0xff]
  %v44 = vld [vmem:[%s0 + $0xe8] sm:$0xff]
  %v45 = vld [vmem:[%s0 + $0xf0] sm:$0xff]
  %v46 = vld [vmem:[%s0 + $0xf8] sm:$0xff]
  %v47 = vld [vmem:[%s0 + $0x100] sm:$0xff]
  %v48 = vld [vmem:[%s0 + $0x108] sm:$0xff]
  %v49 = vld [vmem:[%s0 + $0x110] sm:$0xff]
  %v50 = vld [vmem:[%s0 + $0x118] sm:$0xff]
  %v51 = vld [vmem:[%s1] sm:$0xf]
  %v52 = vld [vmem:[%s1 + $0x4] sm:$0xf]
  %v53 = vld [vmem:[%s1 + $0x8] sm:$0xf]
  %v54 = vld [vmem:[%s1 + $0xc] sm:$0xf]
  %v55 = vld [vmem:[%s1 + $0x10] sm:$0xf]
  %v56 = vld [vmem:[%s1 + $0x14] sm:$0xf]
  %v57 = vld [vmem:[%s1 + $0x18] sm:$0xf]
  %v58 = vld [vmem:[%s1 + $0x1c] sm:$0xf]
  %v59 = vld [vmem:[%s1 + $0x20] sm:$0xf]
  %v60 = vld [vmem:[%s1 + $0x24] sm:$0xf]
  %v61 = vld [vmem:[%s1 + $0x28] sm:$0xf]
  %v62 = vld [vmem:[%s1 + $0x2c] sm:$0xf]
  %v63 = vld [vmem:[%s1 + $0x30] sm:$0xf]
  %v64 = vld [vmem:[%s1 + $0x34] sm:$0xf]
  %v65 = vld [vmem:[%s1 + $0x38] sm:$0xf]
  %v66 = vld [vmem:[%s1 + $0x3c] sm:$0xf]
  %v67 = vld [vmem:[%s1 + $0x40] sm:$0xf]
  %v68 = vld [vmem:[%s1 + $0x44] sm:$0xf]
  %v69 = vld [vmem:[%s1 + $0x48] sm:$0xf]
  %v70 = vld [vmem:[%s1 + $0x4c] sm:$0xf]
  %v71 = vld [vmem:[%s1 + $0x50] sm:$0xf]
  %v72 = vld [vmem:[%s1 + $0x54] sm:$0xf]
  %v73 = vld [vmem:[%s1 + $0x58] sm:$0xf]
  %v74 = vld [vmem:[%s1 + $0x5c] sm:$0xf]
  %v75 = vld [vmem:[%s1 + $0x60] sm:$0xf]
  %v76 = vld [vmem:[%s1 + $0x64] sm:$0xf]
  %v77 = vld [vmem:[%s1 + $0x68] sm:$0xf]
  %v78 = vld [vmem:[%s1 + $0x6c] sm:$0xf]
  %v79 = vld [vmem:[%s1 + $0x70] sm:$0xf]
  %v80 = vld [vmem:[%s1 + $0x74] sm:$0xf]
  %v81 = vld [vmem:[%s1 + $0x78] sm:$0xf]
  %v82 = vld [vmem:[%s1 + $0x7c] sm:$0xf]
  %v83 = vld [vmem:[%s2] sm:$0x1]
  %v85 = vlaneseq
  %v86 = vshrl.u32 %v85, 7
  %v87 = vsub.s32 0, %v86
  %v88 = vrot.slane %v83, %v87
  %v126 = vunpack.c.l.b16 %v15
  %v127 = vunpack.c.h.b16 %v15
  %v128 = vunpack.c.l.b16 %v16
  %v129 = vunpack.c.h.b16 %v16
  %v130 = vunpack.c.l.b16 %v17
  %v131 = vunpack.c.h.b16 %v17
  %v132 = vunpack.c.l.b16 %v18
  %v133 = vunpack.c.h.b16 %v18
  %v134 = vunpack.c.l.b16 %v19
  %v135 = vunpack.c.h.b16 %v19
  %v136 = vunpack.c.l.b16 %v20
  %v137 = vunpack.c.h.b16 %v20
  %v138 = vunpack.c.l.b16 %v21
  %v139 = vunpack.c.h.b16 %v21
  %v140 = vunpack.c.l.b16 %v22
  %v141 = vunpack.c.h.b16 %v22
  %v142 = vunpack.c.l.b16 %v23
  %v143 = vunpack.c.h.b16 %v23
  %v144 = vunpack.c.l.b16 %v24
  %v145 = vunpack.c.h.b16 %v24
  %v146 = vunpack.c.l.b16 %v25
  %v147 = vunpack.c.h.b16 %v25
  %v148 = vunpack.c.l.b16 %v26
  %v149 = vunpack.c.h.b16 %v26
  %v150 = vunpack.c.l.b16 %v27
  %v151 = vunpack.c.h.b16 %v27
  %v152 = vunpack.c.l.b16 %v28
  %v153 = vunpack.c.h.b16 %v28
  %v154 = vunpack.c.l.b16 %v29
  %v155 = vunpack.c.h.b16 %v29
  %v156 = vunpack.c.l.b16 %v30
  %v157 = vunpack.c.h.b16 %v30
  %v158 = vunpack.c.l.b16 %v31
  %v159 = vunpack.c.h.b16 %v31
  %v160 = vunpack.c.l.b16 %v32
  %v161 = vunpack.c.h.b16 %v32
  %v162 = vunpack.c.l.b16 %v33
  %v163 = vunpack.c.h.b16 %v33
  %v164 = vunpack.c.l.b16 %v34
  %v165 = vunpack.c.h.b16 %v34
  %v166 = vunpack.c.l.b16 %v35
  %v167 = vunpack.c.h.b16 %v35
  %v168 = vunpack.c.l.b16 %v36
  %v169 = vunpack.c.h.b16 %v36
  %v170 = vunpack.c.l.b16 %v37
  %v171 = vunpack.c.h.b16 %v37
  %v172 = vunpack.c.l.b16 %v38
  %v173 = vunpack.c.h.b16 %v38
  %v174 = vunpack.c.l.b16 %v39
  %v175 = vunpack.c.h.b16 %v39
  %v176 = vunpack.c.l.b16 %v40
  %v177 = vunpack.c.h.b16 %v40
  %v178 = vunpack.c.l.b16 %v41
  %v179 = vunpack.c.h.b16 %v41
  %v180 = vunpack.c.l.b16 %v42
  %v181 = vunpack.c.h.b16 %v42
  %v182 = vunpack.c.l.b16 %v43
  %v183 = vunpack.c.h.b16 %v43
  %v184 = vunpack.c.l.b16 %v44
  %v185 = vunpack.c.h.b16 %v44
  %v186 = vunpack.c.l.b16 %v45
  %v187 = vunpack.c.h.b16 %v45
  %v188 = vunpack.c.l.b16 %v46
  %v189 = vunpack.c.h.b16 %v46
  %v190 = vunpack.c.l.b16 %v47
  %v191 = vunpack.c.h.b16 %v47
  %v192 = vunpack.c.l.b16 %v48
  %v193 = vunpack.c.h.b16 %v48
  %v194 = vunpack.c.l.b16 %v49
  %v195 = vunpack.c.h.b16 %v49
  %v196 = vunpack.c.l.b16 %v50
  %v197 = vunpack.c.h.b16 %v50
  %v198 = vpack.c.b16 %v128, %v126
  %v199 = vpack.c.b16 %v129, %v127
  %v200 = vpack.c.b16 %v132, %v130
  %v201 = vpack.c.b16 %v133, %v131
  %v202 = vpack.c.b16 %v136, %v134
  %v203 = vpack.c.b16 %v137, %v135
  %v204 = vpack.c.b16 %v140, %v138
  %v205 = vpack.c.b16 %v141, %v139
  %v206 = vpack.c.b16 %v144, %v142
  %v207 = vpack.c.b16 %v145, %v143
  %v208 = vpack.c.b16 %v148, %v146
  %v209 = vpack.c.b16 %v149, %v147
  %v210 = vpack.c.b16 %v152, %v150
  %v211 = vpack.c.b16 %v153, %v151
  %v212 = vpack.c.b16 %v156, %v154
  %v213 = vpack.c.b16 %v157, %v155
  %v214 = vpack.c.b16 %v160, %v158
  %v215 = vpack.c.b16 %v161, %v159
  %v216 = vpack.c.b16 %v164, %v162
  %v217 = vpack.c.b16 %v165, %v163
  %v218 = vpack.c.b16 %v168, %v166
  %v219 = vpack.c.b16 %v169, %v167
  %v220 = vpack.c.b16 %v172, %v170
  %v221 = vpack.c.b16 %v173, %v171
  %v222 = vpack.c.b16 %v176, %v174
  %v223 = vpack.c.b16 %v177, %v175
  %v224 = vpack.c.b16 %v180, %v178
  %v225 = vpack.c.b16 %v181, %v179
  %v226 = vpack.c.b16 %v184, %v182
  %v227 = vpack.c.b16 %v185, %v183
  %v228 = vpack.c.b16 %v188, %v186
  %v229 = vpack.c.b16 %v189, %v187
  %v230 = vpack.c.b16 %v192, %v190
  %v231 = vpack.c.b16 %v193, %v191
  %v232 = vpack.c.b16 %v196, %v194
  %v233 = vpack.c.b16 %v197, %v195
  %v302 = vunpack.c.l.b16 %v51
  %v303 = vunpack.c.l.b16 %v52
  %v304 = vunpack.c.l.b16 %v53
  %v305 = vunpack.c.l.b16 %v54
  %v306 = vunpack.c.l.b16 %v55
  %v307 = vunpack.c.l.b16 %v56
  %v308 = vunpack.c.l.b16 %v57
  %v309 = vunpack.c.l.b16 %v58
  %v310 = vunpack.c.l.b16 %v59
  %v311 = vunpack.c.l.b16 %v60
  %v312 = vunpack.c.l.b16 %v61
  %v313 = vunpack.c.l.b16 %v62
  %v314 = vunpack.c.l.b16 %v63
  %v315 = vunpack.c.l.b16 %v64
  %v316 = vunpack.c.l.b16 %v65
  %v317 = vunpack.c.l.b16 %v66
  %v318 = vunpack.c.l.b16 %v67
  %v319 = vunpack.c.l.b16 %v68
  %v320 = vunpack.c.l.b16 %v69
  %v321 = vunpack.c.l.b16 %v70
  %v322 = vunpack.c.l.b16 %v71
  %v323 = vunpack.c.l.b16 %v72
  %v324 = vunpack.c.l.b16 %v73
  %v325 = vunpack.c.l.b16 %v74
  %v326 = vunpack.c.l.b16 %v75
  %v327 = vunpack.c.l.b16 %v76
  %v328 = vunpack.c.l.b16 %v77
  %v329 = vunpack.c.l.b16 %v78
  %v330 = vunpack.c.l.b16 %v79
  %v331 = vunpack.c.l.b16 %v80
  %v332 = vunpack.c.l.b16 %v81
  %v333 = vunpack.c.l.b16 %v82
  %v334 = vpack.c.b16 %v303, %v302
  %v335 = vpack.c.b16 %v305, %v304
  %v336 = vpack.c.b16 %v307, %v306
  %v337 = vpack.c.b16 %v309, %v308
  %v338 = vpack.c.b16 %v311, %v310
  %v339 = vpack.c.b16 %v313, %v312
  %v340 = vpack.c.b16 %v315, %v314
  %v341 = vpack.c.b16 %v317, %v316
  %v342 = vpack.c.b16 %v319, %v318
  %v343 = vpack.c.b16 %v321, %v320
  %v344 = vpack.c.b16 %v323, %v322
  %v345 = vpack.c.b16 %v325, %v324
  %v346 = vpack.c.b16 %v327, %v326
  %v347 = vpack.c.b16 %v329, %v328
  %v348 = vpack.c.b16 %v331, %v330
  %v349 = vpack.c.b16 %v333, %v332
  %366 = vmatprep.subr.bf16.mxu0 0
  %367 = vmatpush1.bf16.msra.mxu0 %v334
  %368 = vmatprep.subr.bf16.mxu0 0
  %369 = vmatpush1.bf16.msra.mxu0 %v335
  %370 = vmatprep.subr.bf16.mxu0 0
  %371 = vmatpush1.bf16.msra.mxu0 %v336
  %372 = vmatprep.subr.bf16.mxu0 0
  %373 = vmatpush1.bf16.msra.mxu0 %v337
  %374 = vmatprep.subr.bf16.mxu0 0
  %375 = vmatpush1.bf16.msra.mxu0 %v338
  %376 = vmatprep.subr.bf16.mxu0 0
  %377 = vmatpush1.bf16.msra.mxu0 %v339
  %378 = vmatprep.subr.bf16.mxu0 0
  %379 = vmatpush1.bf16.msra.mxu0 %v340
  %380 = vmatprep.subr.bf16.mxu0 0
  %381 = vmatpush1.bf16.msra.mxu0 %v341
  %382 = vmatprep.subr.bf16.mxu0 0
  %383 = vmatpush1.bf16.msra.mxu0 %v342
  %384 = vmatprep.subr.bf16.mxu0 0
  %385 = vmatpush1.bf16.msra.mxu0 %v343
  %386 = vmatprep.subr.bf16.mxu0 0
  %387 = vmatpush1.bf16.msra.mxu0 %v344
  %388 = vmatprep.subr.bf16.mxu0 0
  %389 = vmatpush1.bf16.msra.mxu0 %v345
  %390 = vmatprep.subr.bf16.mxu0 0
  %391 = vmatpush1.bf16.msra.mxu0 %v346
  %392 = vmatprep.subr.bf16.mxu0 0
  %393 = vmatpush1.bf16.msra.mxu0 %v347
  %394 = vmatprep.subr.bf16.mxu0 0
  %395 = vmatpush1.bf16.msra.mxu0 %v348
  %396 = vmatprep.subr.bf16.mxu0 0
  %397 = vmatpush1.bf16.msra.mxu0 %v349
  %398 = vmatprep.mubr.bf16.mxu0 %v199
  %399 = vmatmul.mubr.bf16.gmra.mrb[0].mxu0 %v198
  %v400 = vpop.f32.mrb[0].mxu0
  %v401 = vadd.f32 %v88, %v400
  %v402 = vpop.f32.mrb[0].mxu0
  %v403 = vpop.f32.mrb[0].mxu0
  %v404 = vadd.f32 %v88, %v403
  %v405 = vpop.f32.mrb[0].mxu0
  %406 = vmatprep.mubr.bf16.mxu0 %v201
  %407 = vmatmul.mubr.bf16.gmra.mrb[0].mxu0 %v200
  %v408 = vpop.f32.mrb[0].mxu0
  %v409 = vadd.f32 %v88, %v408
  %v410 = vpop.f32.mrb[0].mxu0
  %v411 = vpop.f32.mrb[0].mxu0
  %v412 = vadd.f32 %v88, %v411
  %v413 = vpop.f32.mrb[0].mxu0
  %414 = vmatprep.mubr.bf16.mxu0 %v203
  %415 = vmatmul.mubr.bf16.gmra.mrb[0].mxu0 %v202
  %v416 = vpop.f32.mrb[0].mxu0
  %v417 = vadd.f32 %v88, %v416
  %v418 = vpop.f32.mrb[0].mxu0
  %v419 = vpop.f32.mrb[0].mxu0
  %v420 = vadd.f32 %v88, %v419
  %v421 = vpop.f32.mrb[0].mxu0
  %422 = vmatprep.mubr.bf16.mxu0 %v205
  %423 = vmatmul.mubr.bf16.gmra.mrb[0].mxu0 %v204
  %v424 = vpop.f32.mrb[0].mxu0
  %v425 = vadd.f32 %v88, %v424
  %v426 = vpop.f32.mrb[0].mxu0
  %v427 = vpop.f32.mrb[0].mxu0
  %v428 = vadd.f32 %v88, %v427
  %v429 = vpop.f32.mrb[0].mxu0
  %430 = vmatprep.mubr.bf16.mxu0 %v207
  %431 = vmatmul.mubr.bf16.gmra.mrb[0].mxu0 %v206
  %v432 = vpop.f32.mrb[0].mxu0
  %v433 = vadd.f32 %v88, %v432
  %v434 = vpop.f32.mrb[0].mxu0
  %v435 = vpop.f32.mrb[0].mxu0
  %v436 = vadd.f32 %v88, %v435
  %v437 = vpop.f32.mrb[0].mxu0
  %438 = vmatprep.mubr.bf16.mxu0 %v209
  %439 = vmatmul.mubr.bf16.gmra.mrb[0].mxu0 %v208
  %v440 = vpop.f32.mrb[0].mxu0
  %v441 = vadd.f32 %v88, %v440
  %v442 = vpop.f32.mrb[0].mxu0
  %v443 = vpop.f32.mrb[0].mxu0
  %v444 = vadd.f32 %v88, %v443
  %v445 = vpop.f32.mrb[0].mxu0
  %446 = vmatprep.mubr.bf16.mxu0 %v211
  %447 = vmatmul.mubr.bf16.gmra.mrb[0].mxu0 %v210
  %v448 = vpop.f32.mrb[0].mxu0
  %v449 = vadd.f32 %v88, %v448
  %v450 = vpop.f32.mrb[0].mxu0
  %v451 = vpop.f32.mrb[0].mxu0
  %v452 = vadd.f32 %v88, %v451
  %v453 = vpop.f32.mrb[0].mxu0
  %454 = vmatprep.mubr.bf16.mxu0 %v213
  %455 = vmatmul.mubr.bf16.gmra.mrb[0].mxu0 %v212
  %v456 = vpop.f32.mrb[0].mxu0
  %v457 = vadd.f32 %v88, %v456
  %v458 = vpop.f32.mrb[0].mxu0
  %v459 = vpop.f32.mrb[0].mxu0
  %v460 = vadd.f32 %v88, %v459
  %v461 = vpop.f32.mrb[0].mxu0
  %462 = vmatprep.mubr.bf16.mxu0 %v215
  %463 = vmatmul.mubr.bf16.gmra.mrb[0].mxu0 %v214
  %v464 = vpop.f32.mrb[0].mxu0
  %v465 = vadd.f32 %v88, %v464
  %v466 = vpop.f32.mrb[0].mxu0
  %v467 = vpop.f32.mrb[0].mxu0
  %v468 = vadd.f32 %v88, %v467
  %v469 = vpop.f32.mrb[0].mxu0
  %470 = vmatprep.mubr.bf16.mxu0 %v217
  %471 = vmatmul.mubr.bf16.gmra.mrb[0].mxu0 %v216
  %v472 = vpop.f32.mrb[0].mxu0
  %v473 = vadd.f32 %v88, %v472
  %v474 = vpop.f32.mrb[0].mxu0
  %v475 = vpop.f32.mrb[0].mxu0
  %v476 = vadd.f32 %v88, %v475
  %v477 = vpop.f32.mrb[0].mxu0
  %478 = vmatprep.mubr.bf16.mxu0 %v219
  %479 = vmatmul.mubr.bf16.gmra.mrb[0].mxu0 %v218
  %v480 = vpop.f32.mrb[0].mxu0
  %v481 = vadd.f32 %v88, %v480
  %v482 = vpop.f32.mrb[0].mxu0
  %v483 = vpop.f32.mrb[0].mxu0
  %v484 = vadd.f32 %v88, %v483
  %v485 = vpop.f32.mrb[0].mxu0
  %486 = vmatprep.mubr.bf16.mxu0 %v221
  %487 = vmatmul.mubr.bf16.gmra.mrb[0].mxu0 %v220
  %v488 = vpop.f32.mrb[0].mxu0
  %v489 = vadd.f32 %v88, %v488
  %v490 = vpop.f32.mrb[0].mxu0
  %v491 = vpop.f32.mrb[0].mxu0
  %v492 = vadd.f32 %v88, %v491
  %v493 = vpop.f32.mrb[0].mxu0
  %494 = vmatprep.mubr.bf16.mxu0 %v223
  %495 = vmatmul.mubr.bf16.gmra.mrb[0].mxu0 %v222
  %v496 = vpop.f32.mrb[0].mxu0
  %v497 = vadd.f32 %v88, %v496
  %v498 = vpop.f32.mrb[0].mxu0
  %v499 = vpop.f32.mrb[0].mxu0
  %v500 = vadd.f32 %v88, %v499
  %v501 = vpop.f32.mrb[0].mxu0
  %502 = vmatprep.mubr.bf16.mxu0 %v225
  %503 = vmatmul.mubr.bf16.gmra.mrb[0].mxu0 %v224
  %v504 = vpop.f32.mrb[0].mxu0
  %v505 = vadd.f32 %v88, %v504
  %v506 = vpop.f32.mrb[0].mxu0
  %v507 = vpop.f32.mrb[0].mxu0
  %v508 = vadd.f32 %v88, %v507
  %v509 = vpop.f32.mrb[0].mxu0
  %510 = vmatprep.mubr.bf16.mxu0 %v227
  %511 = vmatmul.mubr.bf16.gmra.mrb[0].mxu0 %v226
  %v512 = vpop.f32.mrb[0].mxu0
  %v513 = vadd.f32 %v88, %v512
  %v514 = vpop.f32.mrb[0].mxu0
  %v515 = vpop.f32.mrb[0].mxu0
  %v516 = vadd.f32 %v88, %v515
  %v517 = vpop.f32.mrb[0].mxu0
  %518 = vmatprep.mubr.bf16.mxu0 %v229
  %519 = vmatmul.mubr.bf16.gmra.mrb[0].mxu0 %v228
  %v520 = vpop.f32.mrb[0].mxu0
  %v521 = vadd.f32 %v88, %v520
  %v522 = vpop.f32.mrb[0].mxu0
  %v523 = vpop.f32.mrb[0].mxu0
  %v524 = vadd.f32 %v88, %v523
  %v525 = vpop.f32.mrb[0].mxu0
  %526 = vmatprep.mubr.bf16.mxu0 %v231
  %527 = vmatmul.mubr.bf16.gmra.mrb[0].mxu0 %v230
  %v528 = vpop.f32.mrb[0].mxu0
  %v529 = vadd.f32 %v88, %v528
  %v530 = vpop.f32.mrb[0].mxu0
  %v531 = vpop.f32.mrb[0].mxu0
  %v532 = vadd.f32 %v88, %v531
  %v533 = vpop.f32.mrb[0].mxu0
  %534 = vmatprep.mubr.bf16.mxu0 %v233
  %535 = vmatmul.mubr.bf16.gmra.mrb[0].mxu0 %v232
  %v536 = vpop.f32.mrb[0].mxu0
  %v537 = vadd.f32 %v88, %v536
  %v538 = vpop.f32.mrb[0].mxu0
  %v539 = vpop.f32.mrb[0].mxu0
  %v540 = vadd.f32 %v88, %v539
  %v541 = vpop.f32.mrb[0].mxu0
  %542 = vdwg.mxu0
  %v543 = vmax.f32 %v401, 0.0
  %v544 = vmax.f32 %v404, 0.0
  %v545 = vmax.f32 %v409, 0.0
  %v546 = vmax.f32 %v412, 0.0
  %v547 = vmax.f32 %v417, 0.0
  %v548 = vmax.f32 %v420, 0.0
  %v549 = vmax.f32 %v425, 0.0
  %v550 = vmax.f32 %v428, 0.0
  %v551 = vmax.f32 %v433, 0.0
  %v552 = vmax.f32 %v436, 0.0
  %v553 = vmax.f32 %v441, 0.0
  %v554 = vmax.f32 %v444, 0.0
  %v555 = vmax.f32 %v449, 0.0
  %v556 = vmax.f32 %v452, 0.0
  %v557 = vmax.f32 %v457, 0.0
  %v558 = vmax.f32 %v460, 0.0
  %v559 = vmax.f32 %v465, 0.0
  %v560 = vmax.f32 %v468, 0.0
  %v561 = vmax.f32 %v473, 0.0
  %v562 = vmax.f32 %v476, 0.0
  %v563 = vmax.f32 %v481, 0.0
  %v564 = vmax.f32 %v484, 0.0
  %v565 = vmax.f32 %v489, 0.0
  %v566 = vmax.f32 %v492, 0.0
  %v567 = vmax.f32 %v497, 0.0
  %v568 = vmax.f32 %v500, 0.0
  %v569 = vmax.f32 %v505, 0.0
  %v570 = vmax.f32 %v508, 0.0
  %v571 = vmax.f32 %v513, 0.0
  %v572 = vmax.f32 %v516, 0.0
  %v573 = vmax.f32 %v521, 0.0
  %v574 = vmax.f32 %v524, 0.0
  %v575 = vmax.f32 %v529, 0.0
  %v576 = vmax.f32 %v532, 0.0
  %v577 = vmax.f32 %v537, 0.0
  %v578 = vmax.f32 %v540, 0.0
  %v579 = vpack.c.bf16 %v544, %v543
  %v580 = vpack.c.bf16 %v546, %v545
  %v581 = vpack.c.bf16 %v548, %v547
  %v582 = vpack.c.bf16 %v550, %v549
  %v583 = vpack.c.bf16 %v552, %v551
  %v584 = vpack.c.bf16 %v554, %v553
  %v585 = vpack.c.bf16 %v556, %v555
  %v586 = vpack.c.bf16 %v558, %v557
  %v587 = vpack.c.bf16 %v560, %v559
  %v588 = vpack.c.bf16 %v562, %v561
  %v589 = vpack.c.bf16 %v564, %v563
  %v590 = vpack.c.bf16 %v566, %v565
  %v591 = vpack.c.bf16 %v568, %v567
  %v592 = vpack.c.bf16 %v570, %v569
  %v593 = vpack.c.bf16 %v572, %v571
  %v594 = vpack.c.bf16 %v574, %v573
  %v595 = vpack.c.bf16 %v576, %v575
  %v596 = vpack.c.bf16 %v578, %v577
  %v615 = vunpack.c.l.b16 %v579
  %v616 = vunpack.c.h.b16 %v579
  %v617 = vunpack.c.l.b16 %v580
  %v618 = vunpack.c.h.b16 %v580
  %v619 = vunpack.c.l.b16 %v581
  %v620 = vunpack.c.h.b16 %v581
  %v621 = vunpack.c.l.b16 %v582
  %v622 = vunpack.c.h.b16 %v582
  %v623 = vunpack.c.l.b16 %v583
  %v624 = vunpack.c.h.b16 %v583
  %v625 = vunpack.c.l.b16 %v584
  %v626 = vunpack.c.h.b16 %v584
  %v627 = vunpack.c.l.b16 %v585
  %v628 = vunpack.c.h.b16 %v585
  %v629 = vunpack.c.l.b16 %v586
  %v630 = vunpack.c.h.b16 %v586
  %v631 = vunpack.c.l.b16 %v587
  %v632 = vunpack.c.h.b16 %v587
  %v633 = vunpack.c.l.b16 %v588
  %v634 = vunpack.c.h.b16 %v588
  %v635 = vunpack.c.l.b16 %v589
  %v636 = vunpack.c.h.b16 %v589
  %v637 = vunpack.c.l.b16 %v590
  %v638 = vunpack.c.h.b16 %v590
  %v639 = vunpack.c.l.b16 %v591
  %v640 = vunpack.c.h.b16 %v591
  %v641 = vunpack.c.l.b16 %v592
  %v642 = vunpack.c.h.b16 %v592
  %v643 = vunpack.c.l.b16 %v593
  %v644 = vunpack.c.h.b16 %v593
  %v645 = vunpack.c.l.b16 %v594
  %v646 = vunpack.c.h.b16 %v594
  %v647 = vunpack.c.l.b16 %v595
  %v648 = vunpack.c.h.b16 %v595
  %v649 = vunpack.c.l.b16 %v596
  %v650 = vunpack.c.h.b16 %v596
  %v651 = vpack.c.b16 %v615, %v615
  %v652 = vpack.c.b16 %v616, %v616
  %v653 = vpack.c.b16 %v617, %v617
  %v654 = vpack.c.b16 %v618, %v618
  %v655 = vpack.c.b16 %v619, %v619
  %v656 = vpack.c.b16 %v620, %v620
  %v657 = vpack.c.b16 %v621, %v621
  %v658 = vpack.c.b16 %v622, %v622
  %v659 = vpack.c.b16 %v623, %v623
  %v660 = vpack.c.b16 %v624, %v624
  %v661 = vpack.c.b16 %v625, %v625
  %v662 = vpack.c.b16 %v626, %v626
  %v663 = vpack.c.b16 %v627, %v627
  %v664 = vpack.c.b16 %v628, %v628
  %v665 = vpack.c.b16 %v629, %v629
  %v666 = vpack.c.b16 %v630, %v630
  %v667 = vpack.c.b16 %v631, %v631
  %v668 = vpack.c.b16 %v632, %v632
  %v669 = vpack.c.b16 %v633, %v633
  %v670 = vpack.c.b16 %v634, %v634
  %v671 = vpack.c.b16 %v635, %v635
  %v672 = vpack.c.b16 %v636, %v636
  %v673 = vpack.c.b16 %v637, %v637
  %v674 = vpack.c.b16 %v638, %v638
  %v675 = vpack.c.b16 %v639, %v639
  %v676 = vpack.c.b16 %v640, %v640
  %v677 = vpack.c.b16 %v641, %v641
  %v678 = vpack.c.b16 %v642, %v642
  %v679 = vpack.c.b16 %v643, %v643
  %v680 = vpack.c.b16 %v644, %v644
  %v681 = vpack.c.b16 %v645, %v645
  %v682 = vpack.c.b16 %v646, %v646
  %v683 = vpack.c.b16 %v647, %v647
  %v684 = vpack.c.b16 %v648, %v648
  %v685 = vpack.c.b16 %v649, %v649
  %v686 = vpack.c.b16 %v650, %v650
  %723 = vst [vmem:[%s3] sm:$0xf] %v651
  %724 = vst [vmem:[%s3 + $0x4] sm:$0xf] %v652
  %725 = vst [vmem:[%s3 + $0x8] sm:$0xf] %v653
  %726 = vst [vmem:[%s3 + $0xc] sm:$0xf] %v654
  %727 = vst [vmem:[%s3 + $0x10] sm:$0xf] %v655
  %728 = vst [vmem:[%s3 + $0x14] sm:$0xf] %v656
  %729 = vst [vmem:[%s3 + $0x18] sm:$0xf] %v657
  %730 = vst [vmem:[%s3 + $0x1c] sm:$0xf] %v658
  %731 = vst [vmem:[%s3 + $0x20] sm:$0xf] %v659
  %732 = vst [vmem:[%s3 + $0x24] sm:$0xf] %v660
  %733 = vst [vmem:[%s3 + $0x28] sm:$0xf] %v661
  %734 = vst [vmem:[%s3 + $0x2c] sm:$0xf] %v662
  %735 = vst [vmem:[%s3 + $0x30] sm:$0xf] %v663
  %736 = vst [vmem:[%s3 + $0x34] sm:$0xf] %v664
  %737 = vst [vmem:[%s3 + $0x38] sm:$0xf] %v665
  %738 = vst [vmem:[%s3 + $0x3c] sm:$0xf] %v666
  %739 = vst [vmem:[%s3 + $0x40] sm:$0xf] %v667
  %740 = vst [vmem:[%s3 + $0x44] sm:$0xf] %v668
  %741 = vst [vmem:[%s3 + $0x48] sm:$0xf] %v669
  %742 = vst [vmem:[%s3 + $0x4c] sm:$0xf] %v670
  %743 = vst [vmem:[%s3 + $0x50] sm:$0xf] %v671
  %744 = vst [vmem:[%s3 + $0x54] sm:$0xf] %v672
  %745 = vst [vmem:[%s3 + $0x58] sm:$0xf] %v673
  %746 = vst [vmem:[%s3 + $0x5c] sm:$0xf] %v674
  %747 = vst [vmem:[%s3 + $0x60] sm:$0xf] %v675
  %748 = vst [vmem:[%s3 + $0x64] sm:$0xf] %v676
  %749 = vst [vmem:[%s3 + $0x68] sm:$0xf] %v677
  %750 = vst [vmem:[%s3 + $0x6c] sm:$0xf] %v678
  %751 = vst [vmem:[%s3 + $0x70] sm:$0xf] %v679
  %752 = vst [vmem:[%s3 + $0x74] sm:$0xf] %v680
  %753 = vst [vmem:[%s3 + $0x78] sm:$0xf] %v681
  %754 = vst [vmem:[%s3 + $0x7c] sm:$0xf] %v682
  %755 = vst [vmem:[%s3 + $0x80] sm:$0xf] %v683
  %756 = vst [vmem:[%s3 + $0x84] sm:$0xf] %v684
  %757 = vst [vmem:[%s3 + $0x88] sm:$0xf] %v685
  %758 = vst [vmem:[%s3 + $0x8c] sm:$0xf] %v686
  // Predicated region
  $region14: #{forward.3} parent=0 // pred_check
    _
  $region15: #{forward.3} parent=0 // pred_check_branch
    %760 = sbr.rel (0) target = $region17
  $region16: #{forward.3} parent=0 // pred_region
    _
  $region17: #{forward.3} parent=0 // pred_fallthru
    _
  // Predicated region
  $region18: #{forward.3} parent=0 // pred_check
    _
  $region19: #{forward.3} parent=0 // pred_check_branch
    %762 = sbr.rel (0) target = $region21
  $region20: #{forward.3} parent=0 // pred_region
    _
  $region21: #{forward.3} parent=0 // pred_fallthru
    _

// kernel: forward.4
$region0: #{forward.4}
  #allocation0 [shape = 'u32[]', space=smem, size = 0x4, offset = 0x4, fixed_abs, tag = 'smem constant byte address 0x4 - core index']
  #allocation1 [shape = 'u32[144,128]{1,0:T(1,128)}', space=vmem, size = 0x12000, scoped, tag = 'internal scratch']
  %s0 = inlined_call_operand.vmem [shape: bf16[64,512], index: 0, kind: input, shape index: {}]
  %s1 = inlined_call_operand.vmem [shape: bf16[512,128], index: 1, kind: input, shape index: {}]
  %s2 = inlined_call_operand.vmem [shape: f32[1,128], index: 2, kind: input, shape index: {}]
  %s3 = inlined_call_operand.vmem [shape: bf16[64,128], index: 3, kind: output, shape index: {}]
  %s4 = sld [smem:[#allocation0]]
  $region22: #{forward.4} parent=0
    _
  %s6 = ssub.s32 1, %s4
  %s7 = scalar_select 0, %s6, %s4
  // Predicated region
  $region2: #{forward.4} parent=0 // pred_check
    _
  $region3: #{forward.4} parent=0 // pred_check_branch
    %9 = sbr.rel (0) target = $region5
  $region4: #{forward.4} parent=0 // pred_region
    _
  $region5: #{forward.4} parent=0 // pred_fallthru
    _
  // Predicated region
  $region6: #{forward.4} parent=0 // pred_check
    _
  $region7: #{forward.4} parent=0 // pred_check_branch
    %11 = sbr.rel (0) target = $region9
  $region8: #{forward.4} parent=0 // pred_region
    _
  $region9: #{forward.4} parent=0 // pred_fallthru
    _
  // Predicated region
  $region10: #{forward.4} parent=0 // pred_check
    _
  $region11: #{forward.4} parent=0 // pred_check_branch
    %13 = sbr.rel (0) target = $region13
  $region12: #{forward.4} parent=0 // pred_region
    _
  $region13: #{forward.4} parent=0 // pred_fallthru
    _
  %v15 = vld [vmem:[%s0] sm:$0xff]
  %v16 = vld [vmem:[%s0 + $0x8] sm:$0xff]
  %v17 = vld [vmem:[%s0 + $0x10] sm:$0xff]
  %v18 = vld [vmem:[%s0 + $0x18] sm:$0xff]
  %v19 = vld [vmem:[%s0 + $0x20] sm:$0xff]
  %v20 = vld [vmem:[%s0 + $0x28] sm:$0xff]
  %v21 = vld [vmem:[%s0 + $0x30] sm:$0xff]
  %v22 = vld [vmem:[%s0 + $0x38] sm:$0xff]
  %v23 = vld [vmem:[%s0 + $0x40] sm:$0xff]
  %v24 = vld [vmem:[%s0 + $0x48] sm:$0xff]
  %v25 = vld [vmem:[%s0 + $0x50] sm:$0xff]
  %v26 = vld [vmem:[%s0 + $0x58] sm:$0xff]
  %v27 = vld [vmem:[%s0 + $0x60] sm:$0xff]
  %v28 = vld [vmem:[%s0 + $0x68] sm:$0xff]
  %v29 = vld [vmem:[%s0 + $0x70] sm:$0xff]
  %v30 = vld [vmem:[%s0 + $0x78] sm:$0xff]
  %v31 = vld [vmem:[%s1] sm:$0xf]
  %v32 = vld [vmem:[%s1 + $0x4] sm:$0xf]
  %v33 = vld [vmem:[%s1 + $0x8] sm:$0xf]
  %v34 = vld [vmem:[%s1 + $0xc] sm:$0xf]
  %v35 = vld [vmem:[%s1 + $0x10] sm:$0xf]
  %v36 = vld [vmem:[%s1 + $0x14] sm:$0xf]
  %v37 = vld [vmem:[%s1 + $0x18] sm:$0xf]
  %v38 = vld [vmem:[%s1 + $0x1c] sm:$0xf]
  %v39 = vld [vmem:[%s1 + $0x20] sm:$0xf]
  %v40 = vld [vmem:[%s1 + $0x24] sm:$0xf]
  %v41 = vld [vmem:[%s1 + $0x28] sm:$0xf]
  %v42 = vld [vmem:[%s1 + $0x2c] sm:$0xf]
  %v43 = vld [vmem:[%s1 + $0x30] sm:$0xf]
  %v44 = vld [vmem:[%s1 + $0x34] sm:$0xf]
  %v45 = vld [vmem:[%s1 + $0x38] sm:$0xf]
  %v46 = vld [vmem:[%s1 + $0x3c] sm:$0xf]
  %v47 = vld [vmem:[%s1 + $0x40] sm:$0xf]
  %v48 = vld [vmem:[%s1 + $0x44] sm:$0xf]
  %v49 = vld [vmem:[%s1 + $0x48] sm:$0xf]
  %v50 = vld [vmem:[%s1 + $0x4c] sm:$0xf]
  %v51 = vld [vmem:[%s1 + $0x50] sm:$0xf]
  %v52 = vld [vmem:[%s1 + $0x54] sm:$0xf]
  %v53 = vld [vmem:[%s1 + $0x58] sm:$0xf]
  %v54 = vld [vmem:[%s1 + $0x5c] sm:$0xf]
  %v55 = vld [vmem:[%s1 + $0x60] sm:$0xf]
  %v56 = vld [vmem:[%s1 + $0x64] sm:$0xf]
  %v57 = vld [vmem:[%s1 + $0x68] sm:$0xf]
  %v58 = vld [vmem:[%s1 + $0x6c] sm:$0xf]
  %v59 = vld [vmem:[%s1 + $0x70] sm:$0xf]
  %v60 = vld [vmem:[%s1 + $0x74] sm:$0xf]
  %v61 = vld [vmem:[%s1 + $0x78] sm:$0xf]
  %v62 = vld [vmem:[%s1 + $0x7c] sm:$0xf]
  %v63 = vld [vmem:[%s1 + $0x80] sm:$0xf]
  %v64 = vld [vmem:[%s1 + $0x84] sm:$0xf]
  %v65 = vld [vmem:[%s1 + $0x88] sm:$0xf]
  %v66 = vld [vmem:[%s1 + $0x8c] sm:$0xf]
  %v67 = vld [vmem:[%s1 + $0x90] sm:$0xf]
  %v68 = vld [vmem:[%s1 + $0x94] sm:$0xf]
  %v69 = vld [vmem:[%s1 + $0x98] sm:$0xf]
  %v70 = vld [vmem:[%s1 + $0x9c] sm:$0xf]
  %v71 = vld [vmem:[%s1 + $0xa0] sm:$0xf]
  %v72 = vld [vmem:[%s1 + $0xa4] sm:$0xf]
  %v73 = vld [vmem:[%s1 + $0xa8] sm:$0xf]
  %v74 = vld [vmem:[%s1 + $0xac] sm:$0xf]
  %v75 = vld [vmem:[%s1 + $0xb0] sm:$0xf]
  %v76 = vld [vmem:[%s1 + $0xb4] sm:$0xf]
  %v77 = vld [vmem:[%s1 + $0xb8] sm:$0xf]
  %v78 = vld [vmem:[%s1 + $0xbc] sm:$0xf]
  %v79 = vld [vmem:[%s1 + $0xc0] sm:$0xf]
  %v80 = vld [vmem:[%s1 + $0xc4] sm:$0xf]
  %v81 = vld [vmem:[%s1 + $0xc8] sm:$0xf]
  %v82 = vld [vmem:[%s1 + $0xcc] sm:$0xf]
  %v83 = vld [vmem:[%s1 + $0xd0] sm:$0xf]
  %v84 = vld [vmem:[%s1 + $0xd4] sm:$0xf]
  %v85 = vld [vmem:[%s1 + $0xd8] sm:$0xf]
  %v86 = vld [vmem:[%s1 + $0xdc] sm:$0xf]
  %v87 = vld [vmem:[%s1 + $0xe0] sm:$0xf]
  %v88 = vld [vmem:[%s1 + $0xe4] sm:$0xf]
  %v89 = vld [vmem:[%s1 + $0xe8] sm:$0xf]
  %v90 = vld [vmem:[%s1 + $0xec] sm:$0xf]
  %v91 = vld [vmem:[%s1 + $0xf0] sm:$0xf]
  %v92 = vld [vmem:[%s1 + $0xf4] sm:$0xf]
  %v93 = vld [vmem:[%s1 + $0xf8] sm:$0xf]
  %v94 = vld [vmem:[%s1 + $0xfc] sm:$0xf]
  %v95 = vld [vmem:[%s2] sm:$0x1]
  %v97 = vlaneseq
  %v98 = vshrl.u32 %v97, 7
  %v99 = vsub.s32 0, %v98
  %v100 = vrot.slane %v95, %v99
  %v118 = vunpack.c.l.b16 %v15
  %v119 = vunpack.c.h.b16 %v15
  %v120 = vunpack.c.l.b16 %v16
  %v121 = vunpack.c.h.b16 %v16
  %v122 = vunpack.c.l.b16 %v17
  %v123 = vunpack.c.h.b16 %v17
  %v124 = vunpack.c.l.b16 %v18
  %v125 = vunpack.c.h.b16 %v18
  %v126 = vunpack.c.l.b16 %v19
  %v127 = vunpack.c.h.b16 %v19
  %v128 = vunpack.c.l.b16 %v20
  %v129 = vunpack.c.h.b16 %v20
  %v130 = vunpack.c.l.b16 %v21
  %v131 = vunpack.c.h.b16 %v21
  %v132 = vunpack.c.l.b16 %v22
  %v133 = vunpack.c.h.b16 %v22
  %v134 = vunpack.c.l.b16 %v23
  %v135 = vunpack.c.h.b16 %v23
  %v136 = vunpack.c.l.b16 %v24
  %v137 = vunpack.c.h.b16 %v24
  %v138 = vunpack.c.l.b16 %v25
  %v139 = vunpack.c.h.b16 %v25
  %v140 = vunpack.c.l.b16 %v26
  %v141 = vunpack.c.h.b16 %v26
  %v142 = vunpack.c.l.b16 %v27
  %v143 = vunpack.c.h.b16 %v27
  %v144 = vunpack.c.l.b16 %v28
  %v145 = vunpack.c.h.b16 %v28
  %v146 = vunpack.c.l.b16 %v29
  %v147 = vunpack.c.h.b16 %v29
  %v148 = vunpack.c.l.b16 %v30
  %v149 = vunpack.c.h.b16 %v30
  %v150 = vpack.c.b16 %v122, %v118
  %v151 = vpack.c.b16 %v123, %v119
  %v152 = vpack.c.b16 %v124, %v120
  %v153 = vpack.c.b16 %v125, %v121
  %v154 = vpack.c.b16 %v130, %v126
  %v155 = vpack.c.b16 %v131, %v127
  %v156 = vpack.c.b16 %v132, %v128
  %v157 = vpack.c.b16 %v133, %v129
  %v158 = vpack.c.b16 %v138, %v134
  %v159 = vpack.c.b16 %v139, %v135
  %v160 = vpack.c.b16 %v140, %v136
  %v161 = vpack.c.b16 %v141, %v137
  %v162 = vpack.c.b16 %v146, %v142
  %v163 = vpack.c.b16 %v147, %v143
  %v164 = vpack.c.b16 %v148, %v144
  %v165 = vpack.c.b16 %v149, %v145
  %v246 = vunpack.c.l.b16 %v31
  %v247 = vunpack.c.l.b16 %v32
  %v248 = vunpack.c.l.b16 %v33
  %v249 = vunpack.c.l.b16 %v34
  %v250 = vunpack.c.l.b16 %v35
  %v251 = vunpack.c.l.b16 %v36
  %v252 = vunpack.c.l.b16 %v37
  %v253 = vunpack.c.l.b16 %v38
  %v254 = vunpack.c.l.b16 %v39
  %v255 = vunpack.c.l.b16 %v40
  %v256 = vunpack.c.l.b16 %v41
  %v257 = vunpack.c.l.b16 %v42
  %v258 = vunpack.c.l.b16 %v43
  %v259 = vunpack.c.l.b16 %v44
  %v260 = vunpack.c.l.b16 %v45
  %v261 = vunpack.c.l.b16 %v46
  %v262 = vunpack.c.l.b16 %v47
  %v263 = vunpack.c.l.b16 %v48
  %v264 = vunpack.c.l.b16 %v49
  %v265 = vunpack.c.l.b16 %v50
  %v266 = vunpack.c.l.b16 %v51
  %v267 = vunpack.c.l.b16 %v52
  %v268 = vunpack.c.l.b16 %v53
  %v269 = vunpack.c.l.b16 %v54
  %v270 = vunpack.c.l.b16 %v55
  %v271 = vunpack.c.l.b16 %v56
  %v272 = vunpack.c.l.b16 %v57
  %v273 = vunpack.c.l.b16 %v58
  %v274 = vunpack.c.l.b16 %v59
  %v275 = vunpack.c.l.b16 %v60
  %v276 = vunpack.c.l.b16 %v61
  %v277 = vunpack.c.l.b16 %v62
  %v278 = vunpack.c.l.b16 %v63
  %v279 = vunpack.c.l.b16 %v64
  %v280 = vunpack.c.l.b16 %v65
  %v281 = vunpack.c.l.b16 %v66
  %v282 = vunpack.c.l.b16 %v67
  %v283 = vunpack.c.l.b16 %v68
  %v284 = vunpack.c.l.b16 %v69
  %v285 = vunpack.c.l.b16 %v70
  %v286 = vunpack.c.l.b16 %v71
  %v287 = vunpack.c.l.b16 %v72
  %v288 = vunpack.c.l.b16 %v73
  %v289 = vunpack.c.l.b16 %v74
  %v290 = vunpack.c.l.b16 %v75
  %v291 = vunpack.c.l.b16 %v76
  %v292 = vunpack.c.l.b16 %v77
  %v293 = vunpack.c.l.b16 %v78
  %v294 = vunpack.c.l.b16 %v79
  %v295 = vunpack.c.l.b16 %v80
  %v296 = vunpack.c.l.b16 %v81
  %v297 = vunpack.c.l.b16 %v82
  %v298 = vunpack.c.l.b16 %v83
  %v299 = vunpack.c.l.b16 %v84
  %v300 = vunpack.c.l.b16 %v85
  %v301 = vunpack.c.l.b16 %v86
  %v302 = vunpack.c.l.b16 %v87
  %v303 = vunpack.c.l.b16 %v88
  %v304 = vunpack.c.l.b16 %v89
  %v305 = vunpack.c.l.b16 %v90
  %v306 = vunpack.c.l.b16 %v91
  %v307 = vunpack.c.l.b16 %v92
  %v308 = vunpack.c.l.b16 %v93
  %v309 = vunpack.c.l.b16 %v94
  %v310 = vpack.c.b16 %v247, %v246
  %v311 = vpack.c.b16 %v249, %v248
  %v312 = vpack.c.b16 %v251, %v250
  %v313 = vpack.c.b16 %v253, %v252
  %v314 = vpack.c.b16 %v255, %v254
  %v315 = vpack.c.b16 %v257, %v256
  %v316 = vpack.c.b16 %v259, %v258
  %v317 = vpack.c.b16 %v261, %v260
  %v318 = vpack.c.b16 %v263, %v262
  %v319 = vpack.c.b16 %v265, %v264
  %v320 = vpack.c.b16 %v267, %v266
  %v321 = vpack.c.b16 %v269, %v268
  %v322 = vpack.c.b16 %v271, %v270
  %v323 = vpack.c.b16 %v273, %v272
  %v324 = vpack.c.b16 %v275, %v274
  %v325 = vpack.c.b16 %v277, %v276
  %v326 = vpack.c.b16 %v279, %v278
  %v327 = vpack.c.b16 %v281, %v280
  %v328 = vpack.c.b16 %v283, %v282
  %v329 = vpack.c.b16 %v285, %v284
  %v330 = vpack.c.b16 %v287, %v286
  %v331 = vpack.c.b16 %v289, %v288
  %v332 = vpack.c.b16 %v291, %v290
  %v333 = vpack.c.b16 %v293, %v292
  %v334 = vpack.c.b16 %v295, %v294
  %v335 = vpack.c.b16 %v297, %v296
  %v336 = vpack.c.b16 %v299, %v298
  %v337 = vpack.c.b16 %v301, %v300
  %v338 = vpack.c.b16 %v303, %v302
  %v339 = vpack.c.b16 %v305, %v304
  %v340 = vpack.c.b16 %v307, %v306
  %v341 = vpack.c.b16 %v309, %v308
  %374 = vmatprep.subr.bf16.mxu0 0
  %375 = vmatpush1.bf16.msra.mxu0 %v310
  %376 = vmatprep.subr.bf16.mxu0 0
  %377 = vmatpush1.bf16.msra.mxu0 %v311
  %378 = vmatprep.subr.bf16.mxu0 0
  %379 = vmatpush1.bf16.msra.mxu0 %v312
  %380 = vmatprep.subr.bf16.mxu0 0
  %381 = vmatpush1.bf16.msra.mxu0 %v313
  %382 = vmatprep.subr.bf16.mxu0 0
  %383 = vmatpush1.bf16.msra.mxu0 %v314
  %384 = vmatprep.subr.bf16.mxu0 0
  %385 = vmatpush1.bf16.msra.mxu0 %v315
  %386 = vmatprep.subr.bf16.mxu0 0
  %387 = vmatpush1.bf16.msra.mxu0 %v316
  %388 = vmatprep.subr.bf16.mxu0 0
  %389 = vmatpush1.bf16.msra.mxu0 %v317
  %390 = vmatprep.subr.bf16.mxu0 0
  %391 = vmatpush1.bf16.msra.mxu0 %v318
  %392 = vmatprep.subr.bf16.mxu0 0
  %393 = vmatpush1.bf16.msra.mxu0 %v319
  %394 = vmatprep.subr.bf16.mxu0 0
  %395 = vmatpush1.bf16.msra.mxu0 %v320
  %396 = vmatprep.subr.bf16.mxu0 0
  %397 = vmatpush1.bf16.msra.mxu0 %v321
  %398 = vmatprep.subr.bf16.mxu0 0
  %399 = vmatpush1.bf16.msra.mxu0 %v322
  %400 = vmatprep.subr.bf16.mxu0 0
  %401 = vmatpush1.bf16.msra.mxu0 %v323
  %402 = vmatprep.subr.bf16.mxu0 0
  %403 = vmatpush1.bf16.msra.mxu0 %v324
  %404 = vmatprep.subr.bf16.mxu0 0
  %405 = vmatpush1.bf16.msra.mxu0 %v325
  %406 = vmatprep.mubr.bf16.mxu0 %v151
  %407 = vmatmul.mubr.bf16.gmra.mrb[0].mxu0 %v150
  %v408 = vpop.f32.mrb[0].mxu0
  %v409 = vadd.f32 %v100, %v408
  %v410 = vpop.f32.mrb[0].mxu0
  %v411 = vpop.f32.mrb[0].mxu0
  %v412 = vadd.f32 %v100, %v411
  %v413 = vpop.f32.mrb[0].mxu0
  %414 = vmatprep.mubr.bf16.mxu0 %v155
  %415 = vmatmul.mubr.bf16.gmra.mrb[0].mxu0 %v154
  %v416 = vpop.f32.mrb[0].mxu0
  %v417 = vadd.f32 %v100, %v416
  %v418 = vpop.f32.mrb[0].mxu0
  %v419 = vpop.f32.mrb[0].mxu0
  %v420 = vadd.f32 %v100, %v419
  %v421 = vpop.f32.mrb[0].mxu0
  %422 = vmatprep.mubr.bf16.mxu0 %v159
  %423 = vmatmul.mubr.bf16.gmra.mrb[0].mxu0 %v158
  %v424 = vpop.f32.mrb[0].mxu0
  %v425 = vadd.f32 %v100, %v424
  %v426 = vpop.f32.mrb[0].mxu0
  %v427 = vpop.f32.mrb[0].mxu0
  %v428 = vadd.f32 %v100, %v427
  %v429 = vpop.f32.mrb[0].mxu0
  %430 = vmatprep.mubr.bf16.mxu0 %v163
  %431 = vmatmul.mubr.bf16.gmra.mrb[0].mxu0 %v162
  %v432 = vpop.f32.mrb[0].mxu0
  %v433 = vadd.f32 %v100, %v432
  %v434 = vpop.f32.mrb[0].mxu0
  %v435 = vpop.f32.mrb[0].mxu0
  %v436 = vadd.f32 %v100, %v435
  %v437 = vpop.f32.mrb[0].mxu0
  %438 = vdwg.mxu0
  %439 = vmatprep.subr.bf16.mxu0 0
  %440 = vmatpush1.bf16.msra.mxu0 %v326
  %441 = vmatprep.subr.bf16.mxu0 0
  %442 = vmatpush1.bf16.msra.mxu0 %v327
  %443 = vmatprep.subr.bf16.mxu0 0
  %444 = vmatpush1.bf16.msra.mxu0 %v328
  %445 = vmatprep.subr.bf16.mxu0 0
  %446 = vmatpush1.bf16.msra.mxu0 %v329
  %447 = vmatprep.subr.bf16.mxu0 0
  %448 = vmatpush1.bf16.msra.mxu0 %v330
  %449 = vmatprep.subr.bf16.mxu0 0
  %450 = vmatpush1.bf16.msra.mxu0 %v331
  %451 = vmatprep.subr.bf16.mxu0 0
  %452 = vmatpush1.bf16.msra.mxu0 %v332
  %453 = vmatprep.subr.bf16.mxu0 0
  %454 = vmatpush1.bf16.msra.mxu0 %v333
  %455 = vmatprep.subr.bf16.mxu0 0
  %456 = vmatpush1.bf16.msra.mxu0 %v334
  %457 = vmatprep.subr.bf16.mxu0 0
  %458 = vmatpush1.bf16.msra.mxu0 %v335
  %459 = vmatprep.subr.bf16.mxu0 0
  %460 = vmatpush1.bf16.msra.mxu0 %v336
  %461 = vmatprep.subr.bf16.mxu0 0
  %462 = vmatpush1.bf16.msra.mxu0 %v337
  %463 = vmatprep.subr.bf16.mxu0 0
  %464 = vmatpush1.bf16.msra.mxu0 %v338
  %465 = vmatprep.subr.bf16.mxu0 0
  %466 = vmatpush1.bf16.msra.mxu0 %v339
  %467 = vmatprep.subr.bf16.mxu0 0
  %468 = vmatpush1.bf16.msra.mxu0 %v340
  %469 = vmatprep.subr.bf16.mxu0 0
  %470 = vmatpush1.bf16.msra.mxu0 %v341
  %471 = vmatprep.mubr.bf16.mxu0 %v153
  %472 = vmatmul.mubr.bf16.gmra.mrb[0].mxu0 %v152
  %v473 = vpop.f32.mrb[0].mxu0
  %v474 = vadd.f32 %v409, %v473
  %v475 = vpop.f32.mrb[0].mxu0
  %v476 = vpop.f32.mrb[0].mxu0
  %v477 = vadd.f32 %v412, %v476
  %v478 = vpop.f32.mrb[0].mxu0
  %479 = vmatprep.mubr.bf16.mxu0 %v157
  %480 = vmatmul.mubr.bf16.gmra.mrb[0].mxu0 %v156
  %v481 = vpop.f32.mrb[0].mxu0
  %v482 = vadd.f32 %v417, %v481
  %v483 = vpop.f32.mrb[0].mxu0
  %v484 = vpop.f32.mrb[0].mxu0
  %v485 = vadd.f32 %v420, %v484
  %v486 = vpop.f32.mrb[0].mxu0
  %487 = vmatprep.mubr.bf16.mxu0 %v161
  %488 = vmatmul.mubr.bf16.gmra.mrb[0].mxu0 %v160
  %v489 = vpop.f32.mrb[0].mxu0
  %v490 = vadd.f32 %v425, %v489
  %v491 = vpop.f32.mrb[0].mxu0
  %v492 = vpop.f32.mrb[0].mxu0
  %v493 = vadd.f32 %v428, %v492
  %v494 = vpop.f32.mrb[0].mxu0
  %495 = vmatprep.mubr.bf16.mxu0 %v165
  %496 = vmatmul.mubr.bf16.gmra.mrb[0].mxu0 %v164
  %v497 = vpop.f32.mrb[0].mxu0
  %v498 = vadd.f32 %v433, %v497
  %v499 = vpop.f32.mrb[0].mxu0
  %v500 = vpop.f32.mrb[0].mxu0
  %v501 = vadd.f32 %v436, %v500
  %v502 = vpop.f32.mrb[0].mxu0
  %503 = vdwg.mxu0
  %v504 = vmax.f32 %v474, 0.0
  %v505 = vmax.f32 %v477, 0.0
  %v506 = vmax.f32 %v482, 0.0
  %v507 = vmax.f32 %v485, 0.0
  %v508 = vmax.f32 %v490, 0.0
  %v509 = vmax.f32 %v493, 0.0
  %v510 = vmax.f32 %v498, 0.0
  %v511 = vmax.f32 %v501, 0.0
  %v512 = vpack.c.bf16 %v505, %v504
  %v513 = vpack.c.bf16 %v507, %v506
  %v514 = vpack.c.bf16 %v509, %v508
  %v515 = vpack.c.bf16 %v511, %v510
  %v520 = vunpack.c.l.b16 %v512
  %v521 = vunpack.c.h.b16 %v512
  %v522 = vunpack.c.l.b16 %v513
  %v523 = vunpack.c.h.b16 %v513
  %v524 = vunpack.c.l.b16 %v514
  %v525 = vunpack.c.h.b16 %v514
  %v526 = vunpack.c.l.b16 %v515
  %v527 = vunpack.c.h.b16 %v515
  %v528 = vpack.c.b16 %v520, %v520
  %v529 = vpack.c.b16 %v521, %v521
  %v530 = vpack.c.b16 %v522, %v522
  %v531 = vpack.c.b16 %v523, %v523
  %v532 = vpack.c.b16 %v524, %v524
  %v533 = vpack.c.b16 %v525, %v525
  %v534 = vpack.c.b16 %v526, %v526
  %v535 = vpack.c.b16 %v527, %v527
  %544 = vst [vmem:[%s3] sm:$0xf] %v528
  %545 = vst [vmem:[%s3 + $0x4] sm:$0xf] %v529
  %546 = vst [vmem:[%s3 + $0x8] sm:$0xf] %v530
  %547 = vst [vmem:[%s3 + $0xc] sm:$0xf] %v531
  %548 = vst [vmem:[%s3 + $0x10] sm:$0xf] %v532
  %549 = vst [vmem:[%s3 + $0x14] sm:$0xf] %v533
  %550 = vst [vmem:[%s3 + $0x18] sm:$0xf] %v534
  %551 = vst [vmem:[%s3 + $0x1c] sm:$0xf] %v535
  // Predicated region
  $region14: #{forward.4} parent=0 // pred_check
    _
  $region15: #{forward.4} parent=0 // pred_check_branch
    %553 = sbr.rel (0) target = $region17
  $region16: #{forward.4} parent=0 // pred_region
    _
  $region17: #{forward.4} parent=0 // pred_fallthru
    _
  // Predicated region
  $region18: #{forward.4} parent=0 // pred_check
    _
  $region19: #{forward.4} parent=0 // pred_check_branch
    %555 = sbr.rel (0) target = $region21
  $region20: #{forward.4} parent=0 // pred_region
    _
  $region21: #{forward.4} parent=0 // pred_fallthru
    _

// kernel: forward.5
$region0: #{forward.5}
  #allocation0 [shape = 'u32[]', space=smem, size = 0x4, offset = 0x4, fixed_abs, tag = 'smem constant byte address 0x4 - core index']
  #allocation1 [shape = 'u32[144,128]{1,0:T(1,128)}', space=vmem, size = 0x12000, scoped, tag = 'internal scratch']
  #allocation2 [shape = 'f32[16,512]{1,0:T(8,128)}', space=vmem, size = 0x8000, scoped, tag = 'scratch operand']
  #allocation3 [shape = 'bf16[16,512]{1,0:T(16,128)(2,1)}', space=vmem, size = 0x4000, scoped, tag = 'scratch operand']
  %s0 = inlined_call_operand.vmem [shape: bf16[16,10240], index: 0, kind: input, shape index: {}]
  %s1 = inlined_call_operand.vmem [shape: bf16[640,64], index: 1, kind: input, shape index: {}]
  %s2 = inlined_call_operand.vmem [shape: f32[1,64], index: 2, kind: input, shape index: {}]
  %s3 = inlined_call_operand.vmem [shape: bf16[1024,512], index: 3, kind: input, shape index: {}]
  %s4 = inlined_call_operand.vmem [shape: f32[1,512], index: 4, kind: input, shape index: {}]
  %s5 = inlined_call_operand.vmem [shape: bf16[512,128], index: 5, kind: input, shape index: {}]
  %s6 = inlined_call_operand.vmem [shape: f32[1,128], index: 6, kind: input, shape index: {}]
  %s7 = inlined_call_operand.vmem [shape: f32[16,128], index: 7, kind: output, shape index: {}]
  %s8 = sld [smem:[#allocation0]]
  $region92: #{forward.5} parent=0
    _
  %s10 = ssub.s32 1, %s8
  %s11 = scalar_select 0, %s10, %s8
  $region1: #{forward.5} parent=0
    #allocation4 [shape = 'u8[327680]{0}', space=vmem, size = 0x50000, scoped, tag = 'input window, operand 0']
    loop: start=0, step=1, limit=4
    $region2: #{forward.5} parent=1 // loop_pre_header
      _
    $region3: #{forward.5} parent=1 // loop_header
      %s13 = sphi 0, %s17
      %p14 = scmp.ge.s32.totalorder %s13, 4
      %s20 = sphi 0, %s32
      %s21 = sphi 0, %s28
      %s22 = sphi 0, %s20
      %s23 = sphi 0, %s21
      %s24 = sphi 0, %s22
      %s25 = sphi 0, %s23
      %s37 = sphi 0, %s39
      %s40 = sphi 0, %s37
      %s41 = sphi 0, %s40
      %s57 = sphi 0, %s41
      %s61 = sphi 0, %s61
      %s63 = sphi 0, %s61
      %s64 = sphi 0, %s63
      %s78 = sphi 0, %s64
      %s82 = sphi 0, %s82
      %s84 = sphi 0, %s82
      %s85 = sphi 0, %s84
      %s99 = sphi 0, %s85
      %s105 = sphi 0, %s107
      %s108 = sphi 0, %s105
      %s109 = sphi 0, %s108
      %s125 = sphi 0, %s109
      %s129 = sphi 0, %s129
      %s131 = sphi 0, %s129
      %s132 = sphi 0, %s131
      %s146 = sphi 0, %s132
      %s150 = sphi 0, %s150
      %s152 = sphi 0, %s150
      %s153 = sphi 0, %s152
      %s167 = sphi 0, %s153
      %s171 = sphi 0, %s171
      %s173 = sphi 0, %s171
      %s174 = sphi 0, %s173
      %s188 = sphi 0, %s174
      %s194 = sphi 0, %s196
      %s197 = sphi 0, %s194
      %s198 = sphi 0, %s197
      %s214 = sphi 0, %s198
    $region4: #{forward.5} parent=1 // loop_header_branch
      %16 = sbr.rel (%p14) target = $region8
    $region5: #{forward.5} parent=1 // loop_body
      %s18 = ssub.s32 %s13, 1
      %s19 = ssub.s32 %s13, 2
      %s26 = sadd.s32 1, %s21
      %p27 = scmp.ge.s32.totalorder %s26, 2
      %s28 = scalar_select %p27, 0, %s26
      %s29 = sadd.s32 1, %s20
      %s30 = scalar_select %p27, %s29, %s20
      %p31 = scmp.ge.s32.totalorder %s30, 1
      %s32 = scalar_select %p31, 0, %s30
      %s33 = ssub.s32 %s20, %s32
      %s34 = ssub.s32 %s21, %s28
      %s35 = sor.u32 %s33, %s34
      %p36 = scmp.eq.s32.totalorder %s35, 0
      %s38 = sadd.s32 %s37, 1
      %s39 = scalar_select %p36, %s37, %s38
      %p42 = pneg %p36
      %p43 = scmp.eq.s32.totalorder %s13, 1
      %p44 = por %p42, %p43
      %p45 = scmp.ne.s32.totalorder %s37, %s40
      %p46 = scmp.eq.s32.totalorder %s13, 0
      %p47 = por %p45, %p46
      %p48 = scmp.ne.s32.totalorder %s37, %s40
      %p49 = scmp.eq.s32.totalorder %s18, 1
      %p50 = por %p48, %p49
      %p51 = scmp.ne.s32.totalorder %s40, %s41
      %p52 = scmp.eq.s32.totalorder %s18, 0
      %p53 = por %p51, %p52
      %p54 = scmp.ne.s32.totalorder %s40, %s41
      %p55 = scmp.eq.s32.totalorder %s19, 1
      %p56 = por %p54, %p55
      %p58 = scmp.ne.s32.totalorder %s41, %s57
      %p59 = scmp.eq.s32.totalorder %s19, 0
      %p60 = por %p58, %p59
      %s62 = sadd.s32 %s61, 1
      %p65 = scmp.eq.s32.totalorder %s13, 1
      %p66 = scmp.ne.s32.totalorder %s61, %s63
      %p67 = scmp.eq.s32.totalorder %s13, 0
      %p68 = por %p66, %p67
      %p69 = scmp.ne.s32.totalorder %s61, %s63
      %p70 = scmp.eq.s32.totalorder %s18, 1
      %p71 = por %p69, %p70
      %p72 = scmp.ne.s32.totalorder %s63, %s64
      %p73 = scmp.eq.s32.totalorder %s18, 0
      %p74 = por %p72, %p73
      %p75 = scmp.ne.s32.totalorder %s63, %s64
      %p76 = scmp.eq.s32.totalorder %s19, 1
      %p77 = por %p75, %p76
      %p79 = scmp.ne.s32.totalorder %s64, %s78
      %p80 = scmp.eq.s32.totalorder %s19, 0
      %p81 = por %p79, %p80
      %s83 = sadd.s32 %s82, 1
      %p86 = scmp.eq.s32.totalorder %s13, 1
      %p87 = scmp.ne.s32.totalorder %s82, %s84
      %p88 = scmp.eq.s32.totalorder %s13, 0
      %p89 = por %p87, %p88
      %p90 = scmp.ne.s32.totalorder %s82, %s84
      %p91 = scmp.eq.s32.totalorder %s18, 1
      %p92 = por %p90, %p91
      %p93 = scmp.ne.s32.totalorder %s84, %s85
      %p94 = scmp.eq.s32.totalorder %s18, 0
      %p95 = por %p93, %p94
      %p96 = scmp.ne.s32.totalorder %s84, %s85
      %p97 = scmp.eq.s32.totalorder %s19, 1
      %p98 = por %p96, %p97
      %p100 = scmp.ne.s32.totalorder %s85, %s99
      %p101 = scmp.eq.s32.totalorder %s19, 0
      %p102 = por %p100, %p101
      %s103 = ssub.s32 %s21, %s28
      %p104 = scmp.eq.s32.totalorder %s103, 0
      %s106 = sadd.s32 %s105, 1
      %s107 = scalar_select %p104, %s105, %s106
      %p110 = pneg %p104
      %p111 = scmp.eq.s32.totalorder %s13, 1
      %p112 = por %p110, %p111
      %p113 = scmp.ne.s32.totalorder %s105, %s108
      %p114 = scmp.eq.s32.totalorder %s13, 0
      %p115 = por %p113, %p114
      %p116 = scmp.ne.s32.totalorder %s105, %s108
      %p117 = scmp.eq.s32.totalorder %s18, 1
      %p118 = por %p116, %p117
      %p119 = scmp.ne.s32.totalorder %s108, %s109
      %p120 = scmp.eq.s32.totalorder %s18, 0
      %p121 = por %p119, %p120
      %p122 = scmp.ne.s32.totalorder %s108, %s109
      %p123 = scmp.eq.s32.totalorder %s19, 1
      %p124 = por %p122, %p123
      %p126 = scmp.ne.s32.totalorder %s109, %s125
      %p127 = scmp.eq.s32.totalorder %s19, 0
      %p128 = por %p126, %p127
      %s130 = sadd.s32 %s129, 1
      %p133 = scmp.eq.s32.totalorder %s13, 1
      %p134 = scmp.ne.s32.totalorder %s129, %s131
      %p135 = scmp.eq.s32.totalorder %s13, 0
      %p136 = por %p134, %p135
      %p137 = scmp.ne.s32.totalorder %s129, %s131
      %p138 = scmp.eq.s32.totalorder %s18, 1
      %p139 = por %p137, %p138
      %p140 = scmp.ne.s32.totalorder %s131, %s132
      %p141 = scmp.eq.s32.totalorder %s18, 0
      %p142 = por %p140, %p141
      %p143 = scmp.ne.s32.totalorder %s131, %s132
      %p144 = scmp.eq.s32.totalorder %s19, 1
      %p145 = por %p143, %p144
      %p147 = scmp.ne.s32.totalorder %s132, %s146
      %p148 = scmp.eq.s32.totalorder %s19, 0
      %p149 = por %p147, %p148
      %s151 = sadd.s32 %s150, 1
      %p154 = scmp.eq.s32.totalorder %s13, 1
      %p155 = scmp.ne.s32.totalorder %s150, %s152
      %p156 = scmp.eq.s32.totalorder %s13, 0
      %p157 = por %p155, %p156
      %p158 = scmp.ne.s32.totalorder %s150, %s152
      %p159 = scmp.eq.s32.totalorder %s18, 1
      %p160 = por %p158, %p159
      %p161 = scmp.ne.s32.totalorder %s152, %s153
      %p162 = scmp.eq.s32.totalorder %s18, 0
      %p163 = por %p161, %p162
      %p164 = scmp.ne.s32.totalorder %s152, %s153
      %p165 = scmp.eq.s32.totalorder %s19, 1
      %p166 = por %p164, %p165
      %p168 = scmp.ne.s32.totalorder %s153, %s167
      %p169 = scmp.eq.s32.totalorder %s19, 0
      %p170 = por %p168, %p169
      %s172 = sadd.s32 %s171, 1
      %p175 = scmp.eq.s32.totalorder %s13, 1
      %p176 = scmp.ne.s32.totalorder %s171, %s173
      %p177 = scmp.eq.s32.totalorder %s13, 0
      %p178 = por %p176, %p177
      %p179 = scmp.ne.s32.totalorder %s171, %s173
      %p180 = scmp.eq.s32.totalorder %s18, 1
      %p181 = por %p179, %p180
      %p182 = scmp.ne.s32.totalorder %s173, %s174
      %p183 = scmp.eq.s32.totalorder %s18, 0
      %p184 = por %p182, %p183
      %p185 = scmp.ne.s32.totalorder %s173, %s174
      %p186 = scmp.eq.s32.totalorder %s19, 1
      %p187 = por %p185, %p186
      %p189 = scmp.ne.s32.totalorder %s174, %s188
      %p190 = scmp.eq.s32.totalorder %s19, 0
      %p191 = por %p189, %p190
      %s192 = ssub.s32 %s20, %s32
      %p193 = scmp.eq.s32.totalorder %s192, 0
      %s195 = sadd.s32 %s194, 1
      %s196 = scalar_select %p193, %s194, %s195
      %p199 = pneg %p193
      %p200 = scmp.eq.s32.totalorder %s13, 1
      %p201 = por %p199, %p200
      %p202 = scmp.ne.s32.totalorder %s194, %s197
      %p203 = scmp.eq.s32.totalorder %s13, 0
      %p204 = por %p202, %p203
      %p205 = scmp.ne.s32.totalorder %s194, %s197
      %p206 = scmp.eq.s32.totalorder %s18, 1
      %p207 = por %p205, %p206
      %p208 = scmp.ne.s32.totalorder %s197, %s198
      %p209 = scmp.eq.s32.totalorder %s18, 0
      %p210 = por %p208, %p209
      %p211 = scmp.ne.s32.totalorder %s197, %s198
      %p212 = scmp.eq.s32.totalorder %s19, 1
      %p213 = por %p211, %p212
      %p215 = scmp.ne.s32.totalorder %s198, %s214
      %p216 = scmp.eq.s32.totalorder %s19, 0
      %p217 = por %p215, %p216
      %p218 = scmp.le.s32.totalorder 1, %s13
      %p219 = scmp.lt.s32.totalorder %s13, 3
      %p220 = pnand %p218, %p219
      %p221 = pneg %p220
      // Predicated region
      $region9: #{forward.5} parent=5 // pred_check
        _
      $region10: #{forward.5} parent=5 // pred_check_branch
        %223 = sbr.rel (%p220) target = $region12
      $region11: #{forward.5} parent=5 // pred_region
        %s224 = ssub.s32 %s13, 1
        // Predicated region
        $region13: #{forward.5} parent=11 // pred_check
          %p225 = pneg %p74
        $region14: #{forward.5} parent=11 // pred_check_branch
          %227 = sbr.rel (%p225) target = $region16
        $region15: #{forward.5} parent=11 // pred_region
          _
        $region16: #{forward.5} parent=11 // pred_fallthru
          _
        // Predicated region
        $region17: #{forward.5} parent=11 // pred_check
          %p228 = pneg %p95
        $region18: #{forward.5} parent=11 // pred_check_branch
          %230 = sbr.rel (%p228) target = $region20
        $region19: #{forward.5} parent=11 // pred_region
          _
        $region20: #{forward.5} parent=11 // pred_fallthru
          _
        // Predicated region
        $region21: #{forward.5} parent=11 // pred_check
          %p231 = pneg %p142
        $region22: #{forward.5} parent=11 // pred_check_branch
          %233 = sbr.rel (%p231) target = $region24
        $region23: #{forward.5} parent=11 // pred_region
          _
        $region24: #{forward.5} parent=11 // pred_fallthru
          _
        // Predicated region
        $region25: #{forward.5} parent=11 // pred_check
          %p234 = pneg %p163
        $region26: #{forward.5} parent=11 // pred_check_branch
          %236 = sbr.rel (%p234) target = $region28
        $region27: #{forward.5} parent=11 // pred_region
          _
        $region28: #{forward.5} parent=11 // pred_fallthru
          _
        // Predicated region
        $region29: #{forward.5} parent=11 // pred_check
          %p237 = pneg %p184
        $region30: #{forward.5} parent=11 // pred_check_branch
          %239 = sbr.rel (%p237) target = $region32
        $region31: #{forward.5} parent=11 // pred_region
          _
        $region32: #{forward.5} parent=11 // pred_fallthru
          _
      $region12: #{forward.5} parent=5 // pred_fallthru
        _
      %p240 = scmp.lt.s32.totalorder %s13, 2
      // Predicated region
      $region33: #{forward.5} parent=5 // pred_check
        %p241 = pneg %p240
      $region34: #{forward.5} parent=5 // pred_check_branch
        %243 = sbr.rel (%p241) target = $region36
      $region35: #{forward.5} parent=5 // pred_region
        // Predicated region
        $region37: #{forward.5} parent=35 // pred_check
          %p244 = pneg %p47
        $region38: #{forward.5} parent=35 // pred_check_branch
          %246 = sbr.rel (%p244) target = $region40
        $region39: #{forward.5} parent=35 // pred_region
          %s247 = sand.u32 %s37, 1
          %s248 = sand.u32 %s37, 1
          %s249 = smul.addr %s248, 320
          %s250 = scalar_lea.vmem [#allocation4], %s249
          %s251 = smul.u32 2, %s20
          %s252 = smul.u32 40, %s21
          %s253 = smul.addr %s251, 80
          %s254 = sadd.s32 %s252, %s253
          %s255 = smul.addr %s254, 4
          %s256 = scalar_lea.vmem %s0, %s255
          // Predicated region
          $region41: #{forward.5} parent=39 // pred_check
            _
          $region42: #{forward.5} parent=39 // pred_check_branch
            %258 = sbr.rel (0) target = $region44
          $region43: #{forward.5} parent=39 // pred_region
            // Predicated region
            $region45: #{forward.5} parent=43 // pred_check
              _
            $region46: #{forward.5} parent=43 // pred_check_branch
              %260 = sbr.rel (0) target = $region48
            $region47: #{forward.5} parent=43 // pred_region
              loop: start=0, step=1, limit=1
              $region49: #{forward.5} parent=47 // loop_pre_header
                _
              $region50: #{forward.5} parent=47 // loop_header
                %s262 = sphi 0, %s266
                %p263 = scmp.ge.s32.totalorder %s262, 1
                %s267 = sphi %s256, %s256
                %s268 = sphi %s250, %s250
              $region51: #{forward.5} parent=47 // loop_header_branch
                %265 = sbr.rel (%p263) target = $region55
              $region52: #{forward.5} parent=47 // loop_body
                %v269 = vld [vmem:[%s267] sm:$0xff]
                %270 = vst [vmem:[%s268] sm:$0xff] %v269
                %v271 = vld [vmem:[%s267 + $0x8] sm:$0xff]
                %272 = vst [vmem:[%s268 + $0x8] sm:$0xff] %v271
                %v273 = vld [vmem:[%s267 + $0x10] sm:$0xff]
                %274 = vst [vmem:[%s268 + $0x10] sm:$0xff] %v273
                %v275 = vld [vmem:[%s267 + $0x18] sm:$0xff]
                %276 = vst [vmem:[%s268 + $0x18] sm:$0xff] %v275
                %v277 = vld [vmem:[%s267 + $0x20] sm:$0xff]
                %278 = vst [vmem:[%s268 + $0x20] sm:$0xff] %v277
                %v279 = vld [vmem:[%s267 + $0x28] sm:$0xff]
                %280 = vst [vmem:[%s268 + $0x28] sm:$0xff] %v279
                %v281 = vld [vmem:[%s267 + $0x30] sm:$0xff]
                %282 = vst [vmem:[%s268 + $0x30] sm:$0xff] %v281
                %v283 = vld [vmem:[%s267 + $0x38] sm:$0xff]
                %284 = vst [vmem:[%s268 + $0x38] sm:$0xff] %v283
                %v285 = vld [vmem:[%s267 + $0x40] sm:$0xff]
                %286 = vst [vmem:[%s268 + $0x40] sm:$0xff] %v285
                %v287 = vld [vmem:[%s267 + $0x48] sm:$0xff]
                %288 = vst [vmem:[%s268 + $0x48] sm:$0xff] %v287
                %v289 = vld [vmem:[%s267 + $0x50] sm:$0xff]
                %290 = vst [vmem:[%s268 + $0x50] sm:$0xff] %v289
                %v291 = vld [vmem:[%s267 + $0x58] sm:$0xff]
                %292 = vst [vmem:[%s268 + $0x58] sm:$0xff] %v291
                %v293 = vld [vmem:[%s267 + $0x60] sm:$0xff]
                %294 = vst [vmem:[%s268 + $0x60] sm:$0xff] %v293
                %v295 = vld [vmem:[%s267 + $0x68] sm:$0xff]
                %296 = vst [vmem:[%s268 + $0x68] sm:$0xff] %v295
                %v297 = vld [vmem:[%s267 + $0x70] sm:$0xff]
                %298 = vst [vmem:[%s268 + $0x70] sm:$0xff] %v297
                %v299 = vld [vmem:[%s267 + $0x78] sm:$0xff]
                %300 = vst [vmem:[%s268 + $0x78] sm:$0xff] %v299
                %v301 = vld [vmem:[%s267 + $0x80] sm:$0xff]
                %302 = vst [vmem:[%s268 + $0x80] sm:$0xff] %v301
                %v303 = vld [vmem:[%s267 + $0x88] sm:$0xff]
                %304 = vst [vmem:[%s268 + $0x88] sm:$0xff] %v303
                %v305 = vld [vmem:[%s267 + $0x90] sm:$0xff]
                %306 = vst [vmem:[%s268 + $0x90] sm:$0xff] %v305
                %v307 = vld [vmem:[%s267 + $0x98] sm:$0xff]
                %308 = vst [vmem:[%s268 + $0x98] sm:$0xff] %v307
                %v309 = vld [vmem:[%s267 + $0x140] sm:$0xff]
                %310 = vst [vmem:[%s268 + $0xa0] sm:$0xff] %v309
                %v311 = vld [vmem:[%s267 + $0x148] sm:$0xff]
                %312 = vst [vmem:[%s268 + $0xa8] sm:$0xff] %v311
                %v313 = vld [vmem:[%s267 + $0x150] sm:$0xff]
                %314 = vst [vmem:[%s268 + $0xb0] sm:$0xff] %v313
                %v315 = vld [vmem:[%s267 + $0x158] sm:$0xff]
                %316 = vst [vmem:[%s268 + $0xb8] sm:$0xff] %v315
                %v317 = vld [vmem:[%s267 + $0x160] sm:$0xff]
                %318 = vst [vmem:[%s268 + $0xc0] sm:$0xff] %v317
                %v319 = vld [vmem:[%s267 + $0x168] sm:$0xff]
                %320 = vst [vmem:[%s268 + $0xc8] sm:$0xff] %v319
                %v321 = vld [vmem:[%s267 + $0x170] sm:$0xff]
                %322 = vst [vmem:[%s268 + $0xd0] sm:$0xff] %v321
                %v323 = vld [vmem:[%s267 + $0x178] sm:$0xff]
                %324 = vst [vmem:[%s268 + $0xd8] sm:$0xff] %v323
                %v325 = vld [vmem:[%s267 + $0x180] sm:$0xff]
                %326 = vst [vmem:[%s268 + $0xe0] sm:$0xff] %v325
                %v327 = vld [vmem:[%s267 + $0x188] sm:$0xff]
                %328 = vst [vmem:[%s268 + $0xe8] sm:$0xff] %v327
                %v329 = vld [vmem:[%s267 + $0x190] sm:$0xff]
                %330 = vst [vmem:[%s268 + $0xf0] sm:$0xff] %v329
                %v331 = vld [vmem:[%s267 + $0x198] sm:$0xff]
                %332 = vst [vmem:[%s268 + $0xf8] sm:$0xff] %v331
                %v333 = vld [vmem:[%s267 + $0x1a0] sm:$0xff]
                %334 = vst [vmem:[%s268 + $0x100] sm:$0xff] %v333
                %v335 = vld [vmem:[%s267 + $0x1a8] sm:$0xff]
                %336 = vst [vmem:[%s268 + $0x108] sm:$0xff] %v335
                %v337 = vld [vmem:[%s267 + $0x1b0] sm:$0xff]
                %338 = vst [vmem:[%s268 + $0x110] sm:$0xff] %v337
                %v339 = vld [vmem:[%s267 + $0x1b8] sm:$0xff]
                %340 = vst [vmem:[%s268 + $0x118] sm:$0xff] %v339
                %v341 = vld [vmem:[%s267 + $0x1c0] sm:$0xff]
                %342 = vst [vmem:[%s268 + $0x120] sm:$0xff] %v341
                %v343 = vld [vmem:[%s267 + $0x1c8] sm:$0xff]
                %344 = vst [vmem:[%s268 + $0x128] sm:$0xff] %v343
                %v345 = vld [vmem:[%s267 + $0x1d0] sm:$0xff]
                %346 = vst [vmem:[%s268 + $0x130] sm:$0xff] %v345
                %v347 = vld [vmem:[%s267 + $0x1d8] sm:$0xff]
                %348 = vst [vmem:[%s268 + $0x138] sm:$0xff] %v347
              $region53: #{forward.5} parent=47 // loop_footer
                %s266 = sadd.s32 1, %s262
              $region54: #{forward.5} parent=47 // loop_footer_branch
                %261 = sbr.rel target = $region50
              $region55: #{forward.5} parent=47 // loop_exit
                _
            $region48: #{forward.5} parent=43 // pred_fallthru
              _
            // Predicated region
            $region56: #{forward.5} parent=43 // pred_check
              _
            $region57: #{forward.5} parent=43 // pred_check_branch
              %350 = sbr.rel target = $region59
            $region58: #{forward.5} parent=43 // pred_region
              _
            $region59: #{forward.5} parent=43 // pred_fallthru
              _
          $region44: #{forward.5} parent=39 // pred_fallthru
            _
          %351 = vnop
        $region40: #{forward.5} parent=35 // pred_fallthru
          _
        // Predicated region
        $region60: #{forward.5} parent=35 // pred_check
          %p352 = pneg %p115
        $region61: #{forward.5} parent=35 // pred_check_branch
          %354 = sbr.rel (%p352) target = $region63
        $region62: #{forward.5} parent=35 // pred_region
          %s355 = smul.u32 64, %s21
          %p356 = scmp.lt.s32.totalorder %s355, 127
          %s357 = scalar_select %p356, %s355, 127
          %s358 = smul.addr %s357, 4
          %s359 = smul.addr %s358, 4
          %s360 = scalar_lea.vmem %s3, %s359
          %s361 = smul.u32 64, %s21
        $region63: #{forward.5} parent=35 // pred_fallthru
          _
      $region36: #{forward.5} parent=5 // pred_fallthru
        _
      %p362 = scmp.le.s32.totalorder 1, %s13
      %p363 = scmp.lt.s32.totalorder %s13, 3
      %p364 = pnand %p362, %p363
      %p365 = pneg %p364
      // Predicated region
      $region64: #{forward.5} parent=5 // pred_check
        _
      $region65: #{forward.5} parent=5 // pred_check_branch
        %367 = sbr.rel (%p364) target = $region67
      $region66: #{forward.5} parent=5 // pred_region
        %s368 = ssub.s32 %s13, 1
        %s369 = sand.u32 %s40, 1
        %s370 = sand.u32 %s40, 1
        %s371 = smul.addr %s370, 320
        %s372 = scalar_lea.vmem [#allocation4], %s371
        // Predicated region
        $region68: #{forward.5} parent=66 // pred_check
          %p373 = pneg %p53
        $region69: #{forward.5} parent=66 // pred_check_branch
          %375 = sbr.rel (%p373) target = $region71
        $region70: #{forward.5} parent=66 // pred_region
          _
        $region71: #{forward.5} parent=66 // pred_fallthru
          _
        %s376 = sand.u32 %s40, 1
        %s377 = sand.u32 %s40, 1
        %s378 = smul.addr %s377, 320
        %s379 = scalar_lea.vmem [#allocation4], %s378
        %p380 = pneg %p53
        %p381 = pneg %p50
        %p382 = pneg %p74
        %p383 = pneg %p71
        %p384 = pneg %p95
        %p385 = pneg %p92
        %s386 = smul.u32 64, %s23
        %p387 = scmp.lt.s32.totalorder %s386, 127
        %s388 = scalar_select %p387, %s386, 127
        %s389 = smul.addr %s388, 4
        %s390 = smul.addr %s389, 4
        %s391 = scalar_lea.vmem %s3, %s390
        %p392 = pneg %p121
        %p393 = pneg %p118
        %p394 = pneg %p142
        %p395 = pneg %p139
        %p396 = pneg %p163
        %p397 = pneg %p160
        %p398 = pneg %p184
        %p399 = pneg %p181
        %p400 = pneg %p210
        %p401 = pneg %p207
        %s402 = smul.u32 2, %s22
        %p403 = scmp.lt.s32.totalorder %s402, 1
        %s404 = scalar_select %p403, %s402, 1
        %s405 = smul.addr %s404, 8
        %s406 = scalar_lea.vmem %s7, %s405
        %s407 = smul.u32 2, %s22
        %s408 = smul.u32 40, %s23
        %s409 = smul.u32 64, %s23
        %p410 = scmp.lt.s32.totalorder %s409, 127
        %s411 = scalar_select %p410, %s409, 127
        %s412 = smul.addr %s411, 4
        %s413 = smul.addr %s412, 4
        %s414 = scalar_lea.vmem %s3, %s413
        %s415 = smul.u32 64, %s23
        %s416 = smul.u32 2, %s22
        %p417 = scmp.lt.s32.totalorder %s416, 1
        %s418 = scalar_select %p417, %s416, 1
        %s419 = smul.addr %s418, 8
        %s420 = scalar_lea.vmem %s7, %s419
        %s421 = smul.u32 2, %s22
        %p423 = scmp.eq.s32.totalorder %s23, 0
        // Predicated region
        $region72: #{forward.5} parent=66 // pred_check
          %p424 = pneg %p423
        $region73: #{forward.5} parent=66 // pred_check_branch
          %426 = sbr.rel (%p424) target = $region75
        $region74: #{forward.5} parent=66 // pred_region
          %427 = vst [vmem:[#allocation2] sm:$0xff] 0.0
          %428 = vst [vmem:[#allocation2 + $0x8] sm:$0xff] 0.0
          %429 = vst [vmem:[#allocation2 + $0x10] sm:$0xff] 0.0
          %430 = vst [vmem:[#allocation2 + $0x18] sm:$0xff] 0.0
          %431 = vst [vmem:[#allocation2 + $0x20] sm:$0xff] 0.0
          %432 = vst [vmem:[#allocation2 + $0x28] sm:$0xff] 0.0
          %433 = vst [vmem:[#allocation2 + $0x30] sm:$0xff] 0.0
          %434 = vst [vmem:[#allocation2 + $0x38] sm:$0xff] 0.0
        $region75: #{forward.5} parent=66 // pred_fallthru
          _
        %v435 = vld [vmem:[%s372] sm:$0xff]
        %v436 = vld [vmem:[%s372 + $0x8] sm:$0xff]
        %v437 = vld [vmem:[%s372 + $0x10] sm:$0xf]
        %v438 = vld [vmem:[%s372 + $0xa0] sm:$0xff]
        %v439 = vld [vmem:[%s372 + $0xa8] sm:$0xff]
        %v440 = vld [vmem:[%s372 + $0xb0] sm:$0xf]
        %v441 = vld [vmem:[%s1] sm:$0xf]
        %v442 = vld [vmem:[%s1 + $0x4] sm:$0xf]
        %v443 = vld [vmem:[%s1 + $0x8] sm:$0xf]
        %v444 = vld [vmem:[%s1 + $0xc] sm:$0xf]
        %v445 = vld [vmem:[%s1 + $0x10] sm:$0xf]
        %v446 = vld [vmem:[%s1 + $0x14] sm:$0xf]
        %v447 = vld [vmem:[%s1 + $0x18] sm:$0xf]
        %v448 = vld [vmem:[%s1 + $0x1c] sm:$0xf]
        %v449 = vld [vmem:[%s1 + $0x20] sm:$0xf]
        %v450 = vld [vmem:[%s1 + $0x24] sm:$0xf]
        %v451 = vld [vmem:[%s1 + $0x28] sm:$0xf]
        %v452 = vld [vmem:[%s1 + $0x2c] sm:$0xf]
        %v453 = vld [vmem:[%s1 + $0x30] sm:$0xf]
        %v454 = vld [vmem:[%s1 + $0x34] sm:$0xf]
        %v455 = vld [vmem:[%s1 + $0x38] sm:$0xf]
        %v456 = vld [vmem:[%s1 + $0x3c] sm:$0xf]
        %v457 = vld [vmem:[%s1 + $0x40] sm:$0xf]
        %v458 = vld [vmem:[%s1 + $0x44] sm:$0xf]
        %v459 = vld [vmem:[%s1 + $0x48] sm:$0xf]
        %v460 = vld [vmem:[%s1 + $0x4c] sm:$0xf]
        %v461 = vld [vmem:[%s1 + $0x50] sm:$0xf]
        %v462 = vld [vmem:[%s1 + $0x54] sm:$0xf]
        %v463 = vld [vmem:[%s1 + $0x58] sm:$0xf]
        %v464 = vld [vmem:[%s1 + $0x5c] sm:$0xf]
        %v465 = vld [vmem:[%s1 + $0x60] sm:$0xf]
        %v466 = vld [vmem:[%s1 + $0x64] sm:$0xf]
        %v467 = vld [vmem:[%s1 + $0x68] sm:$0xf]
        %v468 = vld [vmem:[%s1 + $0x6c] sm:$0xf]
        %v469 = vld [vmem:[%s1 + $0x70] sm:$0xf]
        %v470 = vld [vmem:[%s1 + $0x74] sm:$0xf]
        %v471 = vld [vmem:[%s1 + $0x78] sm:$0xf]
        %v472 = vld [vmem:[%s1 + $0x7c] sm:$0xf]
        %v473 = vld [vmem:[%s1 + $0x80] sm:$0xf]
        %v474 = vld [vmem:[%s1 + $0x84] sm:$0xf]
        %v475 = vld [vmem:[%s1 + $0x88] sm:$0xf]
        %v476 = vld [vmem:[%s1 + $0x8c] sm:$0xf]
        %v477 = vld [vmem:[%s1 + $0x90] sm:$0xf]
        %v478 = vld [vmem:[%s1 + $0x94] sm:$0xf]
        %v479 = vld [vmem:[%s1 + $0x98] sm:$0xf]
        %v480 = vld [vmem:[%s1 + $0x9c] sm:$0xf]
        %v481 = vld [vmem:[%s1 + $0xa0] sm:$0xf]
        %v482 = vld [vmem:[%s1 + $0xa4] sm:$0xf]
        %v483 = vld [vmem:[%s1 + $0xa8] sm:$0xf]
        %v484 = vld [vmem:[%s1 + $0xac] sm:$0xf]
        %v485 = vld [vmem:[%s1 + $0xb0] sm:$0xf]
        %v486 = vld [vmem:[%s1 + $0xb4] sm:$0xf]
        %v487 = vld [vmem:[%s1 + $0xb8] sm:$0xf]
        %v488 = vld [vmem:[%s1 + $0xbc] sm:$0xf]
        %v489 = vld [vmem:[%s1 + $0xc0] sm:$0xf]
        %v490 = vld [vmem:[%s1 + $0xc4] sm:$0xf]
        %v491 = vld [vmem:[%s1 + $0xc8] sm:$0xf]
        %v492 = vld [vmem:[%s1 + $0xcc] sm:$0xf]
        %v493 = vld [vmem:[%s1 + $0xd0] sm:$0xf]
        %v494 = vld [vmem:[%s1 + $0xd4] sm:$0xf]
        %v495 = vld [vmem:[%s1 + $0xd8] sm:$0xf]
        %v496 = vld [vmem:[%s1 + $0xdc] sm:$0xf]
        %v497 = vld [vmem:[%s1 + $0xe0] sm:$0xf]
        %v498 = vld [vmem:[%s1 + $0xe4] sm:$0xf]
        %v499 = vld [vmem:[%s1 + $0xe8] sm:$0xf]
        %v500 = vld [vmem:[%s1 + $0xec] sm:$0xf]
        %v501 = vld [vmem:[%s1 + $0xf0] sm:$0xf]
        %v502 = vld [vmem:[%s1 + $0xf4] sm:$0xf]
        %v503 = vld [vmem:[%s1 + $0xf8] sm:$0xf]
        %v504 = vld [vmem:[%s1 + $0xfc] sm:$0xf]
        %v505 = vld [vmem:[%s1 + $0x100] sm:$0xf]
        %v506 = vld [vmem:[%s1 + $0x104] sm:$0xf]
        %v507 = vld [vmem:[%s1 + $0x108] sm:$0xf]
        %v508 = vld [vmem:[%s1 + $0x10c] sm:$0xf]
        %v509 = vld [vmem:[%s1 + $0x110] sm:$0xf]
        %v510 = vld [vmem:[%s1 + $0x114] sm:$0xf]
        %v511 = vld [vmem:[%s1 + $0x118] sm:$0xf]
        %v512 = vld [vmem:[%s1 + $0x11c] sm:$0xf]
        %v513 = vld [vmem:[%s1 + $0x120] sm:$0xf]
        %v514 = vld [vmem:[%s1 + $0x124] sm:$0xf]
        %v515 = vld [vmem:[%s1 + $0x128] sm:$0xf]
        %v516 = vld [vmem:[%s1 + $0x12c] sm:$0xf]
        %v517 = vld [vmem:[%s1 + $0x130] sm:$0xf]
        %v518 = vld [vmem:[%s1 + $0x134] sm:$0xf]
        %v519 = vld [vmem:[%s1 + $0x138] sm:$0xf]
        %v520 = vld [vmem:[%s1 + $0x13c] sm:$0xf]
        %v521 = vld [vmem:[%s2] sm:$0x1]
        %v523 = vlaneseq
        %v524 = vshrl.u32 %v523, 7
        %v525 = vsub.s32 0, %v524
        %v526 = vrot.slane %v521, %v525
        %v534 = vunpack.c.l.b16 %v435
        %v535 = vunpack.c.h.b16 %v435
        %v536 = vunpack.c.l.b16 %v436
        %v537 = vunpack.c.h.b16 %v436
        %v538 = vunpack.c.l.b16 %v437
        %v539 = vunpack.c.l.b16 %v438
        %v540 = vunpack.c.h.b16 %v438
        %v541 = vunpack.c.l.b16 %v439
        %v542 = vunpack.c.h.b16 %v439
        %v543 = vunpack.c.l.b16 %v440
        %v544 = vpack.c.b16 %v539, %v534
        %v545 = vpack.c.b16 %v540, %v535
        %v546 = vpack.c.b16 %v541, %v536
        %v547 = vpack.c.b16 %v542, %v537
        %v548 = vpack.c.b16 %v543, %v538
        %v634 = vunpack.c.l.b16 %v441
        %v635 = vunpack.c.l.b16 %v442
        %v636 = vunpack.c.l.b16 %v443
        %v637 = vunpack.c.l.b16 %v444
        %v638 = vunpack.c.l.b16 %v445
        %v639 = vunpack.c.l.b16 %v446
        %v640 = vunpack.c.l.b16 %v447
        %v641 = vunpack.c.l.b16 %v448
        %v642 = vunpack.c.l.b16 %v449
        %v643 = vunpack.c.l.b16 %v450
        %v644 = vunpack.c.l.b16 %v451
        %v645 = vunpack.c.l.b16 %v452
        %v646 = vunpack.c.l.b16 %v453
        %v647 = vunpack.c.l.b16 %v454
        %v648 = vunpack.c.l.b16 %v455
        %v649 = vunpack.c.l.b16 %v456
        %v650 = vunpack.c.l.b16 %v457
        %v651 = vunpack.c.l.b16 %v458
        %v652 = vunpack.c.l.b16 %v459
        %v653 = vunpack.c.l.b16 %v460
        %v654 = vunpack.c.l.b16 %v461
        %v655 = vunpack.c.l.b16 %v462
        %v656 = vunpack.c.l.b16 %v463
        %v657 = vunpack.c.l.b16 %v464
        %v658 = vunpack.c.l.b16 %v465
        %v659 = vunpack.c.l.b16 %v466
        %v660 = vunpack.c.l.b16 %v467
        %v661 = vunpack.c.l.b16 %v468
        %v662 = vunpack.c.l.b16 %v469
        %v663 = vunpack.c.l.b16 %v470
        %v664 = vunpack.c.l.b16 %v471
        %v665 = vunpack.c.l.b16 %v472
        %v666 = vunpack.c.l.b16 %v473
        %v667 = vunpack.c.l.b16 %v474
        %v668 = vunpack.c.l.b16 %v475
        %v669 = vunpack.c.l.b16 %v476
        %v670 = vunpack.c.l.b16 %v477
        %v671 = vunpack.c.l.b16 %v478
        %v672 = vunpack.c.l.b16 %v479
        %v673 = vunpack.c.l.b16 %v480
        %v674 = vunpack.c.l.b16 %v481
        %v675 = vunpack.c.l.b16 %v482
        %v676 = vunpack.c.l.b16 %v483
        %v677 = vunpack.c.l.b16 %v484
        %v678 = vunpack.c.l.b16 %v485
        %v679 = vunpack.c.l.b16 %v486
        %v680 = vunpack.c.l.b16 %v487
        %v681 = vunpack.c.l.b16 %v488
        %v682 = vunpack.c.l.b16 %v489
        %v683 = vunpack.c.l.b16 %v490
        %v684 = vunpack.c.l.b16 %v491
        %v685 = vunpack.c.l.b16 %v492
        %v686 = vunpack.c.l.b16 %v493
        %v687 = vunpack.c.l.b16 %v494
        %v688 = vunpack.c.l.b16 %v495
        %v689 = vunpack.c.l.b16 %v496
        %v690 = vunpack.c.l.b16 %v497
        %v691 = vunpack.c.l.b16 %v498
        %v692 = vunpack.c.l.b16 %v499
        %v693 = vunpack.c.l.b16 %v500
        %v694 = vunpack.c.l.b16 %v501
        %v695 = vunpack.c.l.b16 %v502
        %v696 = vunpack.c.l.b16 %v503
        %v697 = vunpack.c.l.b16 %v504
        %v698 = vunpack.c.l.b16 %v505
        %v699 = vunpack.c.l.b16 %v506
        %v700 = vunpack.c.l.b16 %v507
        %v701 = vunpack.c.l.b16 %v508
        %v702 = vunpack.c.l.b16 %v509
        %v703 = vunpack.c.l.b16 %v510
        %v704 = vunpack.c.l.b16 %v511
        %v705 = vunpack.c.l.b16 %v512
        %v706 = vunpack.c.l.b16 %v513
        %v707 = vunpack.c.l.b16 %v514
        %v708 = vunpack.c.l.b16 %v515
        %v709 = vunpack.c.l.b16 %v516
        %v710 = vunpack.c.l.b16 %v517
        %v711 = vunpack.c.l.b16 %v518
        %v712 = vunpack.c.l.b16 %v519
        %v713 = vunpack.c.l.b16 %v520
        %v714 = vpack.c.b16 %v635, %v634
        %v715 = vpack.c.b16 %v637, %v636
        %v716 = vpack.c.b16 %v639, %v638
        %v717 = vpack.c.b16 %v641, %v640
        %v718 = vpack.c.b16 %v643, %v642
        %v719 = vpack.c.b16 %v645, %v644
        %v720 = vpack.c.b16 %v647, %v646
        %v721 = vpack.c.b16 %v649, %v648
        %v722 = vpack.c.b16 %v651, %v650
        %v723 = vpack.c.b16 %v653, %v652
        %v724 = vpack.c.b16 %v655, %v654
        %v725 = vpack.c.b16 %v657, %v656
        %v726 = vpack.c.b16 %v659, %v658
        %v727 = vpack.c.b16 %v661, %v660
        %v728 = vpack.c.b16 %v663, %v662
        %v729 = vpack.c.b16 %v665, %v664
        %v730 = vpack.c.b16 %v667, %v666
        %v731 = vpack.c.b16 %v669, %v668
        %v732 = vpack.c.b16 %v671, %v670
        %v733 = vpack.c.b16 %v673, %v672
        %v734 = vpack.c.b16 %v675, %v674
        %v735 = vpack.c.b16 %v677, %v676
        %v736 = vpack.c.b16 %v679, %v678
        %v737 = vpack.c.b16 %v681, %v680
        %v738 = vpack.c.b16 %v683, %v682
        %v739 = vpack.c.b16 %v685, %v684
        %v740 = vpack.c.b16 %v687, %v686
        %v741 = vpack.c.b16 %v689, %v688
        %v742 = vpack.c.b16 %v691, %v690
        %v743 = vpack.c.b16 %v693, %v692
        %v744 = vpack.c.b16 %v695, %v694
        %v745 = vpack.c.b16 %v697, %v696
        %v746 = vpack.c.b16 %v699, %v698
        %v747 = vpack.c.b16 %v701, %v700
        %v748 = vpack.c.b16 %v703, %v702
        %v749 = vpack.c.b16 %v705, %v704
        %v750 = vpack.c.b16 %v707, %v706
        %v751 = vpack.c.b16 %v709, %v708
        %v752 = vpack.c.b16 %v711, %v710
        %v753 = vpack.c.b16 %v713, %v712
        %794 = vmatprep.subr.bf16.mxu0 0
        %795 = vmatpush1.bf16.msra.mxu0 %v714
        %796 = vmatprep.subr.bf16.mxu0 0
        %797 = vmatpush1.bf16.msra.mxu0 %v715
        %798 = vmatprep.subr.bf16.mxu0 0
        %799 = vmatpush1.bf16.msra.mxu0 %v716
        %800 = vmatprep.subr.bf16.mxu0 0
        %801 = vmatpush1.bf16.msra.mxu0 %v717
        %802 = vmatprep.subr.bf16.mxu0 0
        %803 = vmatpush1.bf16.msra.mxu0 %v718
        %804 = vmatprep.subr.bf16.mxu0 0
        %805 = vmatpush1.bf16.msra.mxu0 %v719
        %806 = vmatprep.subr.bf16.mxu0 0
        %807 = vmatpush1.bf16.msra.mxu0 %v720
        %808 = vmatprep.subr.bf16.mxu0 0
        %809 = vmatpush1.bf16.msra.mxu0 %v721
        %810 = vmatprep.subr.bf16.mxu0 0
        %811 = vmatpush1.bf16.msra.mxu0 %v722
        %812 = vmatprep.subr.bf16.mxu0 0
        %813 = vmatpush1.bf16.msra.mxu0 %v723
        %814 = vmatprep.subr.bf16.mxu0 0
        %815 = vmatpush1.bf16.msra.mxu0 %v724
        %816 = vmatprep.subr.bf16.mxu0 0
        %817 = vmatpush1.bf16.msra.mxu0 %v725
        %818 = vmatprep.subr.bf16.mxu0 0
        %819 = vmatpush1.bf16.msra.mxu0 %v726
        %820 = vmatprep.subr.bf16.mxu0 0
        %821 = vmatpush1.bf16.msra.mxu0 %v727
        %822 = vmatprep.subr.bf16.mxu0 0
        %823 = vmatpush1.bf16.msra.mxu0 %v728
        %824 = vmatprep.subr.bf16.mxu0 0
        %825 = vmatpush1.bf16.msra.mxu0 %v729
        %826 = vmatprep.mubr.bf16.mxu0 %v545
        %827 = vmatmul.mubr.bf16.gmra.mrb[0].mxu0 %v544
        %v828 = vpop.f32.mrb[0].mxu0
        %v829 = vadd.f32 %v526, %v828
        %v830 = vpop.f32.mrb[0].mxu0
        %v831 = vpop.f32.mrb[0].mxu0
        %v832 = vadd.f32 %v526, %v831
        %v833 = vpop.f32.mrb[0].mxu0
        %834 = vdwg.mxu0
        %835 = vmatprep.subr.bf16.mxu0 0
        %836 = vmatpush1.bf16.msra.mxu0 %v730
        %837 = vmatprep.subr.bf16.mxu0 0
        %838 = vmatpush1.bf16.msra.mxu0 %v731
        %839 = vmatprep.subr.bf16.mxu0 0
        %840 = vmatpush1.bf16.msra.mxu0 %v732
        %841 = vmatprep.subr.bf16.mxu0 0
        %842 = vmatpush1.bf16.msra.mxu0 %v733
        %843 = vmatprep.subr.bf16.mxu0 0
        %844 = vmatpush1.bf16.msra.mxu0 %v734
        %845 = vmatprep.subr.bf16.mxu0 0
        %846 = vmatpush1.bf16.msra.mxu0 %v735
        %847 = vmatprep.subr.bf16.mxu0 0
        %848 = vmatpush1.bf16.msra.mxu0 %v736
        %849 = vmatprep.subr.bf16.mxu0 0
        %850 = vmatpush1.bf16.msra.mxu0 %v737
        %851 = vmatprep.subr.bf16.mxu0 0
        %852 = vmatpush1.bf16.msra.mxu0 %v738
        %853 = vmatprep.subr.bf16.mxu0 0
        %854 = vmatpush1.bf16.msra.mxu0 %v739
        %855 = vmatprep.subr.bf16.mxu0 0
        %856 = vmatpush1.bf16.msra.mxu0 %v740
        %857 = vmatprep.subr.bf16.mxu0 0
        %858 = vmatpush1.bf16.msra.mxu0 %v741
        %859 = vmatprep.subr.bf16.mxu0 0
        %860 = vmatpush1.bf16.msra.mxu0 %v742
        %861 = vmatprep.subr.bf16.mxu0 0
        %862 = vmatpush1.bf16.msra.mxu0 %v743
        %863 = vmatprep.subr.bf16.mxu0 0
        %864 = vmatpush1.bf16.msra.mxu0 %v744
        %865 = vmatprep.subr.bf16.mxu0 0
        %866 = vmatpush1.bf16.msra.mxu0 %v745
        %867 = vmatprep.mubr.bf16.mxu0 %v547
        %868 = vmatmul.mubr.bf16.gmra.mrb[0].mxu0 %v546
        %v869 = vpop.f32.mrb[0].mxu0
        %v870 = vadd.f32 %v829, %v869
        %v871 = vpop.f32.mrb[0].mxu0
        %v872 = vpop.f32.mrb[0].mxu0
        %v873 = vadd.f32 %v832, %v872
        %v874 = vpop.f32.mrb[0].mxu0
        %875 = vdwg.mxu0
        %876 = vmatprep.subr.bf16.mxu0 0
        %877 = vmatpush1.bf16.msra.mxu0 %v746
        %878 = vmatprep.subr.bf16.mxu0 0
        %879 = vmatpush1.bf16.msra.mxu0 %v747
        %880 = vmatprep.subr.bf16.mxu0 0
        %881 = vmatpush1.bf16.msra.mxu0 %v748
        %882 = vmatprep.subr.bf16.mxu0 0
        %883 = vmatpush1.bf16.msra.mxu0 %v749
        %884 = vmatprep.subr.bf16.mxu0 0
        %885 = vmatpush1.bf16.msra.mxu0 %v750
        %886 = vmatprep.subr.bf16.mxu0 0
        %887 = vmatpush1.bf16.msra.mxu0 %v751
        %888 = vmatprep.subr.bf16.mxu0 0
        %889 = vmatpush1.bf16.msra.mxu0 %v752
        %890 = vmatprep.subr.bf16.mxu0 0
        %891 = vmatpush1.bf16.msra.mxu0 %v753
        %892 = vmatprep.subr.bf16.mxu0 0
        %893 = vmatpush1.bf16.msra.mxu0 0
        %894 = vmatprep.subr.bf16.mxu0 0
        %895 = vmatpush1.bf16.msra.mxu0 0
        %896 = vmatprep.subr.bf16.mxu0 0
        %897 = vmatpush1.bf16.msra.mxu0 0
        %898 = vmatprep.subr.bf16.mxu0 0
        %899 = vmatpush1.bf16.msra.mxu0 0
        %900 = vmatprep.subr.bf16.mxu0 0
        %901 = vmatpush1.bf16.msra.mxu0 0
        %902 = vmatprep.subr.bf16.mxu0 0
        %903 = vmatpush1.bf16.msra.mxu0 0
        %904 = vmatprep.subr.bf16.mxu0 0
        %905 = vmatpush1.bf16.msra.mxu0 0
        %906 = vmatprep.subr.bf16.mxu0 0
        %907 = vmatpush1.bf16.msra.mxu0 0
        %908 = vmatprep.mubr.bf16.mxu0 0
        %909 = vmatmul.mubr.bf16.gmra.mrb[0].mxu0 %v548
        %v910 = vpop.f32.mrb[0].mxu0
        %v911 = vadd.f32 %v870, %v910
        %v912 = vpop.f32.mrb[0].mxu0
        %v913 = vpop.f32.mrb[0].mxu0
        %v914 = vadd.f32 %v873, %v913
        %v915 = vpop.f32.mrb[0].mxu0
        %916 = vdwg.mxu0
        %v917 = vmax.f32 %v911, 0.0
        %v918 = vmax.f32 %v914, 0.0
        %v919 = vpack.c.bf16 %v918, %v917
        %vm920 = vcmask 523264
        %921 = vst.msk [vmem:[#allocation3] sm:$0xff] %vm920, %v919
        %v922 = vld [vmem:[%s372 + $0x14] sm:$0xff]
        %v923 = vld [vmem:[%s372 + $0x1c] sm:$0xff]
        %v924 = vld [vmem:[%s372 + $0x24] sm:$0xf]
        %v925 = vld [vmem:[%s372 + $0xb4] sm:$0xff]
        %v926 = vld [vmem:[%s372 + $0xbc] sm:$0xff]
        %v927 = vld [vmem:[%s372 + $0xc4] sm:$0xf]
        %v928 = vld [vmem:[%s1] sm:$0xf]
        %v929 = vld [vmem:[%s1 + $0x4] sm:$0xf]
        %v930 = vld [vmem:[%s1 + $0x8] sm:$0xf]
        %v931 = vld [vmem:[%s1 + $0xc] sm:$0xf]
        %v932 = vld [vmem:[%s1 + $0x10] sm:$0xf]
        %v933 = vld [vmem:[%s1 + $0x14] sm:$0xf]
        %v934 = vld [vmem:[%s1 + $0x18] sm:$0xf]
        %v935 = vld [vmem:[%s1 + $0x1c] sm:$0xf]
        %v936 = vld [vmem:[%s1 + $0x20] sm:$0xf]
        %v937 = vld [vmem:[%s1 + $0x24] sm:$0xf]
        %v938 = vld [vmem:[%s1 + $0x28] sm:$0xf]
        %v939 = vld [vmem:[%s1 + $0x2c] sm:$0xf]
        %v940 = vld [vmem:[%s1 + $0x30] sm:$0xf]
        %v941 = vld [vmem:[%s1 + $0x34] sm:$0xf]
        %v942 = vld [vmem:[%s1 + $0x38] sm:$0xf]
        %v943 = vld [vmem:[%s1 + $0x3c] sm:$0xf]
        %v944 = vld [vmem:[%s1 + $0x40] sm:$0xf]
        %v945 = vld [vmem:[%s1 + $0x44] sm:$0xf]
        %v946 = vld [vmem:[%s1 + $0x48] sm:$0xf]
        %v947 = vld [vmem:[%s1 + $0x4c] sm:$0xf]
        %v948 = vld [vmem:[%s1 + $0x50] sm:$0xf]
        %v949 = vld [vmem:[%s1 + $0x54] sm:$0xf]
        %v950 = vld [vmem:[%s1 + $0x58] sm:$0xf]
        %v951 = vld [vmem:[%s1 + $0x5c] sm:$0xf]
        %v952 = vld [vmem:[%s1 + $0x60] sm:$0xf]
        %v953 = vld [vmem:[%s1 + $0x64] sm:$0xf]
        %v954 = vld [vmem:[%s1 + $0x68] sm:$0xf]
        %v955 = vld [vmem:[%s1 + $0x6c] sm:$0xf]
        %v956 = vld [vmem:[%s1 + $0x70] sm:$0xf]
        %v957 = vld [vmem:[%s1 + $0x74] sm:$0xf]
        %v958 = vld [vmem:[%s1 + $0x78] sm:$0xf]
        %v959 = vld [vmem:[%s1 + $0x7c] sm:$0xf]
        %v960 = vld [vmem:[%s1 + $0x80] sm:$0xf]
        %v961 = vld [vmem:[%s1 + $0x84] sm:$0xf]
        %v962 = vld [vmem:[%s1 + $0x88] sm:$0xf]
        %v963 = vld [vmem:[%s1 + $0x8c] sm:$0xf]
        %v964 = vld [vmem:[%s1 + $0x90] sm:$0xf]
        %v965 = vld [vmem:[%s1 + $0x94] sm:$0xf]
        %v966 = vld [vmem:[%s1 + $0x98] sm:$0xf]
        %v967 = vld [vmem:[%s1 + $0x9c] sm:$0xf]
        %v968 = vld [vmem:[%s1 + $0xa0] sm:$0xf]
        %v969 = vld [vmem:[%s1 + $0xa4] sm:$0xf]
        %v970 = vld [vmem:[%s1 + $0xa8] sm:$0xf]
        %v971 = vld [vmem:[%s1 + $0xac] sm:$0xf]
        %v972 = vld [vmem:[%s1 + $0xb0] sm:$0xf]
        %v973 = vld [vmem:[%s1 + $0xb4] sm:$0xf]
        %v974 = vld [vmem:[%s1 + $0xb8] sm:$0xf]
        %v975 = vld [vmem:[%s1 + $0xbc] sm:$0xf]
        %v976 = vld [vmem:[%s1 + $0xc0] sm:$0xf]
        %v977 = vld [vmem:[%s1 + $0xc4] sm:$0xf]
        %v978 = vld [vmem:[%s1 + $0xc8] sm:$0xf]
        %v979 = vld [vmem:[%s1 + $0xcc] sm:$0xf]
        %v980 = vld [vmem:[%s1 + $0xd0] sm:$0xf]
        %v981 = vld [vmem:[%s1 + $0xd4] sm:$0xf]
        %v982 = vld [vmem:[%s1 + $0xd8] sm:$0xf]
        %v983 = vld [vmem:[%s1 + $0xdc] sm:$0xf]
        %v984 = vld [vmem:[%s1 + $0xe0] sm:$0xf]
        %v985 = vld [vmem:[%s1 + $0xe4] sm:$0xf]
        %v986 = vld [vmem:[%s1 + $0xe8] sm:$0xf]
        %v987 = vld [vmem:[%s1 + $0xec] sm:$0xf]
        %v988 = vld [vmem:[%s1 + $0xf0] sm:$0xf]
        %v989 = vld [vmem:[%s1 + $0xf4] sm:$0xf]
        %v990 = vld [vmem:[%s1 + $0xf8] sm:$0xf]
        %v991 = vld [vmem:[%s1 + $0xfc] sm:$0xf]
        %v992 = vld [vmem:[%s1 + $0x100] sm:$0xf]
        %v993 = vld [vmem:[%s1 + $0x104] sm:$0xf]
        %v994 = vld [vmem:[%s1 + $0x108] sm:$0xf]
        %v995 = vld [vmem:[%s1 + $0x10c] sm:$0xf]
        %v996 = vld [vmem:[%s1 + $0x110] sm:$0xf]
        %v997 = vld [vmem:[%s1 + $0x114] sm:$0xf]
        %v998 = vld [vmem:[%s1 + $0x118] sm:$0xf]
        %v999 = vld [vmem:[%s1 + $0x11c] sm:$0xf]
        %v1000 = vld [vmem:[%s1 + $0x120] sm:$0xf]
        %v1001 = vld [vmem:[%s1 + $0x124] sm:$0xf]
        %v1002 = vld [vmem:[%s1 + $0x128] sm:$0xf]
        %v1003 = vld [vmem:[%s1 + $0x12c] sm:$0xf]
        %v1004 = vld [vmem:[%s1 + $0x130] sm:$0xf]
        %v1005 = vld [vmem:[%s1 + $0x134] sm:$0xf]
        %v1006 = vld [vmem:[%s1 + $0x138] sm:$0xf]
        %v1007 = vld [vmem:[%s1 + $0x13c] sm:$0xf]
        %v1008 = vld [vmem:[%s2] sm:$0x1]
        %v1010 = vlaneseq
        %v1011 = vshrl.u32 %v1010, 7
        %v1012 = vsub.s32 0, %v1011
        %v1013 = vrot.slane %v1008, %v1012
        %v1021 = vunpack.c.l.b16 %v922
        %v1022 = vunpack.c.h.b16 %v922
        %v1023 = vunpack.c.l.b16 %v923
        %v1024 = vunpack.c.h.b16 %v923
        %v1025 = vunpack.c.l.b16 %v924
        %v1026 = vunpack.c.l.b16 %v925
        %v1027 = vunpack.c.h.b16 %v925
        %v1028 = vunpack.c.l.b16 %v926
        %v1029 = vunpack.c.h.b16 %v926
        %v1030 = vunpack.c.l.b16 %v927
        %v1031 = vpack.c.b16 %v1026, %v1021
        %v1032 = vpack.c.b16 %v1027, %v1022
        %v1033 = vpack.c.b16 %v1028, %v1023
        %v1034 = vpack.c.b16 %v1029, %v1024
        %v1035 = vpack.c.b16 %v1030, %v1025
        %v1121 = vunpack.c.l.b16 %v928
        %v1122 = vunpack.c.l.b16 %v929
        %v1123 = vunpack.c.l.b16 %v930
        %v1124 = vunpack.c.l.b16 %v931
        %v1125 = vunpack.c.l.b16 %v932
        %v1126 = vunpack.c.l.b16 %v933
        %v1127 = vunpack.c.l.b16 %v934
        %v1128 = vunpack.c.l.b16 %v935
        %v1129 = vunpack.c.l.b16 %v936
        %v1130 = vunpack.c.l.b16 %v937
        %v1131 = vunpack.c.l.b16 %v938
        %v1132 = vunpack.c.l.b16 %v939
        %v1133 = vunpack.c.l.b16 %v940
        %v1134 = vunpack.c.l.b16 %v941
        %v1135 = vunpack.c.l.b16 %v942
        %v1136 = vunpack.c.l.b16 %v943
        %v1137 = vunpack.c.l.b16 %v944
        %v1138 = vunpack.c.l.b16 %v945
        %v1139 = vunpack.c.l.b16 %v946
        %v1140 = vunpack.c.l.b16 %v947
        %v1141 = vunpack.c.l.b16 %v948
        %v1142 = vunpack.c.l.b16 %v949
        %v1143 = vunpack.c.l.b16 %v950
        %v1144 = vunpack.c.l.b16 %v951
        %v1145 = vunpack.c.l.b16 %v952
        %v1146 = vunpack.c.l.b16 %v953
        %v1147 = vunpack.c.l.b16 %v954
        %v1148 = vunpack.c.l.b16 %v955
        %v1149 = vunpack.c.l.b16 %v956
        %v1150 = vunpack.c.l.b16 %v957
        %v1151 = vunpack.c.l.b16 %v958
        %v1152 = vunpack.c.l.b16 %v959
        %v1153 = vunpack.c.l.b16 %v960
        %v1154 = vunpack.c.l.b16 %v961
        %v1155 = vunpack.c.l.b16 %v962
        %v1156 = vunpack.c.l.b16 %v963
        %v1157 = vunpack.c.l.b16 %v964
        %v1158 = vunpack.c.l.b16 %v965
        %v1159 = vunpack.c.l.b16 %v966
        %v1160 = vunpack.c.l.b16 %v967
        %v1161 = vunpack.c.l.b16 %v968
        %v1162 = vunpack.c.l.b16 %v969
        %v1163 = vunpack.c.l.b16 %v970
        %v1164 = vunpack.c.l.b16 %v971
        %v1165 = vunpack.c.l.b16 %v972
        %v1166 = vunpack.c.l.b16 %v973
        %v1167 = vunpack.c.l.b16 %v974
        %v1168 = vunpack.c.l.b16 %v975
        %v1169 = vunpack.c.l.b16 %v976
        %v1170 = vunpack.c.l.b16 %v977
        %v1171 = vunpack.c.l.b16 %v978
        %v1172 = vunpack.c.l.b16 %v979
        %v1173 = vunpack.c.l.b16 %v980
        %v1174 = vunpack.c.l.b16 %v981
        %v1175 = vunpack.c.l.b16 %v982
        %v1176 = vunpack.c.l.b16 %v983
        %v1177 = vunpack.c.l.b16 %v984
        %v1178 = vunpack.c.l.b16 %v985
        %v1179 = vunpack.c.l.b16 %v986
        %v1180 = vunpack.c.l.b16 %v987
        %v1181 = vunpack.c.l.b16 %v988
        %v1182 = vunpack.c.l.b16 %v989
        %v1183 = vunpack.c.l.b16 %v990
        %v1184 = vunpack.c.l.b16 %v991
        %v1185 = vunpack.c.l.b16 %v992
        %v1186 = vunpack.c.l.b16 %v993
        %v1187 = vunpack.c.l.b16 %v994
        %v1188 = vunpack.c.l.b16 %v995
        %v1189 = vunpack.c.l.b16 %v996
        %v1190 = vunpack.c.l.b16 %v997
        %v1191 = vunpack.c.l.b16 %v998
        %v1192 = vunpack.c.l.b16 %v999
        %v1193 = vunpack.c.l.b16 %v1000
        %v1194 = vunpack.c.l.b16 %v1001
        %v1195 = vunpack.c.l.b16 %v1002
        %v1196 = vunpack.c.l.b16 %v1003
        %v1197 = vunpack.c.l.b16 %v1004
        %v1198 = vunpack.c.l.b16 %v1005
        %v1199 = vunpack.c.l.b16 %v1006
        %v1200 = vunpack.c.l.b16 %v1007
        %v1201 = vpack.c.b16 %v1122, %v1121
        %v1202 = vpack.c.b16 %v1124, %v1123
        %v1203 = vpack.c.b16 %v1126, %v1125
        %v1204 = vpack.c.b16 %v1128, %v1127
        %v1205 = vpack.c.b16 %v1130, %v1129
        %v1206 = vpack.c.b16 %v1132, %v1131
        %v1207 = vpack.c.b16 %v1134, %v1133
        %v1208 = vpack.c.b16 %v1136, %v1135
        %v1209 = vpack.c.b16 %v1138, %v1137
        %v1210 = vpack.c.b16 %v1140, %v1139
        %v1211 = vpack.c.b16 %v1142, %v1141
        %v1212 = vpack.c.b16 %v1144, %v1143
        %v1213 = vpack.c.b16 %v1146, %v1145
        %v1214 = vpack.c.b16 %v1148, %v1147
        %v1215 = vpack.c.b16 %v1150, %v1149
        %v1216 = vpack.c.b16 %v1152, %v1151
        %v1217 = vpack.c.b16 %v1154, %v1153
        %v1218 = vpack.c.b16 %v1156, %v1155
        %v1219 = vpack.c.b16 %v1158, %v1157
        %v1220 = vpack.c.b16 %v1160, %v1159
        %v1221 = vpack.c.b16 %v1162, %v1161
        %v1222 = vpack.c.b16 %v1164, %v1163
        %v1223 = vpack.c.b16 %v1166, %v1165
        %v1224 = vpack.c.b16 %v1168, %v1167
        %v1225 = vpack.c.b16 %v1170, %v1169
        %v1226 = vpack.c.b16 %v1172, %v1171
        %v1227 = vpack.c.b16 %v1174, %v1173
        %v1228 = vpack.c.b16 %v1176, %v1175
        %v1229 = vpack.c.b16 %v1178, %v1177
        %v1230 = vpack.c.b16 %v1180, %v1179
        %v1231 = vpack.c.b16 %v1182, %v1181
        %v1232 = vpack.c.b16 %v1184, %v1183
        %v1233 = vpack.c.b16 %v1186, %v1185
        %v1234 = vpack.c.b16 %v1188, %v1187
        %v1235 = vpack.c.b16 %v1190, %v1189
        %v1236 = vpack.c.b16 %v1192, %v1191
        %v1237 = vpack.c.b16 %v1194, %v1193
        %v1238 = vpack.c.b16 %v1196, %v1195
        %v1239 = vpack.c.b16 %v1198, %v1197
        %v1240 = vpack.c.b16 %v1200, %v1199
        %1281 = vmatprep.subr.bf16.mxu0 0
        %1282 = vmatpush1.bf16.msra.mxu0 %v1201
        %1283 = vmatprep.subr.bf16.mxu0 0
        %1284 = vmatpush1.bf16.msra.mxu0 %v1202
        %1285 = vmatprep.subr.bf16.mxu0 0
        %1286 = vmatpush1.bf16.msra.mxu0 %v1203
        %1287 = vmatprep.subr.bf16.mxu0 0
        %1288 = vmatpush1.bf16.msra.mxu0 %v1204
        %1289 = vmatprep.subr.bf16.mxu0 0
        %1290 = vmatpush1.bf16.msra.mxu0 %v1205
        %1291 = vmatprep.subr.bf16.mxu0 0
        %1292 = vmatpush1.bf16.msra.mxu0 %v1206
        %1293 = vmatprep.subr.bf16.mxu0 0
        %1294 = vmatpush1.bf16.msra.mxu0 %v1207
        %1295 = vmatprep.subr.bf16.mxu0 0
        %1296 = vmatpush1.bf16.msra.mxu0 %v1208
        %1297 = vmatprep.subr.bf16.mxu0 0
        %1298 = vmatpush1.bf16.msra.mxu0 %v1209
        %1299 = vmatprep.subr.bf16.mxu0 0
        %1300 = vmatpush1.bf16.msra.mxu0 %v1210
        %1301 = vmatprep.subr.bf16.mxu0 0
        %1302 = vmatpush1.bf16.msra.mxu0 %v1211
        %1303 = vmatprep.subr.bf16.mxu0 0
        %1304 = vmatpush1.bf16.msra.mxu0 %v1212
        %1305 = vmatprep.subr.bf16.mxu0 0
        %1306 = vmatpush1.bf16.msra.mxu0 %v1213
        %1307 = vmatprep.subr.bf16.mxu0 0
        %1308 = vmatpush1.bf16.msra.mxu0 %v1214
        %1309 = vmatprep.subr.bf16.mxu0 0
        %1310 = vmatpush1.bf16.msra.mxu0 %v1215
        %1311 = vmatprep.subr.bf16.mxu0 0
        %1312 = vmatpush1.bf16.msra.mxu0 %v1216
        %1313 = vmatprep.mubr.bf16.mxu0 %v1032
        %1314 = vmatmul.mubr.bf16.gmra.mrb[0].mxu0 %v1031
        %v1315 = vpop.f32.mrb[0].mxu0
        %v1316 = vadd.f32 %v1013, %v1315
        %v1317 = vpop.f32.mrb[0].mxu0
        %v1318 = vpop.f32.mrb[0].mxu0
        %v1319 = vadd.f32 %v1013, %v1318
        %v1320 = vpop.f32.mrb[0].mxu0
        %1321 = vdwg.mxu0
        %1322 = vmatprep.subr.bf16.mxu0 0
        %1323 = vmatpush1.bf16.msra.mxu0 %v1217
        %1324 = vmatprep.subr.bf16.mxu0 0
        %1325 = vmatpush1.bf16.msra.mxu0 %v1218
        %1326 = vmatprep.subr.bf16.mxu0 0
        %1327 = vmatpush1.bf16.msra.mxu0 %v1219
        %1328 = vmatprep.subr.bf16.mxu0 0
        %1329 = vmatpush1.bf16.msra.mxu0 %v1220
        %1330 = vmatprep.subr.bf16.mxu0 0
        %1331 = vmatpush1.bf16.msra.mxu0 %v1221
        %1332 = vmatprep.subr.bf16.mxu0 0
        %1333 = vmatpush1.bf16.msra.mxu0 %v1222
        %1334 = vmatprep.subr.bf16.mxu0 0
        %1335 = vmatpush1.bf16.msra.mxu0 %v1223
        %1336 = vmatprep.subr.bf16.mxu0 0
        %1337 = vmatpush1.bf16.msra.mxu0 %v1224
        %1338 = vmatprep.subr.bf16.mxu0 0
        %1339 = vmatpush1.bf16.msra.mxu0 %v1225
        %1340 = vmatprep.subr.bf16.mxu0 0
        %1341 = vmatpush1.bf16.msra.mxu0 %v1226
        %1342 = vmatprep.subr.bf16.mxu0 0
        %1343 = vmatpush1.bf16.msra.mxu0 %v1227
        %1344 = vmatprep.subr.bf16.mxu0 0
        %1345 = vmatpush1.bf16.msra.mxu0 %v1228
        %1346 = vmatprep.subr.bf16.mxu0 0
        %1347 = vmatpush1.bf16.msra.mxu0 %v1229
        %1348 = vmatprep.subr.bf16.mxu0 0
        %1349 = vmatpush1.bf16.msra.mxu0 %v1230
        %1350 = vmatprep.subr.bf16.mxu0 0
        %1351 = vmatpush1.bf16.msra.mxu0 %v1231
        %1352 = vmatprep.subr.bf16.mxu0 0
        %1353 = vmatpush1.bf16.msra.mxu0 %v1232
        %1354 = vmatprep.mubr.bf16.mxu0 %v1034
        %1355 = vmatmul.mubr.bf16.gmra.mrb[0].mxu0 %v1033
        %v1356 = vpop.f32.mrb[0].mxu0
        %v1357 = vadd.f32 %v1316, %v1356
        %v1358 = vpop.f32.mrb[0].mxu0
        %v1359 = vpop.f32.mrb[0].mxu0
        %v1360 = vadd.f32 %v1319, %v1359
        %v1361 = vpop.f32.mrb[0].mxu0
        %1362 = vdwg.mxu0
        %1363 = vmatprep.subr.bf16.mxu0 0
        %1364 = vmatpush1.bf16.msra.mxu0 %v1233
        %1365 = vmatprep.subr.bf16.mxu0 0
        %1366 = vmatpush1.bf16.msra.mxu0 %v1234
        %1367 = vmatprep.subr.bf16.mxu0 0
        %1368 = vmatpush1.bf16.msra.mxu0 %v1235
        %1369 = vmatprep.subr.bf16.mxu0 0
        %1370 = vmatpush1.bf16.msra.mxu0 %v1236
        %1371 = vmatprep.subr.bf16.mxu0 0
        %1372 = vmatpush1.bf16.msra.mxu0 %v1237
        %1373 = vmatprep.subr.bf16.mxu0 0
        %1374 = vmatpush1.bf16.msra.mxu0 %v1238
        %1375 = vmatprep.subr.bf16.mxu0 0
        %1376 = vmatpush1.bf16.msra.mxu0 %v1239
        %1377 = vmatprep.subr.bf16.mxu0 0
        %1378 = vmatpush1.bf16.msra.mxu0 %v1240
        %1379 = vmatprep.subr.bf16.mxu0 0
        %1380 = vmatpush1.bf16.msra.mxu0 0
        %1381 = vmatprep.subr.bf16.mxu0 0
        %1382 = vmatpush1.bf16.msra.mxu0 0
        %1383 = vmatprep.subr.bf16.mxu0 0
        %1384 = vmatpush1.bf16.msra.mxu0 0
        %1385 = vmatprep.subr.bf16.mxu0 0
        %1386 = vmatpush1.bf16.msra.mxu0 0
        %1387 = vmatprep.subr.bf16.mxu0 0
        %1388 = vmatpush1.bf16.msra.mxu0 0
        %1389 = vmatprep.subr.bf16.mxu0 0
        %1390 = vmatpush1.bf16.msra.mxu0 0
        %1391 = vmatprep.subr.bf16.mxu0 0
        %1392 = vmatpush1.bf16.msra.mxu0 0
        %1393 = vmatprep.subr.bf16.mxu0 0
        %1394 = vmatpush1.bf16.msra.mxu0 0
        %1395 = vmatprep.mubr.bf16.mxu0 0
        %1396 = vmatmul.mubr.bf16.gmra.mrb[0].mxu0 %v1035
        %v1397 = vpop.f32.mrb[0].mxu0
        %v1398 = vadd.f32 %v1357, %v1397
        %v1399 = vpop.f32.mrb[0].mxu0
        %v1400 = vpop.f32.mrb[0].mxu0
        %v1401 = vadd.f32 %v1360, %v1400
        %v1402 = vpop.f32.mrb[0].mxu0
        %1403 = vdwg.mxu0
        %v1404 = vmax.f32 %v1398, 0.0
        %v1405 = vmax.f32 %v1401, 0.0
        %v1406 = vpack.c.bf16 %v1405, %v1404
        %1408 = vrot.lane.b32.xlu0 %v1406, 64
        %v1409 = vpop.permute.xlu0 %1408
        %vm1411 = vcmask 1048064
        %1412 = vst.msk [vmem:[#allocation3] sm:$0xff] %vm1411, %v1409
        %v1413 = vld [vmem:[%s372 + $0x28] sm:$0xff]
        %v1414 = vld [vmem:[%s372 + $0x30] sm:$0xff]
        %v1415 = vld [vmem:[%s372 + $0x38] sm:$0xf]
        %v1416 = vld [vmem:[%s372 + $0xc8] sm:$0xff]
        %v1417 = vld [vmem:[%s372 + $0xd0] sm:$0xff]
        %v1418 = vld [vmem:[%s372 + $0xd8] sm:$0xf]
        %v1419 = vld [vmem:[%s1] sm:$0xf]
        %v1420 = vld [vmem:[%s1 + $0x4] sm:$0xf]
        %v1421 = vld [vmem:[%s1 + $0x8] sm:$0xf]
        %v1422 = vld [vmem:[%s1 + $0xc] sm:$0xf]
        %v1423 = vld [vmem:[%s1 + $0x10] sm:$0xf]
        %v1424 = vld [vmem:[%s1 + $0x14] sm:$0xf]
        %v1425 = vld [vmem:[%s1 + $0x18] sm:$0xf]
        %v1426 = vld [vmem:[%s1 + $0x1c] sm:$0xf]
        %v1427 = vld [vmem:[%s1 + $0x20] sm:$0xf]
        %v1428 = vld [vmem:[%s1 + $0x24] sm:$0xf]
        %v1429 = vld [vmem:[%s1 + $0x28] sm:$0xf]
        %v1430 = vld [vmem:[%s1 + $0x2c] sm:$0xf]
        %v1431 = vld [vmem:[%s1 + $0x30] sm:$0xf]
        %v1432 = vld [vmem:[%s1 + $0x34] sm:$0xf]
        %v1433 = vld [vmem:[%s1 + $0x38] sm:$0xf]
        %v1434 = vld [vmem:[%s1 + $0x3c] sm:$0xf]
        %v1435 = vld [vmem:[%s1 + $0x40] sm:$0xf]
        %v1436 = vld [vmem:[%s1 + $0x44] sm:$0xf]
        %v1437 = vld [vmem:[%s1 + $0x48] sm:$0xf]
        %v1438 = vld [vmem:[%s1 + $0x4c] sm:$0xf]
        %v1439 = vld [vmem:[%s1 + $0x50] sm:$0xf]
        %v1440 = vld [vmem:[%s1 + $0x54] sm:$0xf]
        %v1441 = vld [vmem:[%s1 + $0x58] sm:$0xf]
        %v1442 = vld [vmem:[%s1 + $0x5c] sm:$0xf]
        %v1443 = vld [vmem:[%s1 + $0x60] sm:$0xf]
        %v1444 = vld [vmem:[%s1 + $0x64] sm:$0xf]
        %v1445 = vld [vmem:[%s1 + $0x68] sm:$0xf]
        %v1446 = vld [vmem:[%s1 + $0x6c] sm:$0xf]
        %v1447 = vld [vmem:[%s1 + $0x70] sm:$0xf]
        %v1448 = vld [vmem:[%s1 + $0x74] sm:$0xf]
        %v1449 = vld [vmem:[%s1 + $0x78] sm:$0xf]
        %v1450 = vld [vmem:[%s1 + $0x7c] sm:$0xf]
        %v1451 = vld [vmem:[%s1 + $0x80] sm:$0xf]
        %v1452 = vld [vmem:[%s1 + $0x84] sm:$0xf]
        %v1453 = vld [vmem:[%s1 + $0x88] sm:$0xf]
        %v1454 = vld [vmem:[%s1 + $0x8c] sm:$0xf]
        %v1455 = vld [vmem:[%s1 + $0x90] sm:$0xf]
        %v1456 = vld [vmem:[%s1 + $0x94] sm:$0xf]
        %v1457 = vld [vmem:[%s1 + $0x98] sm:$0xf]
        %v1458 = vld [vmem:[%s1 + $0x9c] sm:$0xf]
        %v1459 = vld [vmem:[%s1 + $0xa0] sm:$0xf]
        %v1460 = vld [vmem:[%s1 + $0xa4] sm:$0xf]
        %v1461 = vld [vmem:[%s1 + $0xa8] sm:$0xf]
        %v1462 = vld [vmem:[%s1 + $0xac] sm:$0xf]
        %v1463 = vld [vmem:[%s1 + $0xb0] sm:$0xf]
        %v1464 = vld [vmem:[%s1 + $0xb4] sm:$0xf]
        %v1465 = vld [vmem:[%s1 + $0xb8] sm:$0xf]
        %v1466 = vld [vmem:[%s1 + $0xbc] sm:$0xf]
        %v1467 = vld [vmem:[%s1 + $0xc0] sm:$0xf]
        %v1468 = vld [vmem:[%s1 + $0xc4] sm:$0xf]
        %v1469 = vld [vmem:[%s1 + $0xc8] sm:$0xf]
        %v1470 = vld [vmem:[%s1 + $0xcc] sm:$0xf]
        %v1471 = vld [vmem:[%s1 + $0xd0] sm:$0xf]
        %v1472 = vld [vmem:[%s1 + $0xd4] sm:$0xf]
        %v1473 = vld [vmem:[%s1 + $0xd8] sm:$0xf]
        %v1474 = vld [vmem:[%s1 + $0xdc] sm:$0xf]
        %v1475 = vld [vmem:[%s1 + $0xe0] sm:$0xf]
        %v1476 = vld [vmem:[%s1 + $0xe4] sm:$0xf]
        %v1477 = vld [vmem:[%s1 + $0xe8] sm:$0xf]
        %v1478 = vld [vmem:[%s1 + $0xec] sm:$0xf]
        %v1479 = vld [vmem:[%s1 + $0xf0] sm:$0xf]
        %v1480 = vld [vmem:[%s1 + $0xf4] sm:$0xf]
        %v1481 = vld [vmem:[%s1 + $0xf8] sm:$0xf]
        %v1482 = vld [vmem:[%s1 + $0xfc] sm:$0xf]
        %v1483 = vld [vmem:[%s1 + $0x100] sm:$0xf]
        %v1484 = vld [vmem:[%s1 + $0x104] sm:$0xf]
        %v1485 = vld [vmem:[%s1 + $0x108] sm:$0xf]
        %v1486 = vld [vmem:[%s1 + $0x10c] sm:$0xf]
        %v1487 = vld [vmem:[%s1 + $0x110] sm:$0xf]
        %v1488 = vld [vmem:[%s1 + $0x114] sm:$0xf]
        %v1489 = vld [vmem:[%s1 + $0x118] sm:$0xf]
        %v1490 = vld [vmem:[%s1 + $0x11c] sm:$0xf]
        %v1491 = vld [vmem:[%s1 + $0x120] sm:$0xf]
        %v1492 = vld [vmem:[%s1 + $0x124] sm:$0xf]
        %v1493 = vld [vmem:[%s1 + $0x128] sm:$0xf]
        %v1494 = vld [vmem:[%s1 + $0x12c] sm:$0xf]
        %v1495 = vld [vmem:[%s1 + $0x130] sm:$0xf]
        %v1496 = vld [vmem:[%s1 + $0x134] sm:$0xf]
        %v1497 = vld [vmem:[%s1 + $0x138] sm:$0xf]
        %v1498 = vld [vmem:[%s1 + $0x13c] sm:$0xf]
        %v1499 = vld [vmem:[%s2] sm:$0x1]
        %v1501 = vlaneseq
        %v1502 = vshrl.u32 %v1501, 7
        %v1503 = vsub.s32 0, %v1502
        %v1504 = vrot.slane %v1499, %v1503
        %v1512 = vunpack.c.l.b16 %v1413
        %v1513 = vunpack.c.h.b16 %v1413
        %v1514 = vunpack.c.l.b16 %v1414
        %v1515 = vunpack.c.h.b16 %v1414
        %v1516 = vunpack.c.l.b16 %v1415
        %v1517 = vunpack.c.l.b16 %v1416
        %v1518 = vunpack.c.h.b16 %v1416
        %v1519 = vunpack.c.l.b16 %v1417
        %v1520 = vunpack.c.h.b16 %v1417
        %v1521 = vunpack.c.l.b16 %v1418
        %v1522 = vpack.c.b16 %v1517, %v1512
        %v1523 = vpack.c.b16 %v1518, %v1513
        %v1524 = vpack.c.b16 %v1519, %v1514
        %v1525 = vpack.c.b16 %v1520, %v1515
        %v1526 = vpack.c.b16 %v1521, %v1516
        %v1612 = vunpack.c.l.b16 %v1419
        %v1613 = vunpack.c.l.b16 %v1420
        %v1614 = vunpack.c.l.b16 %v1421
        %v1615 = vunpack.c.l.b16 %v1422
        %v1616 = vunpack.c.l.b16 %v1423
        %v1617 = vunpack.c.l.b16 %v1424
        %v1618 = vunpack.c.l.b16 %v1425
        %v1619 = vunpack.c.l.b16 %v1426
        %v1620 = vunpack.c.l.b16 %v1427
        %v1621 = vunpack.c.l.b16 %v1428
        %v1622 = vunpack.c.l.b16 %v1429
        %v1623 = vunpack.c.l.b16 %v1430
        %v1624 = vunpack.c.l.b16 %v1431
        %v1625 = vunpack.c.l.b16 %v1432
        %v1626 = vunpack.c.l.b16 %v1433
        %v1627 = vunpack.c.l.b16 %v1434
        %v1628 = vunpack.c.l.b16 %v1435
        %v1629 = vunpack.c.l.b16 %v1436
        %v1630 = vunpack.c.l.b16 %v1437
        %v1631 = vunpack.c.l.b16 %v1438
        %v1632 = vunpack.c.l.b16 %v1439
        %v1633 = vunpack.c.l.b16 %v1440
        %v1634 = vunpack.c.l.b16 %v1441
        %v1635 = vunpack.c.l.b16 %v1442
        %v1636 = vunpack.c.l.b16 %v1443
        %v1637 = vunpack.c.l.b16 %v1444
        %v1638 = vunpack.c.l.b16 %v1445
        %v1639 = vunpack.c.l.b16 %v1446
        %v1640 = vunpack.c.l.b16 %v1447
        %v1641 = vunpack.c.l.b16 %v1448
        %v1642 = vunpack.c.l.b16 %v1449
        %v1643 = vunpack.c.l.b16 %v1450
        %v1644 = vunpack.c.l.b16 %v1451
        %v1645 = vunpack.c.l.b16 %v1452
        %v1646 = vunpack.c.l.b16 %v1453
        %v1647 = vunpack.c.l.b16 %v1454
        %v1648 = vunpack.c.l.b16 %v1455
        %v1649 = vunpack.c.l.b16 %v1456
        %v1650 = vunpack.c.l.b16 %v1457
        %v1651 = vunpack.c.l.b16 %v1458
        %v1652 = vunpack.c.l.b16 %v1459
        %v1653 = vunpack.c.l.b16 %v1460
        %v1654 = vunpack.c.l.b16 %v1461
        %v1655 = vunpack.c.l.b16 %v1462
        %v1656 = vunpack.c.l.b16 %v1463
        %v1657 = vunpack.c.l.b16 %v1464
        %v1658 = vunpack.c.l.b16 %v1465
        %v1659 = vunpack.c.l.b16 %v1466
        %v1660 = vunpack.c.l.b16 %v1467
        %v1661 = vunpack.c.l.b16 %v1468
        %v1662 = vunpack.c.l.b16 %v1469
        %v1663 = vunpack.c.l.b16 %v1470
        %v1664 = vunpack.c.l.b16 %v1471
        %v1665 = vunpack.c.l.b16 %v1472
        %v1666 = vunpack.c.l.b16 %v1473
        %v1667 = vunpack.c.l.b16 %v1474
        %v1668 = vunpack.c.l.b16 %v1475
        %v1669 = vunpack.c.l.b16 %v1476
        %v1670 = vunpack.c.l.b16 %v1477
        %v1671 = vunpack.c.l.b16 %v1478
        %v1672 = vunpack.c.l.b16 %v1479
        %v1673 = vunpack.c.l.b16 %v1480
        %v1674 = vunpack.c.l.b16 %v1481
        %v1675 = vunpack.c.l.b16 %v1482
        %v1676 = vunpack.c.l.b16 %v1483
        %v1677 = vunpack.c.l.b16 %v1484
        %v1678 = vunpack.c.l.b16 %v1485
        %v1679 = vunpack.c.l.b16 %v1486
        %v1680 = vunpack.c.l.b16 %v1487
        %v1681 = vunpack.c.l.b16 %v1488
        %v1682 = vunpack.c.l.b16 %v1489
        %v1683 = vunpack.c.l.b16 %v1490
        %v1684 = vunpack.c.l.b16 %v1491
        %v1685 = vunpack.c.l.b16 %v1492
        %v1686 = vunpack.c.l.b16 %v1493
        %v1687 = vunpack.c.l.b16 %v1494
        %v1688 = vunpack.c.l.b16 %v1495
        %v1689 = vunpack.c.l.b16 %v1496
        %v1690 = vunpack.c.l.b16 %v1497
        %v1691 = vunpack.c.l.b16 %v1498
        %v1692 = vpack.c.b16 %v1613, %v1612
        %v1693 = vpack.c.b16 %v1615, %v1614
        %v1694 = vpack.c.b16 %v1617, %v1616
        %v1695 = vpack.c.b16 %v1619, %v1618
        %v1696 = vpack.c.b16 %v1621, %v1620
        %v1697 = vpack.c.b16 %v1623, %v1622
        %v1698 = vpack.c.b16 %v1625, %v1624
        %v1699 = vpack.c.b16 %v1627, %v1626
        %v1700 = vpack.c.b16 %v1629, %v1628
        %v1701 = vpack.c.b16 %v1631, %v1630
        %v1702 = vpack.c.b16 %v1633, %v1632
        %v1703 = vpack.c.b16 %v1635, %v1634
        %v1704 = vpack.c.b16 %v1637, %v1636
        %v1705 = vpack.c.b16 %v1639, %v1638
        %v1706 = vpack.c.b16 %v1641, %v1640
        %v1707 = vpack.c.b16 %v1643, %v1642
        %v1708 = vpack.c.b16 %v1645, %v1644
        %v1709 = vpack.c.b16 %v1647, %v1646
        %v1710 = vpack.c.b16 %v1649, %v1648
        %v1711 = vpack.c.b16 %v1651, %v1650
        %v1712 = vpack.c.b16 %v1653, %v1652
        %v1713 = vpack.c.b16 %v1655, %v1654
        %v1714 = vpack.c.b16 %v1657, %v1656
        %v1715 = vpack.c.b16 %v1659, %v1658
        %v1716 = vpack.c.b16 %v1661, %v1660
        %v1717 = vpack.c.b16 %v1663, %v1662
        %v1718 = vpack.c.b16 %v1665, %v1664
        %v1719 = vpack.c.b16 %v1667, %v1666
        %v1720 = vpack.c.b16 %v1669, %v1668
        %v1721 = vpack.c.b16 %v1671, %v1670
        %v1722 = vpack.c.b16 %v1673, %v1672
        %v1723 = vpack.c.b16 %v1675, %v1674
        %v1724 = vpack.c.b16 %v1677, %v1676
        %v1725 = vpack.c.b16 %v1679, %v1678
        %v1726 = vpack.c.b16 %v1681, %v1680
        %v1727 = vpack.c.b16 %v1683, %v1682
        %v1728 = vpack.c.b16 %v1685, %v1684
        %v1729 = vpack.c.b16 %v1687, %v1686
        %v1730 = vpack.c.b16 %v1689, %v1688
        %v1731 = vpack.c.b16 %v1691, %v1690
        %1772 = vmatprep.subr.bf16.mxu0 0
        %1773 = vmatpush1.bf16.msra.mxu0 %v1692
        %1774 = vmatprep.subr.bf16.mxu0 0
        %1775 = vmatpush1.bf16.msra.mxu0 %v1693
        %1776 = vmatprep.subr.bf16.mxu0 0
        %1777 = vmatpush1.bf16.msra.mxu0 %v1694
        %1778 = vmatprep.subr.bf16.mxu0 0
        %1779 = vmatpush1.bf16.msra.mxu0 %v1695
        %1780 = vmatprep.subr.bf16.mxu0 0
        %1781 = vmatpush1.bf16.msra.mxu0 %v1696
        %1782 = vmatprep.subr.bf16.mxu0 0
        %1783 = vmatpush1.bf16.msra.mxu0 %v1697
        %1784 = vmatprep.subr.bf16.mxu0 0
        %1785 = vmatpush1.bf16.msra.mxu0 %v1698
        %1786 = vmatprep.subr.bf16.mxu0 0
        %1787 = vmatpush1.bf16.msra.mxu0 %v1699
        %1788 = vmatprep.subr.bf16.mxu0 0
        %1789 = vmatpush1.bf16.msra.mxu0 %v1700
        %1790 = vmatprep.subr.bf16.mxu0 0
        %1791 = vmatpush1.bf16.msra.mxu0 %v1701
        %1792 = vmatprep.subr.bf16.mxu0 0
        %1793 = vmatpush1.bf16.msra.mxu0 %v1702
        %1794 = vmatprep.subr.bf16.mxu0 0
        %1795 = vmatpush1.bf16.msra.mxu0 %v1703
        %1796 = vmatprep.subr.bf16.mxu0 0
        %1797 = vmatpush1.bf16.msra.mxu0 %v1704
        %1798 = vmatprep.subr.bf16.mxu0 0
        %1799 = vmatpush1.bf16.msra.mxu0 %v1705
        %1800 = vmatprep.subr.bf16.mxu0 0
        %1801 = vmatpush1.bf16.msra.mxu0 %v1706
        %1802 = vmatprep.subr.bf16.mxu0 0
        %1803 = vmatpush1.bf16.msra.mxu0 %v1707
        %1804 = vmatprep.mubr.bf16.mxu0 %v1523
        %1805 = vmatmul.mubr.bf16.gmra.mrb[0].mxu0 %v1522
        %v1806 = vpop.f32.mrb[0].mxu0
        %v1807 = vadd.f32 %v1504, %v1806
        %v1808 = vpop.f32.mrb[0].mxu0
        %v1809 = vpop.f32.mrb[0].mxu0
        %v1810 = vadd.f32 %v1504, %v1809
        %v1811 = vpop.f32.mrb[0].mxu0
        %1812 = vdwg.mxu0
        %1813 = vmatprep.subr.bf16.mxu0 0
        %1814 = vmatpush1.bf16.msra.mxu0 %v1708
        %1815 = vmatprep.subr.bf16.mxu0 0
        %1816 = vmatpush1.bf16.msra.mxu0 %v1709
        %1817 = vmatprep.subr.bf16.mxu0 0
        %1818 = vmatpush1.bf16.msra.mxu0 %v1710
        %1819 = vmatprep.subr.bf16.mxu0 0
        %1820 = vmatpush1.bf16.msra.mxu0 %v1711
        %1821 = vmatprep.subr.bf16.mxu0 0
        %1822 = vmatpush1.bf16.msra.mxu0 %v1712
        %1823 = vmatprep.subr.bf16.mxu0 0
        %1824 = vmatpush1.bf16.msra.mxu0 %v1713
        %1825 = vmatprep.subr.bf16.mxu0 0
        %1826 = vmatpush1.bf16.msra.mxu0 %v1714
        %1827 = vmatprep.subr.bf16.mxu0 0
        %1828 = vmatpush1.bf16.msra.mxu0 %v1715
        %1829 = vmatprep.subr.bf16.mxu0 0
        %1830 = vmatpush1.bf16.msra.mxu0 %v1716
        %1831 = vmatprep.subr.bf16.mxu0 0
        %1832 = vmatpush1.bf16.msra.mxu0 %v1717
        %1833 = vmatprep.subr.bf16.mxu0 0
        %1834 = vmatpush1.bf16.msra.mxu0 %v1718
        %1835 = vmatprep.subr.bf16.mxu0 0
        %1836 = vmatpush1.bf16.msra.mxu0 %v1719
        %1837 = vmatprep.subr.bf16.mxu0 0
        %1838 = vmatpush1.bf16.msra.mxu0 %v1720
        %1839 = vmatprep.subr.bf16.mxu0 0
        %1840 = vmatpush1.bf16.msra.mxu0 %v1721
        %1841 = vmatprep.subr.bf16.mxu0 0
        %1842 = vmatpush1.bf16.msra.mxu0 %v1722
        %1843 = vmatprep.subr.bf16.mxu0 0
        %1844 = vmatpush1.bf16.msra.mxu0 %v1723
        %1845 = vmatprep.mubr.bf16.mxu0 %v1525
        %1846 = vmatmul.mubr.bf16.gmra.mrb[0].mxu0 %v1524
        %v1847 = vpop.f32.mrb[0].mxu0
        %v1848 = vadd.f32 %v1807, %v1847
        %v1849 = vpop.f32.mrb[0].mxu0
        %v1850 = vpop.f32.mrb[0].mxu0
        %v1851 = vadd.f32 %v1810, %v1850
        %v1852 = vpop.f32.mrb[0].mxu0
        %1853 = vdwg.mxu0
        %1854 = vmatprep.subr.bf16.mxu0 0
        %1855 = vmatpush1.bf16.msra.mxu0 %v1724
        %1856 = vmatprep.subr.bf16.mxu0 0
        %1857 = vmatpush1.bf16.msra.mxu0 %v1725
        %1858 = vmatprep.subr.bf16.mxu0 0
        %1859 = vmatpush1.bf16.msra.mxu0 %v1726
        %1860 = vmatprep.subr.bf16.mxu0 0
        %1861 = vmatpush1.bf16.msra.mxu0 %v1727
        %1862 = vmatprep.subr.bf16.mxu0 0
        %1863 = vmatpush1.bf16.msra.mxu0 %v1728
        %1864 = vmatprep.subr.bf16.mxu0 0
        %1865 = vmatpush1.bf16.msra.mxu0 %v1729
        %1866 = vmatprep.subr.bf16.mxu0 0
        %1867 = vmatpush1.bf16.msra.mxu0 %v1730
        %1868 = vmatprep.subr.bf16.mxu0 0
        %1869 = vmatpush1.bf16.msra.mxu0 %v1731
        %1870 = vmatprep.subr.bf16.mxu0 0
        %1871 = vmatpush1.bf16.msra.mxu0 0
        %1872 = vmatprep.subr.bf16.mxu0 0
        %1873 = vmatpush1.bf16.msra.mxu0 0
        %1874 = vmatprep.subr.bf16.mxu0 0
        %1875 = vmatpush1.bf16.msra.mxu0 0
        %1876 = vmatprep.subr.bf16.mxu0 0
        %1877 = vmatpush1.bf16.msra.mxu0 0
        %1878 = vmatprep.subr.bf16.mxu0 0
        %1879 = vmatpush1.bf16.msra.mxu0 0
        %1880 = vmatprep.subr.bf16.mxu0 0
        %1881 = vmatpush1.bf16.msra.mxu0 0
        %1882 = vmatprep.subr.bf16.mxu0 0
        %1883 = vmatpush1.bf16.msra.mxu0 0
        %1884 = vmatprep.subr.bf16.mxu0 0
        %1885 = vmatpush1.bf16.msra.mxu0 0
        %1886 = vmatprep.mubr.bf16.mxu0 0
        %1887 = vmatmul.mubr.bf16.gmra.mrb[0].mxu0 %v1526
        %v1888 = vpop.f32.mrb[0].mxu0
        %v1889 = vadd.f32 %v1848, %v1888
        %v1890 = vpop.f32.mrb[0].mxu0
        %v1891 = vpop.f32.mrb[0].mxu0
        %v1892 = vadd.f32 %v1851, %v1891
        %v1893 = vpop.f32.mrb[0].mxu0
        %1894 = vdwg.mxu0
        %v1895 = vmax.f32 %v1889, 0.0
        %v1896 = vmax.f32 %v1892, 0.0
        %v1897 = vpack.c.bf16 %v1896, %v1895
        %1898 = vst.msk [vmem:[#allocation3 + $0x8] sm:$0xff] %vm920, %v1897
        %v1899 = vld [vmem:[%s372 + $0x3c] sm:$0xff]
        %v1900 = vld [vmem:[%s372 + $0x44] sm:$0xff]
        %v1901 = vld [vmem:[%s372 + $0x4c] sm:$0xf]
        %v1902 = vld [vmem:[%s372 + $0xdc] sm:$0xff]
        %v1903 = vld [vmem:[%s372 + $0xe4] sm:$0xff]
        %v1904 = vld [vmem:[%s372 + $0xec] sm:$0xf]
        %v1905 = vld [vmem:[%s1] sm:$0xf]
        %v1906 = vld [vmem:[%s1 + $0x4] sm:$0xf]
        %v1907 = vld [vmem:[%s1 + $0x8] sm:$0xf]
        %v1908 = vld [vmem:[%s1 + $0xc] sm:$0xf]
        %v1909 = vld [vmem:[%s1 + $0x10] sm:$0xf]
        %v1910 = vld [vmem:[%s1 + $0x14] sm:$0xf]
        %v1911 = vld [vmem:[%s1 + $0x18] sm:$0xf]
        %v1912 = vld [vmem:[%s1 + $0x1c] sm:$0xf]
        %v1913 = vld [vmem:[%s1 + $0x20] sm:$0xf]
        %v1914 = vld [vmem:[%s1 + $0x24] sm:$0xf]
        %v1915 = vld [vmem:[%s1 + $0x28] sm:$0xf]
        %v1916 = vld [vmem:[%s1 + $0x2c] sm:$0xf]
        %v1917 = vld [vmem:[%s1 + $0x30] sm:$0xf]
        %v1918 = vld [vmem:[%s1 + $0x34] sm:$0xf]
        %v1919 = vld [vmem:[%s1 + $0x38] sm:$0xf]
        %v1920 = vld [vmem:[%s1 + $0x3c] sm:$0xf]
        %v1921 = vld [vmem:[%s1 + $0x40] sm:$0xf]
        %v1922 = vld [vmem:[%s1 + $0x44] sm:$0xf]
        %v1923 = vld [vmem:[%s1 + $0x48] sm:$0xf]
        %v1924 = vld [vmem:[%s1 + $0x4c] sm:$0xf]
        %v1925 = vld [vmem:[%s1 + $0x50] sm:$0xf]
        %v1926 = vld [vmem:[%s1 + $0x54] sm:$0xf]
        %v1927 = vld [vmem:[%s1 + $0x58] sm:$0xf]
        %v1928 = vld [vmem:[%s1 + $0x5c] sm:$0xf]
        %v1929 = vld [vmem:[%s1 + $0x60] sm:$0xf]
        %v1930 = vld [vmem:[%s1 + $0x64] sm:$0xf]
        %v1931 = vld [vmem:[%s1 + $0x68] sm:$0xf]
        %v1932 = vld [vmem:[%s1 + $0x6c] sm:$0xf]
        %v1933 = vld [vmem:[%s1 + $0x70] sm:$0xf]
        %v1934 = vld [vmem:[%s1 + $0x74] sm:$0xf]
        %v1935 = vld [vmem:[%s1 + $0x78] sm:$0xf]
        %v1936 = vld [vmem:[%s1 + $0x7c] sm:$0xf]
        %v1937 = vld [vmem:[%s1 + $0x80] sm:$0xf]
        %v1938 = vld [vmem:[%s1 + $0x84] sm:$0xf]
        %v1939 = vld [vmem:[%s1 + $0x88] sm:$0xf]
        %v1940 = vld [vmem:[%s1 + $0x8c] sm:$0xf]
        %v1941 = vld [vmem:[%s1 + $0x90] sm:$0xf]
        %v1942 = vld [vmem:[%s1 + $0x94] sm:$0xf]
        %v1943 = vld [vmem:[%s1 + $0x98] sm:$0xf]
        %v1944 = vld [vmem:[%s1 + $0x9c] sm:$0xf]
        %v1945 = vld [vmem:[%s1 + $0xa0] sm:$0xf]
        %v1946 = vld [vmem:[%s1 + $0xa4] sm:$0xf]
        %v1947 = vld [vmem:[%s1 + $0xa8] sm:$0xf]
        %v1948 = vld [vmem:[%s1 + $0xac] sm:$0xf]
        %v1949 = vld [vmem:[%s1 + $0xb0] sm:$0xf]
        %v1950 = vld [vmem:[%s1 + $0xb4] sm:$0xf]
        %v1951 = vld [vmem:[%s1 + $0xb8] sm:$0xf]
        %v1952 = vld [vmem:[%s1 + $0xbc] sm:$0xf]
        %v1953 = vld [vmem:[%s1 + $0xc0] sm:$0xf]
        %v1954 = vld [vmem:[%s1 + $0xc4] sm:$0xf]
        %v1955 = vld [vmem:[%s1 + $0xc8] sm:$0xf]
        %v1956 = vld [vmem:[%s1 + $0xcc] sm:$0xf]
        %v1957 = vld [vmem:[%s1 + $0xd0] sm:$0xf]
        %v1958 = vld [vmem:[%s1 + $0xd4] sm:$0xf]
        %v1959 = vld [vmem:[%s1 + $0xd8] sm:$0xf]
        %v1960 = vld [vmem:[%s1 + $0xdc] sm:$0xf]
        %v1961 = vld [vmem:[%s1 + $0xe0] sm:$0xf]
        %v1962 = vld [vmem:[%s1 + $0xe4] sm:$0xf]
        %v1963 = vld [vmem:[%s1 + $0xe8] sm:$0xf]
        %v1964 = vld [vmem:[%s1 + $0xec] sm:$0xf]
        %v1965 = vld [vmem:[%s1 + $0xf0] sm:$0xf]
        %v1966 = vld [vmem:[%s1 + $0xf4] sm:$0xf]
        %v1967 = vld [vmem:[%s1 + $0xf8] sm:$0xf]
        %v1968 = vld [vmem:[%s1 + $0xfc] sm:$0xf]
        %v1969 = vld [vmem:[%s1 + $0x100] sm:$0xf]
        %v1970 = vld [vmem:[%s1 + $0x104] sm:$0xf]
        %v1971 = vld [vmem:[%s1 + $0x108] sm:$0xf]
        %v1972 = vld [vmem:[%s1 + $0x10c] sm:$0xf]
        %v1973 = vld [vmem:[%s1 + $0x110] sm:$0xf]
        %v1974 = vld [vmem:[%s1 + $0x114] sm:$0xf]
        %v1975 = vld [vmem:[%s1 + $0x118] sm:$0xf]
        %v1976 = vld [vmem:[%s1 + $0x11c] sm:$0xf]
        %v1977 = vld [vmem:[%s1 + $0x120] sm:$0xf]
        %v1978 = vld [vmem:[%s1 + $0x124] sm:$0xf]
        %v1979 = vld [vmem:[%s1 + $0x128] sm:$0xf]
        %v1980 = vld [vmem:[%s1 + $0x12c] sm:$0xf]
        %v1981 = vld [vmem:[%s1 + $0x130] sm:$0xf]
        %v1982 = vld [vmem:[%s1 + $0x134] sm:$0xf]
        %v1983 = vld [vmem:[%s1 + $0x138] sm:$0xf]
        %v1984 = vld [vmem:[%s1 + $0x13c] sm:$0xf]
        %v1985 = vld [vmem:[%s2] sm:$0x1]
        %v1987 = vlaneseq
        %v1988 = vshrl.u32 %v1987, 7
        %v1989 = vsub.s32 0, %v1988
        %v1990 = vrot.slane %v1985, %v1989
        %v1998 = vunpack.c.l.b16 %v1899
        %v1999 = vunpack.c.h.b16 %v1899
        %v2000 = vunpack.c.l.b16 %v1900
        %v2001 = vunpack.c.h.b16 %v1900
        %v2002 = vunpack.c.l.b16 %v1901
        %v2003 = vunpack.c.l.b16 %v1902
        %v2004 = vunpack.c.h.b16 %v1902
        %v2005 = vunpack.c.l.b16 %v1903
        %v2006 = vunpack.c.h.b16 %v1903
        %v2007 = vunpack.c.l.b16 %v1904
        %v2008 = vpack.c.b16 %v2003, %v1998
        %v2009 = vpack.c.b16 %v2004, %v1999
        %v2010 = vpack.c.b16 %v2005, %v2000
        %v2011 = vpack.c.b16 %v2006, %v2001
        %v2012 = vpack.c.b16 %v2007, %v2002
        %v2098 = vunpack.c.l.b16 %v1905
        %v2099 = vunpack.c.l.b16 %v1906
        %v2100 = vunpack.c.l.b16 %v1907
        %v2101 = vunpack.c.l.b16 %v1908
        %v2102 = vunpack.c.l.b16 %v1909
        %v2103 = vunpack.c.l.b16 %v1910
        %v2104 = vunpack.c.l.b16 %v1911
        %v2105 = vunpack.c.l.b16 %v1912
        %v2106 = vunpack.c.l.b16 %v1913
        %v2107 = vunpack.c.l.b16 %v1914
        %v2108 = vunpack.c.l.b16 %v1915
        %v2109 = vunpack.c.l.b16 %v1916
        %v2110 = vunpack.c.l.b16 %v1917
        %v2111 = vunpack.c.l.b16 %v1918
        %v2112 = vunpack.c.l.b16 %v1919
        %v2113 = vunpack.c.l.b16 %v1920
        %v2114 = vunpack.c.l.b16 %v1921
        %v2115 = vunpack.c.l.b16 %v1922
        %v2116 = vunpack.c.l.b16 %v1923
        %v2117 = vunpack.c.l.b16 %v1924
        %v2118 = vunpack.c.l.b16 %v1925
        %v2119 = vunpack.c.l.b16 %v1926
        %v2120 = vunpack.c.l.b16 %v1927
        %v2121 = vunpack.c.l.b16 %v1928
        %v2122 = vunpack.c.l.b16 %v1929
        %v2123 = vunpack.c.l.b16 %v1930
        %v2124 = vunpack.c.l.b16 %v1931
        %v2125 = vunpack.c.l.b16 %v1932
        %v2126 = vunpack.c.l.b16 %v1933
        %v2127 = vunpack.c.l.b16 %v1934
        %v2128 = vunpack.c.l.b16 %v1935
        %v2129 = vunpack.c.l.b16 %v1936
        %v2130 = vunpack.c.l.b16 %v1937
        %v2131 = vunpack.c.l.b16 %v1938
        %v2132 = vunpack.c.l.b16 %v1939
        %v2133 = vunpack.c.l.b16 %v1940
        %v2134 = vunpack.c.l.b16 %v1941
        %v2135 = vunpack.c.l.b16 %v1942
        %v2136 = vunpack.c.l.b16 %v1943
        %v2137 = vunpack.c.l.b16 %v1944
        %v2138 = vunpack.c.l.b16 %v1945
        %v2139 = vunpack.c.l.b16 %v1946
        %v2140 = vunpack.c.l.b16 %v1947
        %v2141 = vunpack.c.l.b16 %v1948
        %v2142 = vunpack.c.l.b16 %v1949
        %v2143 = vunpack.c.l.b16 %v1950
        %v2144 = vunpack.c.l.b16 %v1951
        %v2145 = vunpack.c.l.b16 %v1952
        %v2146 = vunpack.c.l.b16 %v1953
        %v2147 = vunpack.c.l.b16 %v1954
        %v2148 = vunpack.c.l.b16 %v1955
        %v2149 = vunpack.c.l.b16 %v1956
        %v2150 = vunpack.c.l.b16 %v1957
        %v2151 = vunpack.c.l.b16 %v1958
        %v2152 = vunpack.c.l.b16 %v1959
        %v2153 = vunpack.c.l.b16 %v1960
        %v2154 = vunpack.c.l.b16 %v1961
        %v2155 = vunpack.c.l.b16 %v1962
        %v2156 = vunpack.c.l.b16 %v1963
        %v2157 = vunpack.c.l.b16 %v1964
        %v2158 = vunpack.c.l.b16 %v1965
        %v2159 = vunpack.c.l.b16 %v1966
        %v2160 = vunpack.c.l.b16 %v1967
        %v2161 = vunpack.c.l.b16 %v1968
        %v2162 = vunpack.c.l.b16 %v1969
        %v2163 = vunpack.c.l.b16 %v1970
        %v2164 = vunpack.c.l.b16 %v1971
        %v2165 = vunpack.c.l.b16 %v1972
        %v2166 = vunpack.c.l.b16 %v1973
        %v2167 = vunpack.c.l.b16 %v1974
        %v2168 = vunpack.c.l.b16 %v1975
        %v2169 = vunpack.c.l.b16 %v1976
        %v2170 = vunpack.c.l.b16 %v1977
        %v2171 = vunpack.c.l.b16 %v1978
        %v2172 = vunpack.c.l.b16 %v1979
        %v2173 = vunpack.c.l.b16 %v1980
        %v2174 = vunpack.c.l.b16 %v1981
        %v2175 = vunpack.c.l.b16 %v1982
        %v2176 = vunpack.c.l.b16 %v1983
        %v2177 = vunpack.c.l.b16 %v1984
        %v2178 = vpack.c.b16 %v2099, %v2098
        %v2179 = vpack.c.b16 %v2101, %v2100
        %v2180 = vpack.c.b16 %v2103, %v2102
        %v2181 = vpack.c.b16 %v2105, %v2104
        %v2182 = vpack.c.b16 %v2107, %v2106
        %v2183 = vpack.c.b16 %v2109, %v2108
        %v2184 = vpack.c.b16 %v2111, %v2110
        %v2185 = vpack.c.b16 %v2113, %v2112
        %v2186 = vpack.c.b16 %v2115, %v2114
        %v2187 = vpack.c.b16 %v2117, %v2116
        %v2188 = vpack.c.b16 %v2119, %v2118
        %v2189 = vpack.c.b16 %v2121, %v2120
        %v2190 = vpack.c.b16 %v2123, %v2122
        %v2191 = vpack.c.b16 %v2125, %v2124
        %v2192 = vpack.c.b16 %v2127, %v2126
        %v2193 = vpack.c.b16 %v2129, %v2128
        %v2194 = vpack.c.b16 %v2131, %v2130
        %v2195 = vpack.c.b16 %v2133, %v2132
        %v2196 = vpack.c.b16 %v2135, %v2134
        %v2197 = vpack.c.b16 %v2137, %v2136
        %v2198 = vpack.c.b16 %v2139, %v2138
        %v2199 = vpack.c.b16 %v2141, %v2140
        %v2200 = vpack.c.b16 %v2143, %v2142
        %v2201 = vpack.c.b16 %v2145, %v2144
        %v2202 = vpack.c.b16 %v2147, %v2146
        %v2203 = vpack.c.b16 %v2149, %v2148
        %v2204 = vpack.c.b16 %v2151, %v2150
        %v2205 = vpack.c.b16 %v2153, %v2152
        %v2206 = vpack.c.b16 %v2155, %v2154
        %v2207 = vpack.c.b16 %v2157, %v2156
        %v2208 = vpack.c.b16 %v2159, %v2158
        %v2209 = vpack.c.b16 %v2161, %v2160
        %v2210 = vpack.c.b16 %v2163, %v2162
        %v2211 = vpack.c.b16 %v2165, %v2164
        %v2212 = vpack.c.b16 %v2167, %v2166
        %v2213 = vpack.c.b16 %v2169, %v2168
        %v2214 = vpack.c.b16 %v2171, %v2170
        %v2215 = vpack.c.b16 %v2173, %v2172
        %v2216 = vpack.c.b16 %v2175, %v2174
        %v2217 = vpack.c.b16 %v2177, %v2176
        %2258 = vmatprep.subr.bf16.mxu0 0
        %2259 = vmatpush1.bf16.msra.mxu0 %v2178
        %2260 = vmatprep.subr.bf16.mxu0 0
        %2261 = vmatpush1.bf16.msra.mxu0 %v2179
        %2262 = vmatprep.subr.bf16.mxu0 0
        %2263 = vmatpush1.bf16.msra.mxu0 %v2180
        %2264 = vmatprep.subr.bf16.mxu0 0
        %2265 = vmatpush1.bf16.msra.mxu0 %v2181
        %2266 = vmatprep.subr.bf16.mxu0 0
        %2267 = vmatpush1.bf16.msra.mxu0 %v2182
        %2268 = vmatprep.subr.bf16.mxu0 0
        %2269 = vmatpush1.bf16.msra.mxu0 %v2183
        %2270 = vmatprep.subr.bf16.mxu0 0
        %2271 = vmatpush1.bf16.msra.mxu0 %v2184
        %2272 = vmatprep.subr.bf16.mxu0 0
        %2273 = vmatpush1.bf16.msra.mxu0 %v2185
        %2274 = vmatprep.subr.bf16.mxu0 0
        %2275 = vmatpush1.bf16.msra.mxu0 %v2186
        %2276 = vmatprep.subr.bf16.mxu0 0
        %2277 = vmatpush1.bf16.msra.mxu0 %v2187
        %2278 = vmatprep.subr.bf16.mxu0 0
        %2279 = vmatpush1.bf16.msra.mxu0 %v2188
        %2280 = vmatprep.subr.bf16.mxu0 0
        %2281 = vmatpush1.bf16.msra.mxu0 %v2189
        %2282 = vmatprep.subr.bf16.mxu0 0
        %2283 = vmatpush1.bf16.msra.mxu0 %v2190
        %2284 = vmatprep.subr.bf16.mxu0 0
        %2285 = vmatpush1.bf16.msra.mxu0 %v2191
        %2286 = vmatprep.subr.bf16.mxu0 0
        %2287 = vmatpush1.bf16.msra.mxu0 %v2192
        %2288 = vmatprep.subr.bf16.mxu0 0
        %2289 = vmatpush1.bf16.msra.mxu0 %v2193
        %2290 = vmatprep.mubr.bf16.mxu0 %v2009
        %2291 = vmatmul.mubr.bf16.gmra.mrb[0].mxu0 %v2008
        %v2292 = vpop.f32.mrb[0].mxu0
        %v2293 = vadd.f32 %v1990, %v2292
        %v2294 = vpop.f32.mrb[0].mxu0
        %v2295 = vpop.f32.mrb[0].mxu0
        %v2296 = vadd.f32 %v1990, %v2295
        %v2297 = vpop.f32.mrb[0].mxu0
        %2298 = vdwg.mxu0
        %2299 = vmatprep.subr.bf16.mxu0 0
        %2300 = vmatpush1.bf16.msra.mxu0 %v2194
        %2301 = vmatprep.subr.bf16.mxu0 0
        %2302 = vmatpush1.bf16.msra.mxu0 %v2195
        %2303 = vmatprep.subr.bf16.mxu0 0
        %2304 = vmatpush1.bf16.msra.mxu0 %v2196
        %2305 = vmatprep.subr.bf16.mxu0 0
        %2306 = vmatpush1.bf16.msra.mxu0 %v2197
        %2307 = vmatprep.subr.bf16.mxu0 0
        %2308 = vmatpush1.bf16.msra.mxu0 %v2198
        %2309 = vmatprep.subr.bf16.mxu0 0
        %2310 = vmatpush1.bf16.msra.mxu0 %v2199
        %2311 = vmatprep.subr.bf16.mxu0 0
        %2312 = vmatpush1.bf16.msra.mxu0 %v2200
        %2313 = vmatprep.subr.bf16.mxu0 0
        %2314 = vmatpush1.bf16.msra.mxu0 %v2201
        %2315 = vmatprep.subr.bf16.mxu0 0
        %2316 = vmatpush1.bf16.msra.mxu0 %v2202
        %2317 = vmatprep.subr.bf16.mxu0 0
        %2318 = vmatpush1.bf16.msra.mxu0 %v2203
        %2319 = vmatprep.subr.bf16.mxu0 0
        %2320 = vmatpush1.bf16.msra.mxu0 %v2204
        %2321 = vmatprep.subr.bf16.mxu0 0
        %2322 = vmatpush1.bf16.msra.mxu0 %v2205
        %2323 = vmatprep.subr.bf16.mxu0 0
        %2324 = vmatpush1.bf16.msra.mxu0 %v2206
        %2325 = vmatprep.subr.bf16.mxu0 0
        %2326 = vmatpush1.bf16.msra.mxu0 %v2207
        %2327 = vmatprep.subr.bf16.mxu0 0
        %2328 = vmatpush1.bf16.msra.mxu0 %v2208
        %2329 = vmatprep.subr.bf16.mxu0 0
        %2330 = vmatpush1.bf16.msra.mxu0 %v2209
        %2331 = vmatprep.mubr.bf16.mxu0 %v2011
        %2332 = vmatmul.mubr.bf16.gmra.mrb[0].mxu0 %v2010
        %v2333 = vpop.f32.mrb[0].mxu0
        %v2334 = vadd.f32 %v2293, %v2333
        %v2335 = vpop.f32.mrb[0].mxu0
        %v2336 = vpop.f32.mrb[0].mxu0
        %v2337 = vadd.f32 %v2296, %v2336
        %v2338 = vpop.f32.mrb[0].mxu0
        %2339 = vdwg.mxu0
        %2340 = vmatprep.subr.bf16.mxu0 0
        %2341 = vmatpush1.bf16.msra.mxu0 %v2210
        %2342 = vmatprep.subr.bf16.mxu0 0
        %2343 = vmatpush1.bf16.msra.mxu0 %v2211
        %2344 = vmatprep.subr.bf16.mxu0 0
        %2345 = vmatpush1.bf16.msra.mxu0 %v2212
        %2346 = vmatprep.subr.bf16.mxu0 0
        %2347 = vmatpush1.bf16.msra.mxu0 %v2213
        %2348 = vmatprep.subr.bf16.mxu0 0
        %2349 = vmatpush1.bf16.msra.mxu0 %v2214
        %2350 = vmatprep.subr.bf16.mxu0 0
        %2351 = vmatpush1.bf16.msra.mxu0 %v2215
        %2352 = vmatprep.subr.bf16.mxu0 0
        %2353 = vmatpush1.bf16.msra.mxu0 %v2216
        %2354 = vmatprep.subr.bf16.mxu0 0
        %2355 = vmatpush1.bf16.msra.mxu0 %v2217
        %2356 = vmatprep.subr.bf16.mxu0 0
        %2357 = vmatpush1.bf16.msra.mxu0 0
        %2358 = vmatprep.subr.bf16.mxu0 0
        %2359 = vmatpush1.bf16.msra.mxu0 0
        %2360 = vmatprep.subr.bf16.mxu0 0
        %2361 = vmatpush1.bf16.msra.mxu0 0
        %2362 = vmatprep.subr.bf16.mxu0 0
        %2363 = vmatpush1.bf16.msra.mxu0 0
        %2364 = vmatprep.subr.bf16.mxu0 0
        %2365 = vmatpush1.bf16.msra.mxu0 0
        %2366 = vmatprep.subr.bf16.mxu0 0
        %2367 = vmatpush1.bf16.msra.mxu0 0
        %2368 = vmatprep.subr.bf16.mxu0 0
        %2369 = vmatpush1.bf16.msra.mxu0 0
        %2370 = vmatprep.subr.bf16.mxu0 0
        %2371 = vmatpush1.bf16.msra.mxu0 0
        %2372 = vmatprep.mubr.bf16.mxu0 0
        %2373 = vmatmul.mubr.bf16.gmra.mrb[0].mxu0 %v2012
        %v2374 = vpop.f32.mrb[0].mxu0
        %v2375 = vadd.f32 %v2334, %v2374
        %v2376 = vpop.f32.mrb[0].mxu0
        %v2377 = vpop.f32.mrb[0].mxu0
        %v2378 = vadd.f32 %v2337, %v2377
        %v2379 = vpop.f32.mrb[0].mxu0
        %2380 = vdwg.mxu0
        %v2381 = vmax.f32 %v2375, 0.0
        %v2382 = vmax.f32 %v2378, 0.0
        %v2383 = vpack.c.bf16 %v2382, %v2381
        %2385 = vrot.lane.b32.xlu0 %v2383, 64
        %v2386 = vpop.permute.xlu0 %2385
        %2388 = vst.msk [vmem:[#allocation3 + $0x8] sm:$0xff] %vm1411, %v2386
        %v2389 = vld [vmem:[%s372 + $0x50] sm:$0xff]
        %v2390 = vld [vmem:[%s372 + $0x58] sm:$0xff]
        %v2391 = vld [vmem:[%s372 + $0x60] sm:$0xf]
        %v2392 = vld [vmem:[%s372 + $0xf0] sm:$0xff]
        %v2393 = vld [vmem:[%s372 + $0xf8] sm:$0xff]
        %v2394 = vld [vmem:[%s372 + $0x100] sm:$0xf]
        %v2395 = vld [vmem:[%s1] sm:$0xf]
        %v2396 = vld [vmem:[%s1 + $0x4] sm:$0xf]
        %v2397 = vld [vmem:[%s1 + $0x8] sm:$0xf]
        %v2398 = vld [vmem:[%s1 + $0xc] sm:$0xf]
        %v2399 = vld [vmem:[%s1 + $0x10] sm:$0xf]
        %v2400 = vld [vmem:[%s1 + $0x14] sm:$0xf]
        %v2401 = vld [vmem:[%s1 + $0x18] sm:$0xf]
        %v2402 = vld [vmem:[%s1 + $0x1c] sm:$0xf]
        %v2403 = vld [vmem:[%s1 + $0x20] sm:$0xf]
        %v2404 = vld [vmem:[%s1 + $0x24] sm:$0xf]
        %v2405 = vld [vmem:[%s1 + $0x28] sm:$0xf]
        %v2406 = vld [vmem:[%s1 + $0x2c] sm:$0xf]
        %v2407 = vld [vmem:[%s1 + $0x30] sm:$0xf]
        %v2408 = vld [vmem:[%s1 + $0x34] sm:$0xf]
        %v2409 = vld [vmem:[%s1 + $0x38] sm:$0xf]
        %v2410 = vld [vmem:[%s1 + $0x3c] sm:$0xf]
        %v2411 = vld [vmem:[%s1 + $0x40] sm:$0xf]
        %v2412 = vld [vmem:[%s1 + $0x44] sm:$0xf]
        %v2413 = vld [vmem:[%s1 + $0x48] sm:$0xf]
        %v2414 = vld [vmem:[%s1 + $0x4c] sm:$0xf]
        %v2415 = vld [vmem:[%s1 + $0x50] sm:$0xf]
        %v2416 = vld [vmem:[%s1 + $0x54] sm:$0xf]
        %v2417 = vld [vmem:[%s1 + $0x58] sm:$0xf]
        %v2418 = vld [vmem:[%s1 + $0x5c] sm:$0xf]
        %v2419 = vld [vmem:[%s1 + $0x60] sm:$0xf]
        %v2420 = vld [vmem:[%s1 + $0x64] sm:$0xf]
        %v2421 = vld [vmem:[%s1 + $0x68] sm:$0xf]
        %v2422 = vld [vmem:[%s1 + $0x6c] sm:$0xf]
        %v2423 = vld [vmem:[%s1 + $0x70] sm:$0xf]
        %v2424 = vld [vmem:[%s1 + $0x74] sm:$0xf]
        %v2425 = vld [vmem:[%s1 + $0x78] sm:$0xf]
        %v2426 = vld [vmem:[%s1 + $0x7c] sm:$0xf]
        %v2427 = vld [vmem:[%s1 + $0x80] sm:$0xf]
        %v2428 = vld [vmem:[%s1 + $0x84] sm:$0xf]
        %v2429 = vld [vmem:[%s1 + $0x88] sm:$0xf]
        %v2430 = vld [vmem:[%s1 + $0x8c] sm:$0xf]
        %v2431 = vld [vmem:[%s1 + $0x90] sm:$0xf]
        %v2432 = vld [vmem:[%s1 + $0x94] sm:$0xf]
        %v2433 = vld [vmem:[%s1 + $0x98] sm:$0xf]
        %v2434 = vld [vmem:[%s1 + $0x9c] sm:$0xf]
        %v2435 = vld [vmem:[%s1 + $0xa0] sm:$0xf]
        %v2436 = vld [vmem:[%s1 + $0xa4] sm:$0xf]
        %v2437 = vld [vmem:[%s1 + $0xa8] sm:$0xf]
        %v2438 = vld [vmem:[%s1 + $0xac] sm:$0xf]
        %v2439 = vld [vmem:[%s1 + $0xb0] sm:$0xf]
        %v2440 = vld [vmem:[%s1 + $0xb4] sm:$0xf]
        %v2441 = vld [vmem:[%s1 + $0xb8] sm:$0xf]
        %v2442 = vld [vmem:[%s1 + $0xbc] sm:$0xf]
        %v2443 = vld [vmem:[%s1 + $0xc0] sm:$0xf]
        %v2444 = vld [vmem:[%s1 + $0xc4] sm:$0xf]
        %v2445 = vld [vmem:[%s1 + $0xc8] sm:$0xf]
        %v2446 = vld [vmem:[%s1 + $0xcc] sm:$0xf]
        %v2447 = vld [vmem:[%s1 + $0xd0] sm:$0xf]
        %v2448 = vld [vmem:[%s1 + $0xd4] sm:$0xf]
        %v2449 = vld [vmem:[%s1 + $0xd8] sm:$0xf]
        %v2450 = vld [vmem:[%s1 + $0xdc] sm:$0xf]
        %v2451 = vld [vmem:[%s1 + $0xe0] sm:$0xf]
        %v2452 = vld [vmem:[%s1 + $0xe4] sm:$0xf]
        %v2453 = vld [vmem:[%s1 + $0xe8] sm:$0xf]
        %v2454 = vld [vmem:[%s1 + $0xec] sm:$0xf]
        %v2455 = vld [vmem:[%s1 + $0xf0] sm:$0xf]
        %v2456 = vld [vmem:[%s1 + $0xf4] sm:$0xf]
        %v2457 = vld [vmem:[%s1 + $0xf8] sm:$0xf]
        %v2458 = vld [vmem:[%s1 + $0xfc] sm:$0xf]
        %v2459 = vld [vmem:[%s1 + $0x100] sm:$0xf]
        %v2460 = vld [vmem:[%s1 + $0x104] sm:$0xf]
        %v2461 = vld [vmem:[%s1 + $0x108] sm:$0xf]
        %v2462 = vld [vmem:[%s1 + $0x10c] sm:$0xf]
        %v2463 = vld [vmem:[%s1 + $0x110] sm:$0xf]
        %v2464 = vld [vmem:[%s1 + $0x114] sm:$0xf]
        %v2465 = vld [vmem:[%s1 + $0x118] sm:$0xf]
        %v2466 = vld [vmem:[%s1 + $0x11c] sm:$0xf]
        %v2467 = vld [vmem:[%s1 + $0x120] sm:$0xf]
        %v2468 = vld [vmem:[%s1 + $0x124] sm:$0xf]
        %v2469 = vld [vmem:[%s1 + $0x128] sm:$0xf]
        %v2470 = vld [vmem:[%s1 + $0x12c] sm:$0xf]
        %v2471 = vld [vmem:[%s1 + $0x130] sm:$0xf]
        %v2472 = vld [vmem:[%s1 + $0x134] sm:$0xf]
        %v2473 = vld [vmem:[%s1 + $0x138] sm:$0xf]
        %v2474 = vld [vmem:[%s1 + $0x13c] sm:$0xf]
        %v2475 = vld [vmem:[%s2] sm:$0x1]
        %v2477 = vlaneseq
        %v2478 = vshrl.u32 %v2477, 7
        %v2479 = vsub.s32 0, %v2478
        %v2480 = vrot.slane %v2475, %v2479
        %v2488 = vunpack.c.l.b16 %v2389
        %v2489 = vunpack.c.h.b16 %v2389
        %v2490 = vunpack.c.l.b16 %v2390
        %v2491 = vunpack.c.h.b16 %v2390
        %v2492 = vunpack.c.l.b16 %v2391
        %v2493 = vunpack.c.l.b16 %v2392
        %v2494 = vunpack.c.h.b16 %v2392
        %v2495 = vunpack.c.l.b16 %v2393
        %v2496 = vunpack.c.h.b16 %v2393
        %v2497 = vunpack.c.l.b16 %v2394
        %v2498 = vpack.c.b16 %v2493, %v2488
        %v2499 = vpack.c.b16 %v2494, %v2489
        %v2500 = vpack.c.b16 %v2495, %v2490
        %v2501 = vpack.c.b16 %v2496, %v2491
        %v2502 = vpack.c.b16 %v2497, %v2492
        %v2588 = vunpack.c.l.b16 %v2395
        %v2589 = vunpack.c.l.b16 %v2396
        %v2590 = vunpack.c.l.b16 %v2397
        %v2591 = vunpack.c.l.b16 %v2398
        %v2592 = vunpack.c.l.b16 %v2399
        %v2593 = vunpack.c.l.b16 %v2400
        %v2594 = vunpack.c.l.b16 %v2401
        %v2595 = vunpack.c.l.b16 %v2402
        %v2596 = vunpack.c.l.b16 %v2403
        %v2597 = vunpack.c.l.b16 %v2404
        %v2598 = vunpack.c.l.b16 %v2405
        %v2599 = vunpack.c.l.b16 %v2406
        %v2600 = vunpack.c.l.b16 %v2407
        %v2601 = vunpack.c.l.b16 %v2408
        %v2602 = vunpack.c.l.b16 %v2409
        %v2603 = vunpack.c.l.b16 %v2410
        %v2604 = vunpack.c.l.b16 %v2411
        %v2605 = vunpack.c.l.b16 %v2412
        %v2606 = vunpack.c.l.b16 %v2413
        %v2607 = vunpack.c.l.b16 %v2414
        %v2608 = vunpack.c.l.b16 %v2415
        %v2609 = vunpack.c.l.b16 %v2416
        %v2610 = vunpack.c.l.b16 %v2417
        %v2611 = vunpack.c.l.b16 %v2418
        %v2612 = vunpack.c.l.b16 %v2419
        %v2613 = vunpack.c.l.b16 %v2420
        %v2614 = vunpack.c.l.b16 %v2421
        %v2615 = vunpack.c.l.b16 %v2422
        %v2616 = vunpack.c.l.b16 %v2423
        %v2617 = vunpack.c.l.b16 %v2424
        %v2618 = vunpack.c.l.b16 %v2425
        %v2619 = vunpack.c.l.b16 %v2426
        %v2620 = vunpack.c.l.b16 %v2427
        %v2621 = vunpack.c.l.b16 %v2428
        %v2622 = vunpack.c.l.b16 %v2429
        %v2623 = vunpack.c.l.b16 %v2430
        %v2624 = vunpack.c.l.b16 %v2431
        %v2625 = vunpack.c.l.b16 %v2432
        %v2626 = vunpack.c.l.b16 %v2433
        %v2627 = vunpack.c.l.b16 %v2434
        %v2628 = vunpack.c.l.b16 %v2435
        %v2629 = vunpack.c.l.b16 %v2436
        %v2630 = vunpack.c.l.b16 %v2437
        %v2631 = vunpack.c.l.b16 %v2438
        %v2632 = vunpack.c.l.b16 %v2439
        %v2633 = vunpack.c.l.b16 %v2440
        %v2634 = vunpack.c.l.b16 %v2441
        %v2635 = vunpack.c.l.b16 %v2442
        %v2636 = vunpack.c.l.b16 %v2443
        %v2637 = vunpack.c.l.b16 %v2444
        %v2638 = vunpack.c.l.b16 %v2445
        %v2639 = vunpack.c.l.b16 %v2446
        %v2640 = vunpack.c.l.b16 %v2447
        %v2641 = vunpack.c.l.b16 %v2448
        %v2642 = vunpack.c.l.b16 %v2449
        %v2643 = vunpack.c.l.b16 %v2450
        %v2644 = vunpack.c.l.b16 %v2451
        %v2645 = vunpack.c.l.b16 %v2452
        %v2646 = vunpack.c.l.b16 %v2453
        %v2647 = vunpack.c.l.b16 %v2454
        %v2648 = vunpack.c.l.b16 %v2455
        %v2649 = vunpack.c.l.b16 %v2456
        %v2650 = vunpack.c.l.b16 %v2457
        %v2651 = vunpack.c.l.b16 %v2458
        %v2652 = vunpack.c.l.b16 %v2459
        %v2653 = vunpack.c.l.b16 %v2460
        %v2654 = vunpack.c.l.b16 %v2461
        %v2655 = vunpack.c.l.b16 %v2462
        %v2656 = vunpack.c.l.b16 %v2463
        %v2657 = vunpack.c.l.b16 %v2464
        %v2658 = vunpack.c.l.b16 %v2465
        %v2659 = vunpack.c.l.b16 %v2466
        %v2660 = vunpack.c.l.b16 %v2467
        %v2661 = vunpack.c.l.b16 %v2468
        %v2662 = vunpack.c.l.b16 %v2469
        %v2663 = vunpack.c.l.b16 %v2470
        %v2664 = vunpack.c.l.b16 %v2471
        %v2665 = vunpack.c.l.b16 %v2472
        %v2666 = vunpack.c.l.b16 %v2473
        %v2667 = vunpack.c.l.b16 %v2474
        %v2668 = vpack.c.b16 %v2589, %v2588
        %v2669 = vpack.c.b16 %v2591, %v2590
        %v2670 = vpack.c.b16 %v2593, %v2592
        %v2671 = vpack.c.b16 %v2595, %v2594
        %v2672 = vpack.c.b16 %v2597, %v2596
        %v2673 = vpack.c.b16 %v2599, %v2598
        %v2674 = vpack.c.b16 %v2601, %v2600
        %v2675 = vpack.c.b16 %v2603, %v2602
        %v2676 = vpack.c.b16 %v2605, %v2604
        %v2677 = vpack.c.b16 %v2607, %v2606
        %v2678 = vpack.c.b16 %v2609, %v2608
        %v2679 = vpack.c.b16 %v2611, %v2610
        %v2680 = vpack.c.b16 %v2613, %v2612
        %v2681 = vpack.c.b16 %v2615, %v2614
        %v2682 = vpack.c.b16 %v2617, %v2616
        %v2683 = vpack.c.b16 %v2619, %v2618
        %v2684 = vpack.c.b16 %v2621, %v2620
        %v2685 = vpack.c.b16 %v2623, %v2622
        %v2686 = vpack.c.b16 %v2625, %v2624
        %v2687 = vpack.c.b16 %v2627, %v2626
        %v2688 = vpack.c.b16 %v2629, %v2628
        %v2689 = vpack.c.b16 %v2631, %v2630
        %v2690 = vpack.c.b16 %v2633, %v2632
        %v2691 = vpack.c.b16 %v2635, %v2634
        %v2692 = vpack.c.b16 %v2637, %v2636
        %v2693 = vpack.c.b16 %v2639, %v2638
        %v2694 = vpack.c.b16 %v2641, %v2640
        %v2695 = vpack.c.b16 %v2643, %v2642
        %v2696 = vpack.c.b16 %v2645, %v2644
        %v2697 = vpack.c.b16 %v2647, %v2646
        %v2698 = vpack.c.b16 %v2649, %v2648
        %v2699 = vpack.c.b16 %v2651, %v2650
        %v2700 = vpack.c.b16 %v2653, %v2652
        %v2701 = vpack.c.b16 %v2655, %v2654
        %v2702 = vpack.c.b16 %v2657, %v2656
        %v2703 = vpack.c.b16 %v2659, %v2658
        %v2704 = vpack.c.b16 %v2661, %v2660
        %v2705 = vpack.c.b16 %v2663, %v2662
        %v2706 = vpack.c.b16 %v2665, %v2664
        %v2707 = vpack.c.b16 %v2667, %v2666
        %2748 = vmatprep.subr.bf16.mxu0 0
        %2749 = vmatpush1.bf16.msra.mxu0 %v2668
        %2750 = vmatprep.subr.bf16.mxu0 0
        %2751 = vmatpush1.bf16.msra.mxu0 %v2669
        %2752 = vmatprep.subr.bf16.mxu0 0
        %2753 = vmatpush1.bf16.msra.mxu0 %v2670
        %2754 = vmatprep.subr.bf16.mxu0 0
        %2755 = vmatpush1.bf16.msra.mxu0 %v2671
        %2756 = vmatprep.subr.bf16.mxu0 0
        %2757 = vmatpush1.bf16.msra.mxu0 %v2672
        %2758 = vmatprep.subr.bf16.mxu0 0
        %2759 = vmatpush1.bf16.msra.mxu0 %v2673
        %2760 = vmatprep.subr.bf16.mxu0 0
        %2761 = vmatpush1.bf16.msra.mxu0 %v2674
        %2762 = vmatprep.subr.bf16.mxu0 0
        %2763 = vmatpush1.bf16.msra.mxu0 %v2675
        %2764 = vmatprep.subr.bf16.mxu0 0
        %2765 = vmatpush1.bf16.msra.mxu0 %v2676
        %2766 = vmatprep.subr.bf16.mxu0 0
        %2767 = vmatpush1.bf16.msra.mxu0 %v2677
        %2768 = vmatprep.subr.bf16.mxu0 0
        %2769 = vmatpush1.bf16.msra.mxu0 %v2678
        %2770 = vmatprep.subr.bf16.mxu0 0
        %2771 = vmatpush1.bf16.msra.mxu0 %v2679
        %2772 = vmatprep.subr.bf16.mxu0 0
        %2773 = vmatpush1.bf16.msra.mxu0 %v2680
        %2774 = vmatprep.subr.bf16.mxu0 0
        %2775 = vmatpush1.bf16.msra.mxu0 %v2681
        %2776 = vmatprep.subr.bf16.mxu0 0
        %2777 = vmatpush1.bf16.msra.mxu0 %v2682
        %2778 = vmatprep.subr.bf16.mxu0 0
        %2779 = vmatpush1.bf16.msra.mxu0 %v2683
        %2780 = vmatprep.mubr.bf16.mxu0 %v2499
        %2781 = vmatmul.mubr.bf16.gmra.mrb[0].mxu0 %v2498
        %v2782 = vpop.f32.mrb[0].mxu0
        %v2783 = vadd.f32 %v2480, %v2782
        %v2784 = vpop.f32.mrb[0].mxu0
        %v2785 = vpop.f32.mrb[0].mxu0
        %v2786 = vadd.f32 %v2480, %v2785
        %v2787 = vpop.f32.mrb[0].mxu0
        %2788 = vdwg.mxu0
        %2789 = vmatprep.subr.bf16.mxu0 0
        %2790 = vmatpush1.bf16.msra.mxu0 %v2684
        %2791 = vmatprep.subr.bf16.mxu0 0
        %2792 = vmatpush1.bf16.msra.mxu0 %v2685
        %2793 = vmatprep.subr.bf16.mxu0 0
        %2794 = vmatpush1.bf16.msra.mxu0 %v2686
        %2795 = vmatprep.subr.bf16.mxu0 0
        %2796 = vmatpush1.bf16.msra.mxu0 %v2687
        %2797 = vmatprep.subr.bf16.mxu0 0
        %2798 = vmatpush1.bf16.msra.mxu0 %v2688
        %2799 = vmatprep.subr.bf16.mxu0 0
        %2800 = vmatpush1.bf16.msra.mxu0 %v2689
        %2801 = vmatprep.subr.bf16.mxu0 0
        %2802 = vmatpush1.bf16.msra.mxu0 %v2690
        %2803 = vmatprep.subr.bf16.mxu0 0
        %2804 = vmatpush1.bf16.msra.mxu0 %v2691
        %2805 = vmatprep.subr.bf16.mxu0 0
        %2806 = vmatpush1.bf16.msra.mxu0 %v2692
        %2807 = vmatprep.subr.bf16.mxu0 0
        %2808 = vmatpush1.bf16.msra.mxu0 %v2693
        %2809 = vmatprep.subr.bf16.mxu0 0
        %2810 = vmatpush1.bf16.msra.mxu0 %v2694
        %2811 = vmatprep.subr.bf16.mxu0 0
        %2812 = vmatpush1.bf16.msra.mxu0 %v2695
        %2813 = vmatprep.subr.bf16.mxu0 0
        %2814 = vmatpush1.bf16.msra.mxu0 %v2696
        %2815 = vmatprep.subr.bf16.mxu0 0
        %2816 = vmatpush1.bf16.msra.mxu0 %v2697
        %2817 = vmatprep.subr.bf16.mxu0 0
        %2818 = vmatpush1.bf16.msra.mxu0 %v2698
        %2819 = vmatprep.subr.bf16.mxu0 0
        %2820 = vmatpush1.bf16.msra.mxu0 %v2699
        %2821 = vmatprep.mubr.bf16.mxu0 %v2501
        %2822 = vmatmul.mubr.bf16.gmra.mrb[0].mxu0 %v2500
        %v2823 = vpop.f32.mrb[0].mxu0
        %v2824 = vadd.f32 %v2783, %v2823
        %v2825 = vpop.f32.mrb[0].mxu0
        %v2826 = vpop.f32.mrb[0].mxu0
        %v2827 = vadd.f32 %v2786, %v2826
        %v2828 = vpop.f32.mrb[0].mxu0
        %2829 = vdwg.mxu0
        %2830 = vmatprep.subr.bf16.mxu0 0
        %2831 = vmatpush1.bf16.msra.mxu0 %v2700
        %2832 = vmatprep.subr.bf16.mxu0 0
        %2833 = vmatpush1.bf16.msra.mxu0 %v2701
        %2834 = vmatprep.subr.bf16.mxu0 0
        %2835 = vmatpush1.bf16.msra.mxu0 %v2702
        %2836 = vmatprep.subr.bf16.mxu0 0
        %2837 = vmatpush1.bf16.msra.mxu0 %v2703
        %2838 = vmatprep.subr.bf16.mxu0 0
        %2839 = vmatpush1.bf16.msra.mxu0 %v2704
        %2840 = vmatprep.subr.bf16.mxu0 0
        %2841 = vmatpush1.bf16.msra.mxu0 %v2705
        %2842 = vmatprep.subr.bf16.mxu0 0
        %2843 = vmatpush1.bf16.msra.mxu0 %v2706
        %2844 = vmatprep.subr.bf16.mxu0 0
        %2845 = vmatpush1.bf16.msra.mxu0 %v2707
        %2846 = vmatprep.subr.bf16.mxu0 0
        %2847 = vmatpush1.bf16.msra.mxu0 0
        %2848 = vmatprep.subr.bf16.mxu0 0
        %2849 = vmatpush1.bf16.msra.mxu0 0
        %2850 = vmatprep.subr.bf16.mxu0 0
        %2851 = vmatpush1.bf16.msra.mxu0 0
        %2852 = vmatprep.subr.bf16.mxu0 0
        %2853 = vmatpush1.bf16.msra.mxu0 0
        %2854 = vmatprep.subr.bf16.mxu0 0
        %2855 = vmatpush1.bf16.msra.mxu0 0
        %2856 = vmatprep.subr.bf16.mxu0 0
        %2857 = vmatpush1.bf16.msra.mxu0 0
        %2858 = vmatprep.subr.bf16.mxu0 0
        %2859 = vmatpush1.bf16.msra.mxu0 0
        %2860 = vmatprep.subr.bf16.mxu0 0
        %2861 = vmatpush1.bf16.msra.mxu0 0
        %2862 = vmatprep.mubr.bf16.mxu0 0
        %2863 = vmatmul.mubr.bf16.gmra.mrb[0].mxu0 %v2502
        %v2864 = vpop.f32.mrb[0].mxu0
        %v2865 = vadd.f32 %v2824, %v2864
        %v2866 = vpop.f32.mrb[0].mxu0
        %v2867 = vpop.f32.mrb[0].mxu0
        %v2868 = vadd.f32 %v2827, %v2867
        %v2869 = vpop.f32.mrb[0].mxu0
        %2870 = vdwg.mxu0
        %v2871 = vmax.f32 %v2865, 0.0
        %v2872 = vmax.f32 %v2868, 0.0
        %v2873 = vpack.c.bf16 %v2872, %v2871
        %2874 = vst.msk [vmem:[#allocation3 + $0x10] sm:$0xff] %vm920, %v2873
        %v2875 = vld [vmem:[%s372 + $0x64] sm:$0xff]
        %v2876 = vld [vmem:[%s372 + $0x6c] sm:$0xff]
        %v2877 = vld [vmem:[%s372 + $0x74] sm:$0xf]
        %v2878 = vld [vmem:[%s372 + $0x104] sm:$0xff]
        %v2879 = vld [vmem:[%s372 + $0x10c] sm:$0xff]
        %v2880 = vld [vmem:[%s372 + $0x114] sm:$0xf]
        %v2881 = vld [vmem:[%s1] sm:$0xf]
        %v2882 = vld [vmem:[%s1 + $0x4] sm:$0xf]
        %v2883 = vld [vmem:[%s1 + $0x8] sm:$0xf]
        %v2884 = vld [vmem:[%s1 + $0xc] sm:$0xf]
        %v2885 = vld [vmem:[%s1 + $0x10] sm:$0xf]
        %v2886 = vld [vmem:[%s1 + $0x14] sm:$0xf]
        %v2887 = vld [vmem:[%s1 + $0x18] sm:$0xf]
        %v2888 = vld [vmem:[%s1 + $0x1c] sm:$0xf]
        %v2889 = vld [vmem:[%s1 + $0x20] sm:$0xf]
        %v2890 = vld [vmem:[%s1 + $0x24] sm:$0xf]
        %v2891 = vld [vmem:[%s1 + $0x28] sm:$0xf]
        %v2892 = vld [vmem:[%s1 + $0x2c] sm:$0xf]
        %v2893 = vld [vmem:[%s1 + $0x30] sm:$0xf]
        %v2894 = vld [vmem:[%s1 + $0x34] sm:$0xf]
        %v2895 = vld [vmem:[%s1 + $0x38] sm:$0xf]
        %v2896 = vld [vmem:[%s1 + $0x3c] sm:$0xf]
        %v2897 = vld [vmem:[%s1 + $0x40] sm:$0xf]
        %v2898 = vld [vmem:[%s1 + $0x44] sm:$0xf]
        %v2899 = vld [vmem:[%s1 + $0x48] sm:$0xf]
        %v2900 = vld [vmem:[%s1 + $0x4c] sm:$0xf]
        %v2901 = vld [vmem:[%s1 + $0x50] sm:$0xf]
        %v2902 = vld [vmem:[%s1 + $0x54] sm:$0xf]
        %v2903 = vld [vmem:[%s1 + $0x58] sm:$0xf]
        %v2904 = vld [vmem:[%s1 + $0x5c] sm:$0xf]
        %v2905 = vld [vmem:[%s1 + $0x60] sm:$0xf]
        %v2906 = vld [vmem:[%s1 + $0x64] sm:$0xf]
        %v2907 = vld [vmem:[%s1 + $0x68] sm:$0xf]
        %v2908 = vld [vmem:[%s1 + $0x6c] sm:$0xf]
        %v2909 = vld [vmem:[%s1 + $0x70] sm:$0xf]
        %v2910 = vld [vmem:[%s1 + $0x74] sm:$0xf]
        %v2911 = vld [vmem:[%s1 + $0x78] sm:$0xf]
        %v2912 = vld [vmem:[%s1 + $0x7c] sm:$0xf]
        %v2913 = vld [vmem:[%s1 + $0x80] sm:$0xf]
        %v2914 = vld [vmem:[%s1 + $0x84] sm:$0xf]
        %v2915 = vld [vmem:[%s1 + $0x88] sm:$0xf]
        %v2916 = vld [vmem:[%s1 + $0x8c] sm:$0xf]
        %v2917 = vld [vmem:[%s1 + $0x90] sm:$0xf]
        %v2918 = vld [vmem:[%s1 + $0x94] sm:$0xf]
        %v2919 = vld [vmem:[%s1 + $0x98] sm:$0xf]
        %v2920 = vld [vmem:[%s1 + $0x9c] sm:$0xf]
        %v2921 = vld [vmem:[%s1 + $0xa0] sm:$0xf]
        %v2922 = vld [vmem:[%s1 + $0xa4] sm:$0xf]
        %v2923 = vld [vmem:[%s1 + $0xa8] sm:$0xf]
        %v2924 = vld [vmem:[%s1 + $0xac] sm:$0xf]
        %v2925 = vld [vmem:[%s1 + $0xb0] sm:$0xf]
        %v2926 = vld [vmem:[%s1 + $0xb4] sm:$0xf]
        %v2927 = vld [vmem:[%s1 + $0xb8] sm:$0xf]
        %v2928 = vld [vmem:[%s1 + $0xbc] sm:$0xf]
        %v2929 = vld [vmem:[%s1 + $0xc0] sm:$0xf]
        %v2930 = vld [vmem:[%s1 + $0xc4] sm:$0xf]
        %v2931 = vld [vmem:[%s1 + $0xc8] sm:$0xf]
        %v2932 = vld [vmem:[%s1 + $0xcc] sm:$0xf]
        %v2933 = vld [vmem:[%s1 + $0xd0] sm:$0xf]
        %v2934 = vld [vmem:[%s1 + $0xd4] sm:$0xf]
        %v2935 = vld [vmem:[%s1 + $0xd8] sm:$0xf]
        %v2936 = vld [vmem:[%s1 + $0xdc] sm:$0xf]
        %v2937 = vld [vmem:[%s1 + $0xe0] sm:$0xf]
        %v2938 = vld [vmem:[%s1 + $0xe4] sm:$0xf]
        %v2939 = vld [vmem:[%s1 + $0xe8] sm:$0xf]
        %v2940 = vld [vmem:[%s1 + $0xec] sm:$0xf]
        %v2941 = vld [vmem:[%s1 + $0xf0] sm:$0xf]
        %v2942 = vld [vmem:[%s1 + $0xf4] sm:$0xf]
        %v2943 = vld [vmem:[%s1 + $0xf8] sm:$0xf]
        %v2944 = vld [vmem:[%s1 + $0xfc] sm:$0xf]
        %v2945 = vld [vmem:[%s1 + $0x100] sm:$0xf]
        %v2946 = vld [vmem:[%s1 + $0x104] sm:$0xf]
        %v2947 = vld [vmem:[%s1 + $0x108] sm:$0xf]
        %v2948 = vld [vmem:[%s1 + $0x10c] sm:$0xf]
        %v2949 = vld [vmem:[%s1 + $0x110] sm:$0xf]
        %v2950 = vld [vmem:[%s1 + $0x114] sm:$0xf]
        %v2951 = vld [vmem:[%s1 + $0x118] sm:$0xf]
        %v2952 = vld [vmem:[%s1 + $0x11c] sm:$0xf]
        %v2953 = vld [vmem:[%s1 + $0x120] sm:$0xf]
        %v2954 = vld [vmem:[%s1 + $0x124] sm:$0xf]
        %v2955 = vld [vmem:[%s1 + $0x128] sm:$0xf]
        %v2956 = vld [vmem:[%s1 + $0x12c] sm:$0xf]
        %v2957 = vld [vmem:[%s1 + $0x130] sm:$0xf]
        %v2958 = vld [vmem:[%s1 + $0x134] sm:$0xf]
        %v2959 = vld [vmem:[%s1 + $0x138] sm:$0xf]
        %v2960 = vld [vmem:[%s1 + $0x13c] sm:$0xf]
        %v2961 = vld [vmem:[%s2] sm:$0x1]
        %v2963 = vlaneseq
        %v2964 = vshrl.u32 %v2963, 7
        %v2965 = vsub.s32 0, %v2964
        %v2966 = vrot.slane %v2961, %v2965
        %v2974 = vunpack.c.l.b16 %v2875
        %v2975 = vunpack.c.h.b16 %v2875
        %v2976 = vunpack.c.l.b16 %v2876
        %v2977 = vunpack.c.h.b16 %v2876
        %v2978 = vunpack.c.l.b16 %v2877
        %v2979 = vunpack.c.l.b16 %v2878
        %v2980 = vunpack.c.h.b16 %v2878
        %v2981 = vunpack.c.l.b16 %v2879
        %v2982 = vunpack.c.h.b16 %v2879
        %v2983 = vunpack.c.l.b16 %v2880
        %v2984 = vpack.c.b16 %v2979, %v2974
        %v2985 = vpack.c.b16 %v2980, %v2975
        %v2986 = vpack.c.b16 %v2981, %v2976
        %v2987 = vpack.c.b16 %v2982, %v2977
        %v2988 = vpack.c.b16 %v2983, %v2978
        %v3074 = vunpack.c.l.b16 %v2881
        %v3075 = vunpack.c.l.b16 %v2882
        %v3076 = vunpack.c.l.b16 %v2883
        %v3077 = vunpack.c.l.b16 %v2884
        %v3078 = vunpack.c.l.b16 %v2885
        %v3079 = vunpack.c.l.b16 %v2886
        %v3080 = vunpack.c.l.b16 %v2887
        %v3081 = vunpack.c.l.b16 %v2888
        %v3082 = vunpack.c.l.b16 %v2889
        %v3083 = vunpack.c.l.b16 %v2890
        %v3084 = vunpack.c.l.b16 %v2891
        %v3085 = vunpack.c.l.b16 %v2892
        %v3086 = vunpack.c.l.b16 %v2893
        %v3087 = vunpack.c.l.b16 %v2894
        %v3088 = vunpack.c.l.b16 %v2895
        %v3089 = vunpack.c.l.b16 %v2896
        %v3090 = vunpack.c.l.b16 %v2897
        %v3091 = vunpack.c.l.b16 %v2898
        %v3092 = vunpack.c.l.b16 %v2899
        %v3093 = vunpack.c.l.b16 %v2900
        %v3094 = vunpack.c.l.b16 %v2901
        %v3095 = vunpack.c.l.b16 %v2902
        %v3096 = vunpack.c.l.b16 %v2903
        %v3097 = vunpack.c.l.b16 %v2904
        %v3098 = vunpack.c.l.b16 %v2905
        %v3099 = vunpack.c.l.b16 %v2906
        %v3100 = vunpack.c.l.b16 %v2907
        %v3101 = vunpack.c.l.b16 %v2908
        %v3102 = vunpack.c.l.b16 %v2909
        %v3103 = vunpack.c.l.b16 %v2910
        %v3104 = vunpack.c.l.b16 %v2911
        %v3105 = vunpack.c.l.b16 %v2912
        %v3106 = vunpack.c.l.b16 %v2913
        %v3107 = vunpack.c.l.b16 %v2914
        %v3108 = vunpack.c.l.b16 %v2915
        %v3109 = vunpack.c.l.b16 %v2916
        %v3110 = vunpack.c.l.b16 %v2917
        %v3111 = vunpack.c.l.b16 %v2918
        %v3112 = vunpack.c.l.b16 %v2919
        %v3113 = vunpack.c.l.b16 %v2920
        %v3114 = vunpack.c.l.b16 %v2921
        %v3115 = vunpack.c.l.b16 %v2922
        %v3116 = vunpack.c.l.b16 %v2923
        %v3117 = vunpack.c.l.b16 %v2924
        %v3118 = vunpack.c.l.b16 %v2925
        %v3119 = vunpack.c.l.b16 %v2926
        %v3120 = vunpack.c.l.b16 %v2927
        %v3121 = vunpack.c.l.b16 %v2928
        %v3122 = vunpack.c.l.b16 %v2929
        %v3123 = vunpack.c.l.b16 %v2930
        %v3124 = vunpack.c.l.b16 %v2931
        %v3125 = vunpack.c.l.b16 %v2932
        %v3126 = vunpack.c.l.b16 %v2933
        %v3127 = vunpack.c.l.b16 %v2934
        %v3128 = vunpack.c.l.b16 %v2935
        %v3129 = vunpack.c.l.b16 %v2936
        %v3130 = vunpack.c.l.b16 %v2937
        %v3131 = vunpack.c.l.b16 %v2938
        %v3132 = vunpack.c.l.b16 %v2939
        %v3133 = vunpack.c.l.b16 %v2940
        %v3134 = vunpack.c.l.b16 %v2941
        %v3135 = vunpack.c.l.b16 %v2942
        %v3136 = vunpack.c.l.b16 %v2943
        %v3137 = vunpack.c.l.b16 %v2944
        %v3138 = vunpack.c.l.b16 %v2945
        %v3139 = vunpack.c.l.b16 %v2946
        %v3140 = vunpack.c.l.b16 %v2947
        %v3141 = vunpack.c.l.b16 %v2948
        %v3142 = vunpack.c.l.b16 %v2949
        %v3143 = vunpack.c.l.b16 %v2950
        %v3144 = vunpack.c.l.b16 %v2951
        %v3145 = vunpack.c.l.b16 %v2952
        %v3146 = vunpack.c.l.b16 %v2953
        %v3147 = vunpack.c.l.b16 %v2954
        %v3148 = vunpack.c.l.b16 %v2955
        %v3149 = vunpack.c.l.b16 %v2956
        %v3150 = vunpack.c.l.b16 %v2957
        %v3151 = vunpack.c.l.b16 %v2958
        %v3152 = vunpack.c.l.b16 %v2959
        %v3153 = vunpack.c.l.b16 %v2960
        %v3154 = vpack.c.b16 %v3075, %v3074
        %v3155 = vpack.c.b16 %v3077, %v3076
        %v3156 = vpack.c.b16 %v3079, %v3078
        %v3157 = vpack.c.b16 %v3081, %v3080
        %v3158 = vpack.c.b16 %v3083, %v3082
        %v3159 = vpack.c.b16 %v3085, %v3084
        %v3160 = vpack.c.b16 %v3087, %v3086
        %v3161 = vpack.c.b16 %v3089, %v3088
        %v3162 = vpack.c.b16 %v3091, %v3090
        %v3163 = vpack.c.b16 %v3093, %v3092
        %v3164 = vpack.c.b16 %v3095, %v3094
        %v3165 = vpack.c.b16 %v3097, %v3096
        %v3166 = vpack.c.b16 %v3099, %v3098
        %v3167 = vpack.c.b16 %v3101, %v3100
        %v3168 = vpack.c.b16 %v3103, %v3102
        %v3169 = vpack.c.b16 %v3105, %v3104
        %v3170 = vpack.c.b16 %v3107, %v3106
        %v3171 = vpack.c.b16 %v3109, %v3108
        %v3172 = vpack.c.b16 %v3111, %v3110
        %v3173 = vpack.c.b16 %v3113, %v3112
        %v3174 = vpack.c.b16 %v3115, %v3114
        %v3175 = vpack.c.b16 %v3117, %v3116
        %v3176 = vpack.c.b16 %v3119, %v3118
        %v3177 = vpack.c.b16 %v3121, %v3120
        %v3178 = vpack.c.b16 %v3123, %v3122
        %v3179 = vpack.c.b16 %v3125, %v3124
        %v3180 = vpack.c.b16 %v3127, %v3126
        %v3181 = vpack.c.b16 %v3129, %v3128
        %v3182 = vpack.c.b16 %v3131, %v3130
        %v3183 = vpack.c.b16 %v3133, %v3132
        %v3184 = vpack.c.b16 %v3135, %v3134
        %v3185 = vpack.c.b16 %v3137, %v3136
        %v3186 = vpack.c.b16 %v3139, %v3138
        %v3187 = vpack.c.b16 %v3141, %v3140
        %v3188 = vpack.c.b16 %v3143, %v3142
        %v3189 = vpack.c.b16 %v3145, %v3144
        %v3190 = vpack.c.b16 %v3147, %v3146
        %v3191 = vpack.c.b16 %v3149, %v3148
        %v3192 = vpack.c.b16 %v3151, %v3150
        %v3193 = vpack.c.b16 %v3153, %v3152
        %3234 = vmatprep.subr.bf16.mxu0 0
        %3235 = vmatpush1.bf16.msra.mxu0 %v3154
        %3236 = vmatprep.subr.bf16.mxu0 0
        %3237 = vmatpush1.bf16.msra.mxu0 %v3155
        %3238 = vmatprep.subr.bf16.mxu0 0
        %3239 = vmatpush1.bf16.msra.mxu0 %v3156
        %3240 = vmatprep.subr.bf16.mxu0 0
        %3241 = vmatpush1.bf16.msra.mxu0 %v3157
        %3242 = vmatprep.subr.bf16.mxu0 0
        %3243 = vmatpush1.bf16.msra.mxu0 %v3158
        %3244 = vmatprep.subr.bf16.mxu0 0
        %3245 = vmatpush1.bf16.msra.mxu0 %v3159
        %3246 = vmatprep.subr.bf16.mxu0 0
        %3247 = vmatpush1.bf16.msra.mxu0 %v3160
        %3248 = vmatprep.subr.bf16.mxu0 0
        %3249 = vmatpush1.bf16.msra.mxu0 %v3161
        %3250 = vmatprep.subr.bf16.mxu0 0
        %3251 = vmatpush1.bf16.msra.mxu0 %v3162
        %3252 = vmatprep.subr.bf16.mxu0 0
        %3253 = vmatpush1.bf16.msra.mxu0 %v3163
        %3254 = vmatprep.subr.bf16.mxu0 0
        %3255 = vmatpush1.bf16.msra.mxu0 %v3164
        %3256 = vmatprep.subr.bf16.mxu0 0
        %3257 = vmatpush1.bf16.msra.mxu0 %v3165
        %3258 = vmatprep.subr.bf16.mxu0 0
        %3259 = vmatpush1.bf16.msra.mxu0 %v3166
        %3260 = vmatprep.subr.bf16.mxu0 0
        %3261 = vmatpush1.bf16.msra.mxu0 %v3167
        %3262 = vmatprep.subr.bf16.mxu0 0
        %3263 = vmatpush1.bf16.msra.mxu0 %v3168
        %3264 = vmatprep.subr.bf16.mxu0 0
        %3265 = vmatpush1.bf16.msra.mxu0 %v3169
        %3266 = vmatprep.mubr.bf16.mxu0 %v2985
        %3267 = vmatmul.mubr.bf16.gmra.mrb[0].mxu0 %v2984
        %v3268 = vpop.f32.mrb[0].mxu0
        %v3269 = vadd.f32 %v2966, %v3268
        %v3270 = vpop.f32.mrb[0].mxu0
        %v3271 = vpop.f32.mrb[0].mxu0
        %v3272 = vadd.f32 %v2966, %v3271
        %v3273 = vpop.f32.mrb[0].mxu0
        %3274 = vdwg.mxu0
        %3275 = vmatprep.subr.bf16.mxu0 0
        %3276 = vmatpush1.bf16.msra.mxu0 %v3170
        %3277 = vmatprep.subr.bf16.mxu0 0
        %3278 = vmatpush1.bf16.msra.mxu0 %v3171
        %3279 = vmatprep.subr.bf16.mxu0 0
        %3280 = vmatpush1.bf16.msra.mxu0 %v3172
        %3281 = vmatprep.subr.bf16.mxu0 0
        %3282 = vmatpush1.bf16.msra.mxu0 %v3173
        %3283 = vmatprep.subr.bf16.mxu0 0
        %3284 = vmatpush1.bf16.msra.mxu0 %v3174
        %3285 = vmatprep.subr.bf16.mxu0 0
        %3286 = vmatpush1.bf16.msra.mxu0 %v3175
        %3287 = vmatprep.subr.bf16.mxu0 0
        %3288 = vmatpush1.bf16.msra.mxu0 %v3176
        %3289 = vmatprep.subr.bf16.mxu0 0
        %3290 = vmatpush1.bf16.msra.mxu0 %v3177
        %3291 = vmatprep.subr.bf16.mxu0 0
        %3292 = vmatpush1.bf16.msra.mxu0 %v3178
        %3293 = vmatprep.subr.bf16.mxu0 0
        %3294 = vmatpush1.bf16.msra.mxu0 %v3179
        %3295 = vmatprep.subr.bf16.mxu0 0
        %3296 = vmatpush1.bf16.msra.mxu0 %v3180
        %3297 = vmatprep.subr.bf16.mxu0 0
        %3298 = vmatpush1.bf16.msra.mxu0 %v3181
        %3299 = vmatprep.subr.bf16.mxu0 0
        %3300 = vmatpush1.bf16.msra.mxu0 %v3182
        %3301 = vmatprep.subr.bf16.mxu0 0
        %3302 = vmatpush1.bf16.msra.mxu0 %v3183
        %3303 = vmatprep.subr.bf16.mxu0 0
        %3304 = vmatpush1.bf16.msra.mxu0 %v3184
        %3305 = vmatprep.subr.bf16.mxu0 0
        %3306 = vmatpush1.bf16.msra.mxu0 %v3185
        %3307 = vmatprep.mubr.bf16.mxu0 %v2987
        %3308 = vmatmul.mubr.bf16.gmra.mrb[0].mxu0 %v2986
        %v3309 = vpop.f32.mrb[0].mxu0
        %v3310 = vadd.f32 %v3269, %v3309
        %v3311 = vpop.f32.mrb[0].mxu0
        %v3312 = vpop.f32.mrb[0].mxu0
        %v3313 = vadd.f32 %v3272, %v3312
        %v3314 = vpop.f32.mrb[0].mxu0
        %3315 = vdwg.mxu0
        %3316 = vmatprep.subr.bf16.mxu0 0
        %3317 = vmatpush1.bf16.msra.mxu0 %v3186
        %3318 = vmatprep.subr.bf16.mxu0 0
        %3319 = vmatpush1.bf16.msra.mxu0 %v3187
        %3320 = vmatprep.subr.bf16.mxu0 0
        %3321 = vmatpush1.bf16.msra.mxu0 %v3188
        %3322 = vmatprep.subr.bf16.mxu0 0
        %3323 = vmatpush1.bf16.msra.mxu0 %v3189
        %3324 = vmatprep.subr.bf16.mxu0 0
        %3325 = vmatpush1.bf16.msra.mxu0 %v3190
        %3326 = vmatprep.subr.bf16.mxu0 0
        %3327 = vmatpush1.bf16.msra.mxu0 %v3191
        %3328 = vmatprep.subr.bf16.mxu0 0
        %3329 = vmatpush1.bf16.msra.mxu0 %v3192
        %3330 = vmatprep.subr.bf16.mxu0 0
        %3331 = vmatpush1.bf16.msra.mxu0 %v3193
        %3332 = vmatprep.subr.bf16.mxu0 0
        %3333 = vmatpush1.bf16.msra.mxu0 0
        %3334 = vmatprep.subr.bf16.mxu0 0
        %3335 = vmatpush1.bf16.msra.mxu0 0
        %3336 = vmatprep.subr.bf16.mxu0 0
        %3337 = vmatpush1.bf16.msra.mxu0 0
        %3338 = vmatprep.subr.bf16.mxu0 0
        %3339 = vmatpush1.bf16.msra.mxu0 0
        %3340 = vmatprep.subr.bf16.mxu0 0
        %3341 = vmatpush1.bf16.msra.mxu0 0
        %3342 = vmatprep.subr.bf16.mxu0 0
        %3343 = vmatpush1.bf16.msra.mxu0 0
        %3344 = vmatprep.subr.bf16.mxu0 0
        %3345 = vmatpush1.bf16.msra.mxu0 0
        %3346 = vmatprep.subr.bf16.mxu0 0
        %3347 = vmatpush1.bf16.msra.mxu0 0
        %3348 = vmatprep.mubr.bf16.mxu0 0
        %3349 = vmatmul.mubr.bf16.gmra.mrb[0].mxu0 %v2988
        %v3350 = vpop.f32.mrb[0].mxu0
        %v3351 = vadd.f32 %v3310, %v3350
        %v3352 = vpop.f32.mrb[0].mxu0
        %v3353 = vpop.f32.mrb[0].mxu0
        %v3354 = vadd.f32 %v3313, %v3353
        %v3355 = vpop.f32.mrb[0].mxu0
        %3356 = vdwg.mxu0
        %v3357 = vmax.f32 %v3351, 0.0
        %v3358 = vmax.f32 %v3354, 0.0
        %v3359 = vpack.c.bf16 %v3358, %v3357
        %3361 = vrot.lane.b32.xlu0 %v3359, 64
        %v3362 = vpop.permute.xlu0 %3361
        %3364 = vst.msk [vmem:[#allocation3 + $0x10] sm:$0xff] %vm1411, %v3362
        %v3365 = vld [vmem:[%s372 + $0x78] sm:$0xff]
        %v3366 = vld [vmem:[%s372 + $0x80] sm:$0xff]
        %v3367 = vld [vmem:[%s372 + $0x88] sm:$0xf]
        %v3368 = vld [vmem:[%s372 + $0x118] sm:$0xff]
        %v3369 = vld [vmem:[%s372 + $0x120] sm:$0xff]
        %v3370 = vld [vmem:[%s372 + $0x128] sm:$0xf]
        %v3371 = vld [vmem:[%s1] sm:$0xf]
        %v3372 = vld [vmem:[%s1 + $0x4] sm:$0xf]
        %v3373 = vld [vmem:[%s1 + $0x8] sm:$0xf]
        %v3374 = vld [vmem:[%s1 + $0xc] sm:$0xf]
        %v3375 = vld [vmem:[%s1 + $0x10] sm:$0xf]
        %v3376 = vld [vmem:[%s1 + $0x14] sm:$0xf]
        %v3377 = vld [vmem:[%s1 + $0x18] sm:$0xf]
        %v3378 = vld [vmem:[%s1 + $0x1c] sm:$0xf]
        %v3379 = vld [vmem:[%s1 + $0x20] sm:$0xf]
        %v3380 = vld [vmem:[%s1 + $0x24] sm:$0xf]
        %v3381 = vld [vmem:[%s1 + $0x28] sm:$0xf]
        %v3382 = vld [vmem:[%s1 + $0x2c] sm:$0xf]
        %v3383 = vld [vmem:[%s1 + $0x30] sm:$0xf]
        %v3384 = vld [vmem:[%s1 + $0x34] sm:$0xf]
        %v3385 = vld [vmem:[%s1 + $0x38] sm:$0xf]
        %v3386 = vld [vmem:[%s1 + $0x3c] sm:$0xf]
        %v3387 = vld [vmem:[%s1 + $0x40] sm:$0xf]
        %v3388 = vld [vmem:[%s1 + $0x44] sm:$0xf]
        %v3389 = vld [vmem:[%s1 + $0x48] sm:$0xf]
        %v3390 = vld [vmem:[%s1 + $0x4c] sm:$0xf]
        %v3391 = vld [vmem:[%s1 + $0x50] sm:$0xf]
        %v3392 = vld [vmem:[%s1 + $0x54] sm:$0xf]
        %v3393 = vld [vmem:[%s1 + $0x58] sm:$0xf]
        %v3394 = vld [vmem:[%s1 + $0x5c] sm:$0xf]
        %v3395 = vld [vmem:[%s1 + $0x60] sm:$0xf]
        %v3396 = vld [vmem:[%s1 + $0x64] sm:$0xf]
        %v3397 = vld [vmem:[%s1 + $0x68] sm:$0xf]
        %v3398 = vld [vmem:[%s1 + $0x6c] sm:$0xf]
        %v3399 = vld [vmem:[%s1 + $0x70] sm:$0xf]
        %v3400 = vld [vmem:[%s1 + $0x74] sm:$0xf]
        %v3401 = vld [vmem:[%s1 + $0x78] sm:$0xf]
        %v3402 = vld [vmem:[%s1 + $0x7c] sm:$0xf]
        %v3403 = vld [vmem:[%s1 + $0x80] sm:$0xf]
        %v3404 = vld [vmem:[%s1 + $0x84] sm:$0xf]
        %v3405 = vld [vmem:[%s1 + $0x88] sm:$0xf]
        %v3406 = vld [vmem:[%s1 + $0x8c] sm:$0xf]
        %v3407 = vld [vmem:[%s1 + $0x90] sm:$0xf]
        %v3408 = vld [vmem:[%s1 + $0x94] sm:$0xf]
        %v3409 = vld [vmem:[%s1 + $0x98] sm:$0xf]
        %v3410 = vld [vmem:[%s1 + $0x9c] sm:$0xf]
        %v3411 = vld [vmem:[%s1 + $0xa0] sm:$0xf]
        %v3412 = vld [vmem:[%s1 + $0xa4] sm:$0xf]
        %v3413 = vld [vmem:[%s1 + $0xa8] sm:$0xf]
        %v3414 = vld [vmem:[%s1 + $0xac] sm:$0xf]
        %v3415 = vld [vmem:[%s1 + $0xb0] sm:$0xf]
        %v3416 = vld [vmem:[%s1 + $0xb4] sm:$0xf]
        %v3417 = vld [vmem:[%s1 + $0xb8] sm:$0xf]
        %v3418 = vld [vmem:[%s1 + $0xbc] sm:$0xf]
        %v3419 = vld [vmem:[%s1 + $0xc0] sm:$0xf]
        %v3420 = vld [vmem:[%s1 + $0xc4] sm:$0xf]
        %v3421 = vld [vmem:[%s1 + $0xc8] sm:$0xf]
        %v3422 = vld [vmem:[%s1 + $0xcc] sm:$0xf]
        %v3423 = vld [vmem:[%s1 + $0xd0] sm:$0xf]
        %v3424 = vld [vmem:[%s1 + $0xd4] sm:$0xf]
        %v3425 = vld [vmem:[%s1 + $0xd8] sm:$0xf]
        %v3426 = vld [vmem:[%s1 + $0xdc] sm:$0xf]
        %v3427 = vld [vmem:[%s1 + $0xe0] sm:$0xf]
        %v3428 = vld [vmem:[%s1 + $0xe4] sm:$0xf]
        %v3429 = vld [vmem:[%s1 + $0xe8] sm:$0xf]
        %v3430 = vld [vmem:[%s1 + $0xec] sm:$0xf]
        %v3431 = vld [vmem:[%s1 + $0xf0] sm:$0xf]
        %v3432 = vld [vmem:[%s1 + $0xf4] sm:$0xf]
        %v3433 = vld [vmem:[%s1 + $0xf8] sm:$0xf]
        %v3434 = vld [vmem:[%s1 + $0xfc] sm:$0xf]
        %v3435 = vld [vmem:[%s1 + $0x100] sm:$0xf]
        %v3436 = vld [vmem:[%s1 + $0x104] sm:$0xf]
        %v3437 = vld [vmem:[%s1 + $0x108] sm:$0xf]
        %v3438 = vld [vmem:[%s1 + $0x10c] sm:$0xf]
        %v3439 = vld [vmem:[%s1 + $0x110] sm:$0xf]
        %v3440 = vld [vmem:[%s1 + $0x114] sm:$0xf]
        %v3441 = vld [vmem:[%s1 + $0x118] sm:$0xf]
        %v3442 = vld [vmem:[%s1 + $0x11c] sm:$0xf]
        %v3443 = vld [vmem:[%s1 + $0x120] sm:$0xf]
        %v3444 = vld [vmem:[%s1 + $0x124] sm:$0xf]
        %v3445 = vld [vmem:[%s1 + $0x128] sm:$0xf]
        %v3446 = vld [vmem:[%s1 + $0x12c] sm:$0xf]
        %v3447 = vld [vmem:[%s1 + $0x130] sm:$0xf]
        %v3448 = vld [vmem:[%s1 + $0x134] sm:$0xf]
        %v3449 = vld [vmem:[%s1 + $0x138] sm:$0xf]
        %v3450 = vld [vmem:[%s1 + $0x13c] sm:$0xf]
        %v3451 = vld [vmem:[%s2] sm:$0x1]
        %v3453 = vlaneseq
        %v3454 = vshrl.u32 %v3453, 7
        %v3455 = vsub.s32 0, %v3454
        %v3456 = vrot.slane %v3451, %v3455
        %v3464 = vunpack.c.l.b16 %v3365
        %v3465 = vunpack.c.h.b16 %v3365
        %v3466 = vunpack.c.l.b16 %v3366
        %v3467 = vunpack.c.h.b16 %v3366
        %v3468 = vunpack.c.l.b16 %v3367
        %v3469 = vunpack.c.l.b16 %v3368
        %v3470 = vunpack.c.h.b16 %v3368
        %v3471 = vunpack.c.l.b16 %v3369
        %v3472 = vunpack.c.h.b16 %v3369
        %v3473 = vunpack.c.l.b16 %v3370
        %v3474 = vpack.c.b16 %v3469, %v3464
        %v3475 = vpack.c.b16 %v3470, %v3465
        %v3476 = vpack.c.b16 %v3471, %v3466
        %v3477 = vpack.c.b16 %v3472, %v3467
        %v3478 = vpack.c.b16 %v3473, %v3468
        %v3564 = vunpack.c.l.b16 %v3371
        %v3565 = vunpack.c.l.b16 %v3372
        %v3566 = vunpack.c.l.b16 %v3373
        %v3567 = vunpack.c.l.b16 %v3374
        %v3568 = vunpack.c.l.b16 %v3375
        %v3569 = vunpack.c.l.b16 %v3376
        %v3570 = vunpack.c.l.b16 %v3377
        %v3571 = vunpack.c.l.b16 %v3378
        %v3572 = vunpack.c.l.b16 %v3379
        %v3573 = vunpack.c.l.b16 %v3380
        %v3574 = vunpack.c.l.b16 %v3381
        %v3575 = vunpack.c.l.b16 %v3382
        %v3576 = vunpack.c.l.b16 %v3383
        %v3577 = vunpack.c.l.b16 %v3384
        %v3578 = vunpack.c.l.b16 %v3385
        %v3579 = vunpack.c.l.b16 %v3386
        %v3580 = vunpack.c.l.b16 %v3387
        %v3581 = vunpack.c.l.b16 %v3388
        %v3582 = vunpack.c.l.b16 %v3389
        %v3583 = vunpack.c.l.b16 %v3390
        %v3584 = vunpack.c.l.b16 %v3391
        %v3585 = vunpack.c.l.b16 %v3392
        %v3586 = vunpack.c.l.b16 %v3393
        %v3587 = vunpack.c.l.b16 %v3394
        %v3588 = vunpack.c.l.b16 %v3395
        %v3589 = vunpack.c.l.b16 %v3396
        %v3590 = vunpack.c.l.b16 %v3397
        %v3591 = vunpack.c.l.b16 %v3398
        %v3592 = vunpack.c.l.b16 %v3399
        %v3593 = vunpack.c.l.b16 %v3400
        %v3594 = vunpack.c.l.b16 %v3401
        %v3595 = vunpack.c.l.b16 %v3402
        %v3596 = vunpack.c.l.b16 %v3403
        %v3597 = vunpack.c.l.b16 %v3404
        %v3598 = vunpack.c.l.b16 %v3405
        %v3599 = vunpack.c.l.b16 %v3406
        %v3600 = vunpack.c.l.b16 %v3407
        %v3601 = vunpack.c.l.b16 %v3408
        %v3602 = vunpack.c.l.b16 %v3409
        %v3603 = vunpack.c.l.b16 %v3410
        %v3604 = vunpack.c.l.b16 %v3411
        %v3605 = vunpack.c.l.b16 %v3412
        %v3606 = vunpack.c.l.b16 %v3413
        %v3607 = vunpack.c.l.b16 %v3414
        %v3608 = vunpack.c.l.b16 %v3415
        %v3609 = vunpack.c.l.b16 %v3416
        %v3610 = vunpack.c.l.b16 %v3417
        %v3611 = vunpack.c.l.b16 %v3418
        %v3612 = vunpack.c.l.b16 %v3419
        %v3613 = vunpack.c.l.b16 %v3420
        %v3614 = vunpack.c.l.b16 %v3421
        %v3615 = vunpack.c.l.b16 %v3422
        %v3616 = vunpack.c.l.b16 %v3423
        %v3617 = vunpack.c.l.b16 %v3424
        %v3618 = vunpack.c.l.b16 %v3425
        %v3619 = vunpack.c.l.b16 %v3426
        %v3620 = vunpack.c.l.b16 %v3427
        %v3621 = vunpack.c.l.b16 %v3428
        %v3622 = vunpack.c.l.b16 %v3429
        %v3623 = vunpack.c.l.b16 %v3430
        %v3624 = vunpack.c.l.b16 %v3431
        %v3625 = vunpack.c.l.b16 %v3432
        %v3626 = vunpack.c.l.b16 %v3433
        %v3627 = vunpack.c.l.b16 %v3434
        %v3628 = vunpack.c.l.b16 %v3435
        %v3629 = vunpack.c.l.b16 %v3436
        %v3630 = vunpack.c.l.b16 %v3437
        %v3631 = vunpack.c.l.b16 %v3438
        %v3632 = vunpack.c.l.b16 %v3439
        %v3633 = vunpack.c.l.b16 %v3440
        %v3634 = vunpack.c.l.b16 %v3441
        %v3635 = vunpack.c.l.b16 %v3442
        %v3636 = vunpack.c.l.b16 %v3443
        %v3637 = vunpack.c.l.b16 %v3444
        %v3638 = vunpack.c.l.b16 %v3445
        %v3639 = vunpack.c.l.b16 %v3446
        %v3640 = vunpack.c.l.b16 %v3447
        %v3641 = vunpack.c.l.b16 %v3448
        %v3642 = vunpack.c.l.b16 %v3449
        %v3643 = vunpack.c.l.b16 %v3450
        %v3644 = vpack.c.b16 %v3565, %v3564
        %v3645 = vpack.c.b16 %v3567, %v3566
        %v3646 = vpack.c.b16 %v3569, %v3568
        %v3647 = vpack.c.b16 %v3571, %v3570
        %v3648 = vpack.c.b16 %v3573, %v3572
        %v3649 = vpack.c.b16 %v3575, %v3574
        %v3650 = vpack.c.b16 %v3577, %v3576
        %v3651 = vpack.c.b16 %v3579, %v3578
        %v3652 = vpack.c.b16 %v3581, %v3580
        %v3653 = vpack.c.b16 %v3583, %v3582
        %v3654 = vpack.c.b16 %v3585, %v3584
        %v3655 = vpack.c.b16 %v3587, %v3586
        %v3656 = vpack.c.b16 %v3589, %v3588
        %v3657 = vpack.c.b16 %v3591, %v3590
        %v3658 = vpack.c.b16 %v3593, %v3592
        %v3659 = vpack.c.b16 %v3595, %v3594
        %v3660 = vpack.c.b16 %v3597, %v3596
        %v3661 = vpack.c.b16 %v3599, %v3598
        %v3662 = vpack.c.b16 %v3601, %v3600
        %v3663 = vpack.c.b16 %v3603, %v3602
        %v3664 = vpack.c.b16 %v3605, %v3604
        %v3665 = vpack.c.b16 %v3607, %v3606
        %v3666 = vpack.c.b16 %v3609, %v3608
        %v3667 = vpack.c.b16 %v3611, %v3610
        %v3668 = vpack.c.b16 %v3613, %v3612
        %v3669 = vpack.c.b16 %v3615, %v3614
        %v3670 = vpack.c.b16 %v3617, %v3616
        %v3671 = vpack.c.b16 %v3619, %v3618
        %v3672 = vpack.c.b16 %v3621, %v3620
        %v3673 = vpack.c.b16 %v3623, %v3622
        %v3674 = vpack.c.b16 %v3625, %v3624
        %v3675 = vpack.c.b16 %v3627, %v3626
        %v3676 = vpack.c.b16 %v3629, %v3628
        %v3677 = vpack.c.b16 %v3631, %v3630
        %v3678 = vpack.c.b16 %v3633, %v3632
        %v3679 = vpack.c.b16 %v3635, %v3634
        %v3680 = vpack.c.b16 %v3637, %v3636
        %v3681 = vpack.c.b16 %v3639, %v3638
        %v3682 = vpack.c.b16 %v3641, %v3640
        %v3683 = vpack.c.b16 %v3643, %v3642
        %3724 = vmatprep.subr.bf16.mxu0 0
        %3725 = vmatpush1.bf16.msra.mxu0 %v3644
        %3726 = vmatprep.subr.bf16.mxu0 0
        %3727 = vmatpush1.bf16.msra.mxu0 %v3645
        %3728 = vmatprep.subr.bf16.mxu0 0
        %3729 = vmatpush1.bf16.msra.mxu0 %v3646
        %3730 = vmatprep.subr.bf16.mxu0 0
        %3731 = vmatpush1.bf16.msra.mxu0 %v3647
        %3732 = vmatprep.subr.bf16.mxu0 0
        %3733 = vmatpush1.bf16.msra.mxu0 %v3648
        %3734 = vmatprep.subr.bf16.mxu0 0
        %3735 = vmatpush1.bf16.msra.mxu0 %v3649
        %3736 = vmatprep.subr.bf16.mxu0 0
        %3737 = vmatpush1.bf16.msra.mxu0 %v3650
        %3738 = vmatprep.subr.bf16.mxu0 0
        %3739 = vmatpush1.bf16.msra.mxu0 %v3651
        %3740 = vmatprep.subr.bf16.mxu0 0
        %3741 = vmatpush1.bf16.msra.mxu0 %v3652
        %3742 = vmatprep.subr.bf16.mxu0 0
        %3743 = vmatpush1.bf16.msra.mxu0 %v3653
        %3744 = vmatprep.subr.bf16.mxu0 0
        %3745 = vmatpush1.bf16.msra.mxu0 %v3654
        %3746 = vmatprep.subr.bf16.mxu0 0
        %3747 = vmatpush1.bf16.msra.mxu0 %v3655
        %3748 = vmatprep.subr.bf16.mxu0 0
        %3749 = vmatpush1.bf16.msra.mxu0 %v3656
        %3750 = vmatprep.subr.bf16.mxu0 0
        %3751 = vmatpush1.bf16.msra.mxu0 %v3657
        %3752 = vmatprep.subr.bf16.mxu0 0
        %3753 = vmatpush1.bf16.msra.mxu0 %v3658
        %3754 = vmatprep.subr.bf16.mxu0 0
        %3755 = vmatpush1.bf16.msra.mxu0 %v3659
        %3756 = vmatprep.mubr.bf16.mxu0 %v3475
        %3757 = vmatmul.mubr.bf16.gmra.mrb[0].mxu0 %v3474
        %v3758 = vpop.f32.mrb[0].mxu0
        %v3759 = vadd.f32 %v3456, %v3758
        %v3760 = vpop.f32.mrb[0].mxu0
        %v3761 = vpop.f32.mrb[0].mxu0
        %v3762 = vadd.f32 %v3456, %v3761
        %v3763 = vpop.f32.mrb[0].mxu0
        %3764 = vdwg.mxu0
        %3765 = vmatprep.subr.bf16.mxu0 0
        %3766 = vmatpush1.bf16.msra.mxu0 %v3660
        %3767 = vmatprep.subr.bf16.mxu0 0
        %3768 = vmatpush1.bf16.msra.mxu0 %v3661
        %3769 = vmatprep.subr.bf16.mxu0 0
        %3770 = vmatpush1.bf16.msra.mxu0 %v3662
        %3771 = vmatprep.subr.bf16.mxu0 0
        %3772 = vmatpush1.bf16.msra.mxu0 %v3663
        %3773 = vmatprep.subr.bf16.mxu0 0
        %3774 = vmatpush1.bf16.msra.mxu0 %v3664
        %3775 = vmatprep.subr.bf16.mxu0 0
        %3776 = vmatpush1.bf16.msra.mxu0 %v3665
        %3777 = vmatprep.subr.bf16.mxu0 0
        %3778 = vmatpush1.bf16.msra.mxu0 %v3666
        %3779 = vmatprep.subr.bf16.mxu0 0
        %3780 = vmatpush1.bf16.msra.mxu0 %v3667
        %3781 = vmatprep.subr.bf16.mxu0 0
        %3782 = vmatpush1.bf16.msra.mxu0 %v3668
        %3783 = vmatprep.subr.bf16.mxu0 0
        %3784 = vmatpush1.bf16.msra.mxu0 %v3669
        %3785 = vmatprep.subr.bf16.mxu0 0
        %3786 = vmatpush1.bf16.msra.mxu0 %v3670
        %3787 = vmatprep.subr.bf16.mxu0 0
        %3788 = vmatpush1.bf16.msra.mxu0 %v3671
        %3789 = vmatprep.subr.bf16.mxu0 0
        %3790 = vmatpush1.bf16.msra.mxu0 %v3672
        %3791 = vmatprep.subr.bf16.mxu0 0
        %3792 = vmatpush1.bf16.msra.mxu0 %v3673
        %3793 = vmatprep.subr.bf16.mxu0 0
        %3794 = vmatpush1.bf16.msra.mxu0 %v3674
        %3795 = vmatprep.subr.bf16.mxu0 0
        %3796 = vmatpush1.bf16.msra.mxu0 %v3675
        %3797 = vmatprep.mubr.bf16.mxu0 %v3477
        %3798 = vmatmul.mubr.bf16.gmra.mrb[0].mxu0 %v3476
        %v3799 = vpop.f32.mrb[0].mxu0
        %v3800 = vadd.f32 %v3759, %v3799
        %v3801 = vpop.f32.mrb[0].mxu0
        %v3802 = vpop.f32.mrb[0].mxu0
        %v3803 = vadd.f32 %v3762, %v3802
        %v3804 = vpop.f32.mrb[0].mxu0
        %3805 = vdwg.mxu0
        %3806 = vmatprep.subr.bf16.mxu0 0
        %3807 = vmatpush1.bf16.msra.mxu0 %v3676
        %3808 = vmatprep.subr.bf16.mxu0 0
        %3809 = vmatpush1.bf16.msra.mxu0 %v3677
        %3810 = vmatprep.subr.bf16.mxu0 0
        %3811 = vmatpush1.bf16.msra.mxu0 %v3678
        %3812 = vmatprep.subr.bf16.mxu0 0
        %3813 = vmatpush1.bf16.msra.mxu0 %v3679
        %3814 = vmatprep.subr.bf16.mxu0 0
        %3815 = vmatpush1.bf16.msra.mxu0 %v3680
        %3816 = vmatprep.subr.bf16.mxu0 0
        %3817 = vmatpush1.bf16.msra.mxu0 %v3681
        %3818 = vmatprep.subr.bf16.mxu0 0
        %3819 = vmatpush1.bf16.msra.mxu0 %v3682
        %3820 = vmatprep.subr.bf16.mxu0 0
        %3821 = vmatpush1.bf16.msra.mxu0 %v3683
        %3822 = vmatprep.subr.bf16.mxu0 0
        %3823 = vmatpush1.bf16.msra.mxu0 0
        %3824 = vmatprep.subr.bf16.mxu0 0
        %3825 = vmatpush1.bf16.msra.mxu0 0
        %3826 = vmatprep.subr.bf16.mxu0 0
        %3827 = vmatpush1.bf16.msra.mxu0 0
        %3828 = vmatprep.subr.bf16.mxu0 0
        %3829 = vmatpush1.bf16.msra.mxu0 0
        %3830 = vmatprep.subr.bf16.mxu0 0
        %3831 = vmatpush1.bf16.msra.mxu0 0
        %3832 = vmatprep.subr.bf16.mxu0 0
        %3833 = vmatpush1.bf16.msra.mxu0 0
        %3834 = vmatprep.subr.bf16.mxu0 0
        %3835 = vmatpush1.bf16.msra.mxu0 0
        %3836 = vmatprep.subr.bf16.mxu0 0
        %3837 = vmatpush1.bf16.msra.mxu0 0
        %3838 = vmatprep.mubr.bf16.mxu0 0
        %3839 = vmatmul.mubr.bf16.gmra.mrb[0].mxu0 %v3478
        %v3840 = vpop.f32.mrb[0].mxu0
        %v3841 = vadd.f32 %v3800, %v3840
        %v3842 = vpop.f32.mrb[0].mxu0
        %v3843 = vpop.f32.mrb[0].mxu0
        %v3844 = vadd.f32 %v3803, %v3843
        %v3845 = vpop.f32.mrb[0].mxu0
        %3846 = vdwg.mxu0
        %v3847 = vmax.f32 %v3841, 0.0
        %v3848 = vmax.f32 %v3844, 0.0
        %v3849 = vpack.c.bf16 %v3848, %v3847
        %3850 = vst.msk [vmem:[#allocation3 + $0x18] sm:$0xff] %vm920, %v3849
        %v3851 = vld [vmem:[%s372 + $0x8c] sm:$0xff]
        %v3852 = vld [vmem:[%s372 + $0x94] sm:$0xff]
        %v3853 = vld [vmem:[%s372 + $0x9c] sm:$0xf]
        %v3854 = vld [vmem:[%s372 + $0x12c] sm:$0xff]
        %v3855 = vld [vmem:[%s372 + $0x134] sm:$0xff]
        %v3856 = vld [vmem:[%s372 + $0x13c] sm:$0xf]
        %v3857 = vld [vmem:[%s1] sm:$0xf]
        %v3858 = vld [vmem:[%s1 + $0x4] sm:$0xf]
        %v3859 = vld [vmem:[%s1 + $0x8] sm:$0xf]
        %v3860 = vld [vmem:[%s1 + $0xc] sm:$0xf]
        %v3861 = vld [vmem:[%s1 + $0x10] sm:$0xf]
        %v3862 = vld [vmem:[%s1 + $0x14] sm:$0xf]
        %v3863 = vld [vmem:[%s1 + $0x18] sm:$0xf]
        %v3864 = vld [vmem:[%s1 + $0x1c] sm:$0xf]
        %v3865 = vld [vmem:[%s1 + $0x20] sm:$0xf]
        %v3866 = vld [vmem:[%s1 + $0x24] sm:$0xf]
        %v3867 = vld [vmem:[%s1 + $0x28] sm:$0xf]
        %v3868 = vld [vmem:[%s1 + $0x2c] sm:$0xf]
        %v3869 = vld [vmem:[%s1 + $0x30] sm:$0xf]
        %v3870 = vld [vmem:[%s1 + $0x34] sm:$0xf]
        %v3871 = vld [vmem:[%s1 + $0x38] sm:$0xf]
        %v3872 = vld [vmem:[%s1 + $0x3c] sm:$0xf]
        %v3873 = vld [vmem:[%s1 + $0x40] sm:$0xf]
        %v3874 = vld [vmem:[%s1 + $0x44] sm:$0xf]
        %v3875 = vld [vmem:[%s1 + $0x48] sm:$0xf]
        %v3876 = vld [vmem:[%s1 + $0x4c] sm:$0xf]
        %v3877 = vld [vmem:[%s1 + $0x50] sm:$0xf]
        %v3878 = vld [vmem:[%s1 + $0x54] sm:$0xf]
        %v3879 = vld [vmem:[%s1 + $0x58] sm:$0xf]
        %v3880 = vld [vmem:[%s1 + $0x5c] sm:$0xf]
        %v3881 = vld [vmem:[%s1 + $0x60] sm:$0xf]
        %v3882 = vld [vmem:[%s1 + $0x64] sm:$0xf]
        %v3883 = vld [vmem:[%s1 + $0x68] sm:$0xf]
        %v3884 = vld [vmem:[%s1 + $0x6c] sm:$0xf]
        %v3885 = vld [vmem:[%s1 + $0x70] sm:$0xf]
        %v3886 = vld [vmem:[%s1 + $0x74] sm:$0xf]
        %v3887 = vld [vmem:[%s1 + $0x78] sm:$0xf]
        %v3888 = vld [vmem:[%s1 + $0x7c] sm:$0xf]
        %v3889 = vld [vmem:[%s1 + $0x80] sm:$0xf]
        %v3890 = vld [vmem:[%s1 + $0x84] sm:$0xf]
        %v3891 = vld [vmem:[%s1 + $0x88] sm:$0xf]
        %v3892 = vld [vmem:[%s1 + $0x8c] sm:$0xf]
        %v3893 = vld [vmem:[%s1 + $0x90] sm:$0xf]
        %v3894 = vld [vmem:[%s1 + $0x94] sm:$0xf]
        %v3895 = vld [vmem:[%s1 + $0x98] sm:$0xf]
        %v3896 = vld [vmem:[%s1 + $0x9c] sm:$0xf]
        %v3897 = vld [vmem:[%s1 + $0xa0] sm:$0xf]
        %v3898 = vld [vmem:[%s1 + $0xa4] sm:$0xf]
        %v3899 = vld [vmem:[%s1 + $0xa8] sm:$0xf]
        %v3900 = vld [vmem:[%s1 + $0xac] sm:$0xf]
        %v3901 = vld [vmem:[%s1 + $0xb0] sm:$0xf]
        %v3902 = vld [vmem:[%s1 + $0xb4] sm:$0xf]
        %v3903 = vld [vmem:[%s1 + $0xb8] sm:$0xf]
        %v3904 = vld [vmem:[%s1 + $0xbc] sm:$0xf]
        %v3905 = vld [vmem:[%s1 + $0xc0] sm:$0xf]
        %v3906 = vld [vmem:[%s1 + $0xc4] sm:$0xf]
        %v3907 = vld [vmem:[%s1 + $0xc8] sm:$0xf]
        %v3908 = vld [vmem:[%s1 + $0xcc] sm:$0xf]
        %v3909 = vld [vmem:[%s1 + $0xd0] sm:$0xf]
        %v3910 = vld [vmem:[%s1 + $0xd4] sm:$0xf]
        %v3911 = vld [vmem:[%s1 + $0xd8] sm:$0xf]
        %v3912 = vld [vmem:[%s1 + $0xdc] sm:$0xf]
        %v3913 = vld [vmem:[%s1 + $0xe0] sm:$0xf]
        %v3914 = vld [vmem:[%s1 + $0xe4] sm:$0xf]
        %v3915 = vld [vmem:[%s1 + $0xe8] sm:$0xf]
        %v3916 = vld [vmem:[%s1 + $0xec] sm:$0xf]
        %v3917 = vld [vmem:[%s1 + $0xf0] sm:$0xf]
        %v3918 = vld [vmem:[%s1 + $0xf4] sm:$0xf]
        %v3919 = vld [vmem:[%s1 + $0xf8] sm:$0xf]
        %v3920 = vld [vmem:[%s1 + $0xfc] sm:$0xf]
        %v3921 = vld [vmem:[%s1 + $0x100] sm:$0xf]
        %v3922 = vld [vmem:[%s1 + $0x104] sm:$0xf]
        %v3923 = vld [vmem:[%s1 + $0x108] sm:$0xf]
        %v3924 = vld [vmem:[%s1 + $0x10c] sm:$0xf]
        %v3925 = vld [vmem:[%s1 + $0x110] sm:$0xf]
        %v3926 = vld [vmem:[%s1 + $0x114] sm:$0xf]
        %v3927 = vld [vmem:[%s1 + $0x118] sm:$0xf]
        %v3928 = vld [vmem:[%s1 + $0x11c] sm:$0xf]
        %v3929 = vld [vmem:[%s1 + $0x120] sm:$0xf]
        %v3930 = vld [vmem:[%s1 + $0x124] sm:$0xf]
        %v3931 = vld [vmem:[%s1 + $0x128] sm:$0xf]
        %v3932 = vld [vmem:[%s1 + $0x12c] sm:$0xf]
        %v3933 = vld [vmem:[%s1 + $0x130] sm:$0xf]
        %v3934 = vld [vmem:[%s1 + $0x134] sm:$0xf]
        %v3935 = vld [vmem:[%s1 + $0x138] sm:$0xf]
        %v3936 = vld [vmem:[%s1 + $0x13c] sm:$0xf]
        %v3937 = vld [vmem:[%s2] sm:$0x1]
        %v3939 = vlaneseq
        %v3940 = vshrl.u32 %v3939, 7
        %v3941 = vsub.s32 0, %v3940
        %v3942 = vrot.slane %v3937, %v3941
        %v3950 = vunpack.c.l.b16 %v3851
        %v3951 = vunpack.c.h.b16 %v3851
        %v3952 = vunpack.c.l.b16 %v3852
        %v3953 = vunpack.c.h.b16 %v3852
        %v3954 = vunpack.c.l.b16 %v3853
        %v3955 = vunpack.c.l.b16 %v3854
        %v3956 = vunpack.c.h.b16 %v3854
        %v3957 = vunpack.c.l.b16 %v3855
        %v3958 = vunpack.c.h.b16 %v3855
        %v3959 = vunpack.c.l.b16 %v3856
        %v3960 = vpack.c.b16 %v3955, %v3950
        %v3961 = vpack.c.b16 %v3956, %v3951
        %v3962 = vpack.c.b16 %v3957, %v3952
        %v3963 = vpack.c.b16 %v3958, %v3953
        %v3964 = vpack.c.b16 %v3959, %v3954
        %v4050 = vunpack.c.l.b16 %v3857
        %v4051 = vunpack.c.l.b16 %v3858
        %v4052 = vunpack.c.l.b16 %v3859
        %v4053 = vunpack.c.l.b16 %v3860
        %v4054 = vunpack.c.l.b16 %v3861
        %v4055 = vunpack.c.l.b16 %v3862
        %v4056 = vunpack.c.l.b16 %v3863
        %v4057 = vunpack.c.l.b16 %v3864
        %v4058 = vunpack.c.l.b16 %v3865
        %v4059 = vunpack.c.l.b16 %v3866
        %v4060 = vunpack.c.l.b16 %v3867
        %v4061 = vunpack.c.l.b16 %v3868
        %v4062 = vunpack.c.l.b16 %v3869
        %v4063 = vunpack.c.l.b16 %v3870
        %v4064 = vunpack.c.l.b16 %v3871
        %v4065 = vunpack.c.l.b16 %v3872
        %v4066 = vunpack.c.l.b16 %v3873
        %v4067 = vunpack.c.l.b16 %v3874
        %v4068 = vunpack.c.l.b16 %v3875
        %v4069 = vunpack.c.l.b16 %v3876
        %v4070 = vunpack.c.l.b16 %v3877
        %v4071 = vunpack.c.l.b16 %v3878
        %v4072 = vunpack.c.l.b16 %v3879
        %v4073 = vunpack.c.l.b16 %v3880
        %v4074 = vunpack.c.l.b16 %v3881
        %v4075 = vunpack.c.l.b16 %v3882
        %v4076 = vunpack.c.l.b16 %v3883
        %v4077 = vunpack.c.l.b16 %v3884
        %v4078 = vunpack.c.l.b16 %v3885
        %v4079 = vunpack.c.l.b16 %v3886
        %v4080 = vunpack.c.l.b16 %v3887
        %v4081 = vunpack.c.l.b16 %v3888
        %v4082 = vunpack.c.l.b16 %v3889
        %v4083 = vunpack.c.l.b16 %v3890
        %v4084 = vunpack.c.l.b16 %v3891
        %v4085 = vunpack.c.l.b16 %v3892
        %v4086 = vunpack.c.l.b16 %v3893
        %v4087 = vunpack.c.l.b16 %v3894
        %v4088 = vunpack.c.l.b16 %v3895
        %v4089 = vunpack.c.l.b16 %v3896
        %v4090 = vunpack.c.l.b16 %v3897
        %v4091 = vunpack.c.l.b16 %v3898
        %v4092 = vunpack.c.l.b16 %v3899
        %v4093 = vunpack.c.l.b16 %v3900
        %v4094 = vunpack.c.l.b16 %v3901
        %v4095 = vunpack.c.l.b16 %v3902
        %v4096 = vunpack.c.l.b16 %v3903
        %v4097 = vunpack.c.l.b16 %v3904
        %v4098 = vunpack.c.l.b16 %v3905
        %v4099 = vunpack.c.l.b16 %v3906
        %v4100 = vunpack.c.l.b16 %v3907
        %v4101 = vunpack.c.l.b16 %v3908
        %v4102 = vunpack.c.l.b16 %v3909
        %v4103 = vunpack.c.l.b16 %v3910
        %v4104 = vunpack.c.l.b16 %v3911
        %v4105 = vunpack.c.l.b16 %v3912
        %v4106 = vunpack.c.l.b16 %v3913
        %v4107 = vunpack.c.l.b16 %v3914
        %v4108 = vunpack.c.l.b16 %v3915
        %v4109 = vunpack.c.l.b16 %v3916
        %v4110 = vunpack.c.l.b16 %v3917
        %v4111 = vunpack.c.l.b16 %v3918
        %v4112 = vunpack.c.l.b16 %v3919
        %v4113 = vunpack.c.l.b16 %v3920
        %v4114 = vunpack.c.l.b16 %v3921
        %v4115 = vunpack.c.l.b16 %v3922
        %v4116 = vunpack.c.l.b16 %v3923
        %v4117 = vunpack.c.l.b16 %v3924
        %v4118 = vunpack.c.l.b16 %v3925
        %v4119 = vunpack.c.l.b16 %v3926
        %v4120 = vunpack.c.l.b16 %v3927
        %v4121 = vunpack.c.l.b16 %v3928
        %v4122 = vunpack.c.l.b16 %v3929
        %v4123 = vunpack.c.l.b16 %v3930
        %v4124 = vunpack.c.l.b16 %v3931
        %v4125 = vunpack.c.l.b16 %v3932
        %v4126 = vunpack.c.l.b16 %v3933
        %v4127 = vunpack.c.l.b16 %v3934
        %v4128 = vunpack.c.l.b16 %v3935
        %v4129 = vunpack.c.l.b16 %v3936
        %v4130 = vpack.c.b16 %v4051, %v4050
        %v4131 = vpack.c.b16 %v4053, %v4052
        %v4132 = vpack.c.b16 %v4055, %v4054
        %v4133 = vpack.c.b16 %v4057, %v4056
        %v4134 = vpack.c.b16 %v4059, %v4058
        %v4135 = vpack.c.b16 %v4061, %v4060
        %v4136 = vpack.c.b16 %v4063, %v4062
        %v4137 = vpack.c.b16 %v4065, %v4064
        %v4138 = vpack.c.b16 %v4067, %v4066
        %v4139 = vpack.c.b16 %v4069, %v4068
        %v4140 = vpack.c.b16 %v4071, %v4070
        %v4141 = vpack.c.b16 %v4073, %v4072
        %v4142 = vpack.c.b16 %v4075, %v4074
        %v4143 = vpack.c.b16 %v4077, %v4076
        %v4144 = vpack.c.b16 %v4079, %v4078
        %v4145 = vpack.c.b16 %v4081, %v4080
        %v4146 = vpack.c.b16 %v4083, %v4082
        %v4147 = vpack.c.b16 %v4085, %v4084
        %v4148 = vpack.c.b16 %v4087, %v4086
        %v4149 = vpack.c.b16 %v4089, %v4088
        %v4150 = vpack.c.b16 %v4091, %v4090
        %v4151 = vpack.c.b16 %v4093, %v4092
        %v4152 = vpack.c.b16 %v4095, %v4094
        %v4153 = vpack.c.b16 %v4097, %v4096
        %v4154 = vpack.c.b16 %v4099, %v4098
        %v4155 = vpack.c.b16 %v4101, %v4100
        %v4156 = vpack.c.b16 %v4103, %v4102
        %v4157 = vpack.c.b16 %v4105, %v4104
        %v4158 = vpack.c.b16 %v4107, %v4106
        %v4159 = vpack.c.b16 %v4109, %v4108
        %v4160 = vpack.c.b16 %v4111, %v4110
        %v4161 = vpack.c.b16 %v4113, %v4112
        %v4162 = vpack.c.b16 %v4115, %v4114
        %v4163 = vpack.c.b16 %v4117, %v4116
        %v4164 = vpack.c.b16 %v4119, %v4118
        %v4165 = vpack.c.b16 %v4121, %v4120
        %v4166 = vpack.c.b16 %v4123, %v4122
        %v4167 = vpack.c.b16 %v4125, %v4124
        %v4168 = vpack.c.b16 %v4127, %v4126
        %v4169 = vpack.c.b16 %v4129, %v4128
        %4210 = vmatprep.subr.bf16.mxu0 0
        %4211 = vmatpush1.bf16.msra.mxu0 %v4130
        %4212 = vmatprep.subr.bf16.mxu0 0
        %4213 = vmatpush1.bf16.msra.mxu0 %v4131
        %4214 = vmatprep.subr.bf16.mxu0 0
        %4215 = vmatpush1.bf16.msra.mxu0 %v4132
        %4216 = vmatprep.subr.bf16.mxu0 0
        %4217 = vmatpush1.bf16.msra.mxu0 %v4133
        %4218 = vmatprep.subr.bf16.mxu0 0
        %4219 = vmatpush1.bf16.msra.mxu0 %v4134
        %4220 = vmatprep.subr.bf16.mxu0 0
        %4221 = vmatpush1.bf16.msra.mxu0 %v4135
        %4222 = vmatprep.subr.bf16.mxu0 0
        %4223 = vmatpush1.bf16.msra.mxu0 %v4136
        %4224 = vmatprep.subr.bf16.mxu0 0
        %4225 = vmatpush1.bf16.msra.mxu0 %v4137
        %4226 = vmatprep.subr.bf16.mxu0 0
        %4227 = vmatpush1.bf16.msra.mxu0 %v4138
        %4228 = vmatprep.subr.bf16.mxu0 0
        %4229 = vmatpush1.bf16.msra.mxu0 %v4139
        %4230 = vmatprep.subr.bf16.mxu0 0
        %4231 = vmatpush1.bf16.msra.mxu0 %v4140
        %4232 = vmatprep.subr.bf16.mxu0 0
        %4233 = vmatpush1.bf16.msra.mxu0 %v4141
        %4234 = vmatprep.subr.bf16.mxu0 0
        %4235 = vmatpush1.bf16.msra.mxu0 %v4142
        %4236 = vmatprep.subr.bf16.mxu0 0
        %4237 = vmatpush1.bf16.msra.mxu0 %v4143
        %4238 = vmatprep.subr.bf16.mxu0 0
        %4239 = vmatpush1.bf16.msra.mxu0 %v4144
        %4240 = vmatprep.subr.bf16.mxu0 0
        %4241 = vmatpush1.bf16.msra.mxu0 %v4145
        %4242 = vmatprep.mubr.bf16.mxu0 %v3961
        %4243 = vmatmul.mubr.bf16.gmra.mrb[0].mxu0 %v3960
        %v4244 = vpop.f32.mrb[0].mxu0
        %v4245 = vadd.f32 %v3942, %v4244
        %v4246 = vpop.f32.mrb[0].mxu0
        %v4247 = vpop.f32.mrb[0].mxu0
        %v4248 = vadd.f32 %v3942, %v4247
        %v4249 = vpop.f32.mrb[0].mxu0
        %4250 = vdwg.mxu0
        %4251 = vmatprep.subr.bf16.mxu0 0
        %4252 = vmatpush1.bf16.msra.mxu0 %v4146
        %4253 = vmatprep.subr.bf16.mxu0 0
        %4254 = vmatpush1.bf16.msra.mxu0 %v4147
        %4255 = vmatprep.subr.bf16.mxu0 0
        %4256 = vmatpush1.bf16.msra.mxu0 %v4148
        %4257 = vmatprep.subr.bf16.mxu0 0
        %4258 = vmatpush1.bf16.msra.mxu0 %v4149
        %4259 = vmatprep.subr.bf16.mxu0 0
        %4260 = vmatpush1.bf16.msra.mxu0 %v4150
        %4261 = vmatprep.subr.bf16.mxu0 0
        %4262 = vmatpush1.bf16.msra.mxu0 %v4151
        %4263 = vmatprep.subr.bf16.mxu0 0
        %4264 = vmatpush1.bf16.msra.mxu0 %v4152
        %4265 = vmatprep.subr.bf16.mxu0 0
        %4266 = vmatpush1.bf16.msra.mxu0 %v4153
        %4267 = vmatprep.subr.bf16.mxu0 0
        %4268 = vmatpush1.bf16.msra.mxu0 %v4154
        %4269 = vmatprep.subr.bf16.mxu0 0
        %4270 = vmatpush1.bf16.msra.mxu0 %v4155
        %4271 = vmatprep.subr.bf16.mxu0 0
        %4272 = vmatpush1.bf16.msra.mxu0 %v4156
        %4273 = vmatprep.subr.bf16.mxu0 0
        %4274 = vmatpush1.bf16.msra.mxu0 %v4157
        %4275 = vmatprep.subr.bf16.mxu0 0
        %4276 = vmatpush1.bf16.msra.mxu0 %v4158
        %4277 = vmatprep.subr.bf16.mxu0 0
        %4278 = vmatpush1.bf16.msra.mxu0 %v4159
        %4279 = vmatprep.subr.bf16.mxu0 0
        %4280 = vmatpush1.bf16.msra.mxu0 %v4160
        %4281 = vmatprep.subr.bf16.mxu0 0
        %4282 = vmatpush1.bf16.msra.mxu0 %v4161
        %4283 = vmatprep.mubr.bf16.mxu0 %v3963
        %4284 = vmatmul.mubr.bf16.gmra.mrb[0].mxu0 %v3962
        %v4285 = vpop.f32.mrb[0].mxu0
        %v4286 = vadd.f32 %v4245, %v4285
        %v4287 = vpop.f32.mrb[0].mxu0
        %v4288 = vpop.f32.mrb[0].mxu0
        %v4289 = vadd.f32 %v4248, %v4288
        %v4290 = vpop.f32.mrb[0].mxu0
        %4291 = vdwg.mxu0
        %4292 = vmatprep.subr.bf16.mxu0 0
        %4293 = vmatpush1.bf16.msra.mxu0 %v4162
        %4294 = vmatprep.subr.bf16.mxu0 0
        %4295 = vmatpush1.bf16.msra.mxu0 %v4163
        %4296 = vmatprep.subr.bf16.mxu0 0
        %4297 = vmatpush1.bf16.msra.mxu0 %v4164
        %4298 = vmatprep.subr.bf16.mxu0 0
        %4299 = vmatpush1.bf16.msra.mxu0 %v4165
        %4300 = vmatprep.subr.bf16.mxu0 0
        %4301 = vmatpush1.bf16.msra.mxu0 %v4166
        %4302 = vmatprep.subr.bf16.mxu0 0
        %4303 = vmatpush1.bf16.msra.mxu0 %v4167
        %4304 = vmatprep.subr.bf16.mxu0 0
        %4305 = vmatpush1.bf16.msra.mxu0 %v4168
        %4306 = vmatprep.subr.bf16.mxu0 0
        %4307 = vmatpush1.bf16.msra.mxu0 %v4169
        %4308 = vmatprep.subr.bf16.mxu0 0
        %4309 = vmatpush1.bf16.msra.mxu0 0
        %4310 = vmatprep.subr.bf16.mxu0 0
        %4311 = vmatpush1.bf16.msra.mxu0 0
        %4312 = vmatprep.subr.bf16.mxu0 0
        %4313 = vmatpush1.bf16.msra.mxu0 0
        %4314 = vmatprep.subr.bf16.mxu0 0
        %4315 = vmatpush1.bf16.msra.mxu0 0
        %4316 = vmatprep.subr.bf16.mxu0 0
        %4317 = vmatpush1.bf16.msra.mxu0 0
        %4318 = vmatprep.subr.bf16.mxu0 0
        %4319 = vmatpush1.bf16.msra.mxu0 0
        %4320 = vmatprep.subr.bf16.mxu0 0
        %4321 = vmatpush1.bf16.msra.mxu0 0
        %4322 = vmatprep.subr.bf16.mxu0 0
        %4323 = vmatpush1.bf16.msra.mxu0 0
        %4324 = vmatprep.mubr.bf16.mxu0 0
        %4325 = vmatmul.mubr.bf16.gmra.mrb[0].mxu0 %v3964
        %v4326 = vpop.f32.mrb[0].mxu0
        %v4327 = vadd.f32 %v4286, %v4326
        %v4328 = vpop.f32.mrb[0].mxu0
        %v4329 = vpop.f32.mrb[0].mxu0
        %v4330 = vadd.f32 %v4289, %v4329
        %v4331 = vpop.f32.mrb[0].mxu0
        %4332 = vdwg.mxu0
        %v4333 = vmax.f32 %v4327, 0.0
        %v4334 = vmax.f32 %v4330, 0.0
        %v4335 = vpack.c.bf16 %v4334, %v4333
        %4337 = vrot.lane.b32.xlu0 %v4335, 64
        %v4338 = vpop.permute.xlu0 %4337
        %4340 = vst.msk [vmem:[#allocation3 + $0x18] sm:$0xff] %vm1411, %v4338
        %v4341 = vld [vmem:[#allocation2] sm:$0xff]
        %v4342 = vld [vmem:[#allocation2 + $0x8] sm:$0xff]
        %v4343 = vld [vmem:[#allocation2 + $0x10] sm:$0xff]
        %v4344 = vld [vmem:[#allocation2 + $0x18] sm:$0xff]
        %v4345 = vld [vmem:[#allocation2 + $0x20] sm:$0xff]
        %v4346 = vld [vmem:[#allocation2 + $0x28] sm:$0xff]
        %v4347 = vld [vmem:[#allocation2 + $0x30] sm:$0xff]
        %v4348 = vld [vmem:[#allocation2 + $0x38] sm:$0xff]
        %v4349 = vld [vmem:[#allocation3] sm:$0xff]
        %v4350 = vld [vmem:[#allocation3 + $0x8] sm:$0xff]
        %v4351 = vld [vmem:[#allocation3 + $0x10] sm:$0xff]
        %v4352 = vld [vmem:[#allocation3 + $0x18] sm:$0xff]
        %v4353 = vld [vmem:[%s414] sm:$0xff]
        %v4354 = vld [vmem:[%s414 + $0x8] sm:$0xff]
        %v4355 = vld [vmem:[%s414 + $0x10] sm:$0xff]
        %v4356 = vld [vmem:[%s414 + $0x18] sm:$0xff]
        %v4357 = vld [vmem:[%s414 + $0x20] sm:$0xff]
        %v4358 = vld [vmem:[%s414 + $0x28] sm:$0xff]
        %v4359 = vld [vmem:[%s414 + $0x30] sm:$0xff]
        %v4360 = vld [vmem:[%s414 + $0x38] sm:$0xff]
        %v4361 = vld [vmem:[%s414 + $0x40] sm:$0xff]
        %v4362 = vld [vmem:[%s414 + $0x48] sm:$0xff]
        %v4363 = vld [vmem:[%s414 + $0x50] sm:$0xff]
        %v4364 = vld [vmem:[%s414 + $0x58] sm:$0xff]
        %v4365 = vld [vmem:[%s414 + $0x60] sm:$0xff]
        %v4366 = vld [vmem:[%s414 + $0x68] sm:$0xff]
        %v4367 = vld [vmem:[%s414 + $0x70] sm:$0xff]
        %v4368 = vld [vmem:[%s414 + $0x78] sm:$0xff]
        %v4369 = vld [vmem:[%s414 + $0x80] sm:$0xff]
        %v4370 = vld [vmem:[%s414 + $0x88] sm:$0xff]
        %v4371 = vld [vmem:[%s414 + $0x90] sm:$0xff]
        %v4372 = vld [vmem:[%s414 + $0x98] sm:$0xff]
        %v4373 = vld [vmem:[%s414 + $0xa0] sm:$0xff]
        %v4374 = vld [vmem:[%s414 + $0xa8] sm:$0xff]
        %v4375 = vld [vmem:[%s414 + $0xb0] sm:$0xff]
        %v4376 = vld [vmem:[%s414 + $0xb8] sm:$0xff]
        %v4377 = vld [vmem:[%s414 + $0xc0] sm:$0xff]
        %v4378 = vld [vmem:[%s414 + $0xc8] sm:$0xff]
        %v4379 = vld [vmem:[%s414 + $0xd0] sm:$0xff]
        %v4380 = vld [vmem:[%s414 + $0xd8] sm:$0xff]
        %v4381 = vld [vmem:[%s414 + $0xe0] sm:$0xff]
        %v4382 = vld [vmem:[%s414 + $0xe8] sm:$0xff]
        %v4383 = vld [vmem:[%s414 + $0xf0] sm:$0xff]
        %v4384 = vld [vmem:[%s414 + $0xf8] sm:$0xff]
        %v4385 = vld [vmem:[%s414 + $0x100] sm:$0xff]
        %v4386 = vld [vmem:[%s414 + $0x108] sm:$0xff]
        %v4387 = vld [vmem:[%s414 + $0x110] sm:$0xff]
        %v4388 = vld [vmem:[%s414 + $0x118] sm:$0xff]
        %v4389 = vld [vmem:[%s414 + $0x120] sm:$0xff]
        %v4390 = vld [vmem:[%s414 + $0x128] sm:$0xff]
        %v4391 = vld [vmem:[%s414 + $0x130] sm:$0xff]
        %v4392 = vld [vmem:[%s414 + $0x138] sm:$0xff]
        %v4393 = vld [vmem:[%s414 + $0x140] sm:$0xff]
        %v4394 = vld [vmem:[%s414 + $0x148] sm:$0xff]
        %v4395 = vld [vmem:[%s414 + $0x150] sm:$0xff]
        %v4396 = vld [vmem:[%s414 + $0x158] sm:$0xff]
        %v4397 = vld [vmem:[%s414 + $0x160] sm:$0xff]
        %v4398 = vld [vmem:[%s414 + $0x168] sm:$0xff]
        %v4399 = vld [vmem:[%s414 + $0x170] sm:$0xff]
        %v4400 = vld [vmem:[%s414 + $0x178] sm:$0xff]
        %v4401 = vld [vmem:[%s414 + $0x180] sm:$0xff]
        %v4402 = vld [vmem:[%s414 + $0x188] sm:$0xff]
        %v4403 = vld [vmem:[%s414 + $0x190] sm:$0xff]
        %v4404 = vld [vmem:[%s414 + $0x198] sm:$0xff]
        %v4405 = vld [vmem:[%s414 + $0x1a0] sm:$0xff]
        %v4406 = vld [vmem:[%s414 + $0x1a8] sm:$0xff]
        %v4407 = vld [vmem:[%s414 + $0x1b0] sm:$0xff]
        %v4408 = vld [vmem:[%s414 + $0x1b8] sm:$0xff]
        %v4409 = vld [vmem:[%s414 + $0x1c0] sm:$0xff]
        %v4410 = vld [vmem:[%s414 + $0x1c8] sm:$0xff]
        %v4411 = vld [vmem:[%s414 + $0x1d0] sm:$0xff]
        %v4412 = vld [vmem:[%s414 + $0x1d8] sm:$0xff]
        %v4413 = vld [vmem:[%s414 + $0x1e0] sm:$0xff]
        %v4414 = vld [vmem:[%s414 + $0x1e8] sm:$0xff]
        %v4415 = vld [vmem:[%s414 + $0x1f0] sm:$0xff]
        %v4416 = vld [vmem:[%s414 + $0x1f8] sm:$0xff]
        %v4417 = vld [vmem:[%s414 + $0x200] sm:$0xff]
        %v4418 = vld [vmem:[%s414 + $0x208] sm:$0xff]
        %v4419 = vld [vmem:[%s414 + $0x210] sm:$0xff]
        %v4420 = vld [vmem:[%s414 + $0x218] sm:$0xff]
        %v4421 = vld [vmem:[%s414 + $0x220] sm:$0xff]
        %v4422 = vld [vmem:[%s414 + $0x228] sm:$0xff]
        %v4423 = vld [vmem:[%s414 + $0x230] sm:$0xff]
        %v4424 = vld [vmem:[%s414 + $0x238] sm:$0xff]
        %v4425 = vld [vmem:[%s414 + $0x240] sm:$0xff]
        %v4426 = vld [vmem:[%s414 + $0x248] sm:$0xff]
        %v4427 = vld [vmem:[%s414 + $0x250] sm:$0xff]
        %v4428 = vld [vmem:[%s414 + $0x258] sm:$0xff]
        %v4429 = vld [vmem:[%s414 + $0x260] sm:$0xff]
        %v4430 = vld [vmem:[%s414 + $0x268] sm:$0xff]
        %v4431 = vld [vmem:[%s414 + $0x270] sm:$0xff]
        %v4432 = vld [vmem:[%s414 + $0x278] sm:$0xff]
        %v4433 = vld [vmem:[%s414 + $0x280] sm:$0xff]
        %v4434 = vld [vmem:[%s414 + $0x288] sm:$0xff]
        %v4435 = vld [vmem:[%s414 + $0x290] sm:$0xff]
        %v4436 = vld [vmem:[%s414 + $0x298] sm:$0xff]
        %v4437 = vld [vmem:[%s414 + $0x2a0] sm:$0xff]
        %v4438 = vld [vmem:[%s414 + $0x2a8] sm:$0xff]
        %v4439 = vld [vmem:[%s414 + $0x2b0] sm:$0xff]
        %v4440 = vld [vmem:[%s414 + $0x2b8] sm:$0xff]
        %v4441 = vld [vmem:[%s414 + $0x2c0] sm:$0xff]
        %v4442 = vld [vmem:[%s414 + $0x2c8] sm:$0xff]
        %v4443 = vld [vmem:[%s414 + $0x2d0] sm:$0xff]
        %v4444 = vld [vmem:[%s414 + $0x2d8] sm:$0xff]
        %v4445 = vld [vmem:[%s414 + $0x2e0] sm:$0xff]
        %v4446 = vld [vmem:[%s414 + $0x2e8] sm:$0xff]
        %v4447 = vld [vmem:[%s414 + $0x2f0] sm:$0xff]
        %v4448 = vld [vmem:[%s414 + $0x2f8] sm:$0xff]
        %v4449 = vld [vmem:[%s414 + $0x300] sm:$0xff]
        %v4450 = vld [vmem:[%s414 + $0x308] sm:$0xff]
        %v4451 = vld [vmem:[%s414 + $0x310] sm:$0xff]
        %v4452 = vld [vmem:[%s414 + $0x318] sm:$0xff]
        %v4453 = vld [vmem:[%s414 + $0x320] sm:$0xff]
        %v4454 = vld [vmem:[%s414 + $0x328] sm:$0xff]
        %v4455 = vld [vmem:[%s414 + $0x330] sm:$0xff]
        %v4456 = vld [vmem:[%s414 + $0x338] sm:$0xff]
        %v4457 = vld [vmem:[%s414 + $0x340] sm:$0xff]
        %v4458 = vld [vmem:[%s414 + $0x348] sm:$0xff]
        %v4459 = vld [vmem:[%s414 + $0x350] sm:$0xff]
        %v4460 = vld [vmem:[%s414 + $0x358] sm:$0xff]
        %v4461 = vld [vmem:[%s414 + $0x360] sm:$0xff]
        %v4462 = vld [vmem:[%s414 + $0x368] sm:$0xff]
        %v4463 = vld [vmem:[%s414 + $0x370] sm:$0xff]
        %v4464 = vld [vmem:[%s414 + $0x378] sm:$0xff]
        %v4465 = vld [vmem:[%s414 + $0x380] sm:$0xff]
        %v4466 = vld [vmem:[%s414 + $0x388] sm:$0xff]
        %v4467 = vld [vmem:[%s414 + $0x390] sm:$0xff]
        %v4468 = vld [vmem:[%s414 + $0x398] sm:$0xff]
        %v4469 = vld [vmem:[%s414 + $0x3a0] sm:$0xff]
        %v4470 = vld [vmem:[%s414 + $0x3a8] sm:$0xff]
        %v4471 = vld [vmem:[%s414 + $0x3b0] sm:$0xff]
        %v4472 = vld [vmem:[%s414 + $0x3b8] sm:$0xff]
        %v4473 = vld [vmem:[%s414 + $0x3c0] sm:$0xff]
        %v4474 = vld [vmem:[%s414 + $0x3c8] sm:$0xff]
        %v4475 = vld [vmem:[%s414 + $0x3d0] sm:$0xff]
        %v4476 = vld [vmem:[%s414 + $0x3d8] sm:$0xff]
        %v4477 = vld [vmem:[%s414 + $0x3e0] sm:$0xff]
        %v4478 = vld [vmem:[%s414 + $0x3e8] sm:$0xff]
        %v4479 = vld [vmem:[%s414 + $0x3f0] sm:$0xff]
        %v4480 = vld [vmem:[%s414 + $0x3f8] sm:$0xff]
        %v4609 = vunpack.c.l.b16 %v4353
        %v4610 = vunpack.c.h.b16 %v4353
        %v4611 = vunpack.c.l.b16 %v4354
        %v4612 = vunpack.c.h.b16 %v4354
        %v4613 = vunpack.c.l.b16 %v4355
        %v4614 = vunpack.c.h.b16 %v4355
        %v4615 = vunpack.c.l.b16 %v4356
        %v4616 = vunpack.c.h.b16 %v4356
        %v4617 = vunpack.c.l.b16 %v4357
        %v4618 = vunpack.c.h.b16 %v4357
        %v4619 = vunpack.c.l.b16 %v4358
        %v4620 = vunpack.c.h.b16 %v4358
        %v4621 = vunpack.c.l.b16 %v4359
        %v4622 = vunpack.c.h.b16 %v4359
        %v4623 = vunpack.c.l.b16 %v4360
        %v4624 = vunpack.c.h.b16 %v4360
        %v4625 = vunpack.c.l.b16 %v4361
        %v4626 = vunpack.c.h.b16 %v4361
        %v4627 = vunpack.c.l.b16 %v4362
        %v4628 = vunpack.c.h.b16 %v4362
        %v4629 = vunpack.c.l.b16 %v4363
        %v4630 = vunpack.c.h.b16 %v4363
        %v4631 = vunpack.c.l.b16 %v4364
        %v4632 = vunpack.c.h.b16 %v4364
        %v4633 = vunpack.c.l.b16 %v4365
        %v4634 = vunpack.c.h.b16 %v4365
        %v4635 = vunpack.c.l.b16 %v4366
        %v4636 = vunpack.c.h.b16 %v4366
        %v4637 = vunpack.c.l.b16 %v4367
        %v4638 = vunpack.c.h.b16 %v4367
        %v4639 = vunpack.c.l.b16 %v4368
        %v4640 = vunpack.c.h.b16 %v4368
        %v4641 = vunpack.c.l.b16 %v4369
        %v4642 = vunpack.c.h.b16 %v4369
        %v4643 = vunpack.c.l.b16 %v4370
        %v4644 = vunpack.c.h.b16 %v4370
        %v4645 = vunpack.c.l.b16 %v4371
        %v4646 = vunpack.c.h.b16 %v4371
        %v4647 = vunpack.c.l.b16 %v4372
        %v4648 = vunpack.c.h.b16 %v4372
        %v4649 = vunpack.c.l.b16 %v4373
        %v4650 = vunpack.c.h.b16 %v4373
        %v4651 = vunpack.c.l.b16 %v4374
        %v4652 = vunpack.c.h.b16 %v4374
        %v4653 = vunpack.c.l.b16 %v4375
        %v4654 = vunpack.c.h.b16 %v4375
        %v4655 = vunpack.c.l.b16 %v4376
        %v4656 = vunpack.c.h.b16 %v4376
        %v4657 = vunpack.c.l.b16 %v4377
        %v4658 = vunpack.c.h.b16 %v4377
        %v4659 = vunpack.c.l.b16 %v4378
        %v4660 = vunpack.c.h.b16 %v4378
        %v4661 = vunpack.c.l.b16 %v4379
        %v4662 = vunpack.c.h.b16 %v4379
        %v4663 = vunpack.c.l.b16 %v4380
        %v4664 = vunpack.c.h.b16 %v4380
        %v4665 = vunpack.c.l.b16 %v4381
        %v4666 = vunpack.c.h.b16 %v4381
        %v4667 = vunpack.c.l.b16 %v4382
        %v4668 = vunpack.c.h.b16 %v4382
        %v4669 = vunpack.c.l.b16 %v4383
        %v4670 = vunpack.c.h.b16 %v4383
        %v4671 = vunpack.c.l.b16 %v4384
        %v4672 = vunpack.c.h.b16 %v4384
        %v4673 = vunpack.c.l.b16 %v4385
        %v4674 = vunpack.c.h.b16 %v4385
        %v4675 = vunpack.c.l.b16 %v4386
        %v4676 = vunpack.c.h.b16 %v4386
        %v4677 = vunpack.c.l.b16 %v4387
        %v4678 = vunpack.c.h.b16 %v4387
        %v4679 = vunpack.c.l.b16 %v4388
        %v4680 = vunpack.c.h.b16 %v4388
        %v4681 = vunpack.c.l.b16 %v4389
        %v4682 = vunpack.c.h.b16 %v4389
        %v4683 = vunpack.c.l.b16 %v4390
        %v4684 = vunpack.c.h.b16 %v4390
        %v4685 = vunpack.c.l.b16 %v4391
        %v4686 = vunpack.c.h.b16 %v4391
        %v4687 = vunpack.c.l.b16 %v4392
        %v4688 = vunpack.c.h.b16 %v4392
        %v4689 = vunpack.c.l.b16 %v4393
        %v4690 = vunpack.c.h.b16 %v4393
        %v4691 = vunpack.c.l.b16 %v4394
        %v4692 = vunpack.c.h.b16 %v4394
        %v4693 = vunpack.c.l.b16 %v4395
        %v4694 = vunpack.c.h.b16 %v4395
        %v4695 = vunpack.c.l.b16 %v4396
        %v4696 = vunpack.c.h.b16 %v4396
        %v4697 = vunpack.c.l.b16 %v4397
        %v4698 = vunpack.c.h.b16 %v4397
        %v4699 = vunpack.c.l.b16 %v4398
        %v4700 = vunpack.c.h.b16 %v4398
        %v4701 = vunpack.c.l.b16 %v4399
        %v4702 = vunpack.c.h.b16 %v4399
        %v4703 = vunpack.c.l.b16 %v4400
        %v4704 = vunpack.c.h.b16 %v4400
        %v4705 = vunpack.c.l.b16 %v4401
        %v4706 = vunpack.c.h.b16 %v4401
        %v4707 = vunpack.c.l.b16 %v4402
        %v4708 = vunpack.c.h.b16 %v4402
        %v4709 = vunpack.c.l.b16 %v4403
        %v4710 = vunpack.c.h.b16 %v4403
        %v4711 = vunpack.c.l.b16 %v4404
        %v4712 = vunpack.c.h.b16 %v4404
        %v4713 = vunpack.c.l.b16 %v4405
        %v4714 = vunpack.c.h.b16 %v4405
        %v4715 = vunpack.c.l.b16 %v4406
        %v4716 = vunpack.c.h.b16 %v4406
        %v4717 = vunpack.c.l.b16 %v4407
        %v4718 = vunpack.c.h.b16 %v4407
        %v4719 = vunpack.c.l.b16 %v4408
        %v4720 = vunpack.c.h.b16 %v4408
        %v4721 = vunpack.c.l.b16 %v4409
        %v4722 = vunpack.c.h.b16 %v4409
        %v4723 = vunpack.c.l.b16 %v4410
        %v4724 = vunpack.c.h.b16 %v4410
        %v4725 = vunpack.c.l.b16 %v4411
        %v4726 = vunpack.c.h.b16 %v4411
        %v4727 = vunpack.c.l.b16 %v4412
        %v4728 = vunpack.c.h.b16 %v4412
        %v4729 = vunpack.c.l.b16 %v4413
        %v4730 = vunpack.c.h.b16 %v4413
        %v4731 = vunpack.c.l.b16 %v4414
        %v4732 = vunpack.c.h.b16 %v4414
        %v4733 = vunpack.c.l.b16 %v4415
        %v4734 = vunpack.c.h.b16 %v4415
        %v4735 = vunpack.c.l.b16 %v4416
        %v4736 = vunpack.c.h.b16 %v4416
        %v4737 = vunpack.c.l.b16 %v4417
        %v4738 = vunpack.c.h.b16 %v4417
        %v4739 = vunpack.c.l.b16 %v4418
        %v4740 = vunpack.c.h.b16 %v4418
        %v4741 = vunpack.c.l.b16 %v4419
        %v4742 = vunpack.c.h.b16 %v4419
        %v4743 = vunpack.c.l.b16 %v4420
        %v4744 = vunpack.c.h.b16 %v4420
        %v4745 = vunpack.c.l.b16 %v4421
        %v4746 = vunpack.c.h.b16 %v4421
        %v4747 = vunpack.c.l.b16 %v4422
        %v4748 = vunpack.c.h.b16 %v4422
        %v4749 = vunpack.c.l.b16 %v4423
        %v4750 = vunpack.c.h.b16 %v4423
        %v4751 = vunpack.c.l.b16 %v4424
        %v4752 = vunpack.c.h.b16 %v4424
        %v4753 = vunpack.c.l.b16 %v4425
        %v4754 = vunpack.c.h.b16 %v4425
        %v4755 = vunpack.c.l.b16 %v4426
        %v4756 = vunpack.c.h.b16 %v4426
        %v4757 = vunpack.c.l.b16 %v4427
        %v4758 = vunpack.c.h.b16 %v4427
        %v4759 = vunpack.c.l.b16 %v4428
        %v4760 = vunpack.c.h.b16 %v4428
        %v4761 = vunpack.c.l.b16 %v4429
        %v4762 = vunpack.c.h.b16 %v4429
        %v4763 = vunpack.c.l.b16 %v4430
        %v4764 = vunpack.c.h.b16 %v4430
        %v4765 = vunpack.c.l.b16 %v4431
        %v4766 = vunpack.c.h.b16 %v4431
        %v4767 = vunpack.c.l.b16 %v4432
        %v4768 = vunpack.c.h.b16 %v4432
        %v4769 = vunpack.c.l.b16 %v4433
        %v4770 = vunpack.c.h.b16 %v4433
        %v4771 = vunpack.c.l.b16 %v4434
        %v4772 = vunpack.c.h.b16 %v4434
        %v4773 = vunpack.c.l.b16 %v4435
        %v4774 = vunpack.c.h.b16 %v4435
        %v4775 = vunpack.c.l.b16 %v4436
        %v4776 = vunpack.c.h.b16 %v4436
        %v4777 = vunpack.c.l.b16 %v4437
        %v4778 = vunpack.c.h.b16 %v4437
        %v4779 = vunpack.c.l.b16 %v4438
        %v4780 = vunpack.c.h.b16 %v4438
        %v4781 = vunpack.c.l.b16 %v4439
        %v4782 = vunpack.c.h.b16 %v4439
        %v4783 = vunpack.c.l.b16 %v4440
        %v4784 = vunpack.c.h.b16 %v4440
        %v4785 = vunpack.c.l.b16 %v4441
        %v4786 = vunpack.c.h.b16 %v4441
        %v4787 = vunpack.c.l.b16 %v4442
        %v4788 = vunpack.c.h.b16 %v4442
        %v4789 = vunpack.c.l.b16 %v4443
        %v4790 = vunpack.c.h.b16 %v4443
        %v4791 = vunpack.c.l.b16 %v4444
        %v4792 = vunpack.c.h.b16 %v4444
        %v4793 = vunpack.c.l.b16 %v4445
        %v4794 = vunpack.c.h.b16 %v4445
        %v4795 = vunpack.c.l.b16 %v4446
        %v4796 = vunpack.c.h.b16 %v4446
        %v4797 = vunpack.c.l.b16 %v4447
        %v4798 = vunpack.c.h.b16 %v4447
        %v4799 = vunpack.c.l.b16 %v4448
        %v4800 = vunpack.c.h.b16 %v4448
        %v4801 = vunpack.c.l.b16 %v4449
        %v4802 = vunpack.c.h.b16 %v4449
        %v4803 = vunpack.c.l.b16 %v4450
        %v4804 = vunpack.c.h.b16 %v4450
        %v4805 = vunpack.c.l.b16 %v4451
        %v4806 = vunpack.c.h.b16 %v4451
        %v4807 = vunpack.c.l.b16 %v4452
        %v4808 = vunpack.c.h.b16 %v4452
        %v4809 = vunpack.c.l.b16 %v4453
        %v4810 = vunpack.c.h.b16 %v4453
        %v4811 = vunpack.c.l.b16 %v4454
        %v4812 = vunpack.c.h.b16 %v4454
        %v4813 = vunpack.c.l.b16 %v4455
        %v4814 = vunpack.c.h.b16 %v4455
        %v4815 = vunpack.c.l.b16 %v4456
        %v4816 = vunpack.c.h.b16 %v4456
        %v4817 = vunpack.c.l.b16 %v4457
        %v4818 = vunpack.c.h.b16 %v4457
        %v4819 = vunpack.c.l.b16 %v4458
        %v4820 = vunpack.c.h.b16 %v4458
        %v4821 = vunpack.c.l.b16 %v4459
        %v4822 = vunpack.c.h.b16 %v4459
        %v4823 = vunpack.c.l.b16 %v4460
        %v4824 = vunpack.c.h.b16 %v4460
        %v4825 = vunpack.c.l.b16 %v4461
        %v4826 = vunpack.c.h.b16 %v4461
        %v4827 = vunpack.c.l.b16 %v4462
        %v4828 = vunpack.c.h.b16 %v4462
        %v4829 = vunpack.c.l.b16 %v4463
        %v4830 = vunpack.c.h.b16 %v4463
        %v4831 = vunpack.c.l.b16 %v4464
        %v4832 = vunpack.c.h.b16 %v4464
        %v4833 = vunpack.c.l.b16 %v4465
        %v4834 = vunpack.c.h.b16 %v4465
        %v4835 = vunpack.c.l.b16 %v4466
        %v4836 = vunpack.c.h.b16 %v4466
        %v4837 = vunpack.c.l.b16 %v4467
        %v4838 = vunpack.c.h.b16 %v4467
        %v4839 = vunpack.c.l.b16 %v4468
        %v4840 = vunpack.c.h.b16 %v4468
        %v4841 = vunpack.c.l.b16 %v4469
        %v4842 = vunpack.c.h.b16 %v4469
        %v4843 = vunpack.c.l.b16 %v4470
        %v4844 = vunpack.c.h.b16 %v4470
        %v4845 = vunpack.c.l.b16 %v4471
        %v4846 = vunpack.c.h.b16 %v4471
        %v4847 = vunpack.c.l.b16 %v4472
        %v4848 = vunpack.c.h.b16 %v4472
        %v4849 = vunpack.c.l.b16 %v4473
        %v4850 = vunpack.c.h.b16 %v4473
        %v4851 = vunpack.c.l.b16 %v4474
        %v4852 = vunpack.c.h.b16 %v4474
        %v4853 = vunpack.c.l.b16 %v4475
        %v4854 = vunpack.c.h.b16 %v4475
        %v4855 = vunpack.c.l.b16 %v4476
        %v4856 = vunpack.c.h.b16 %v4476
        %v4857 = vunpack.c.l.b16 %v4477
        %v4858 = vunpack.c.h.b16 %v4477
        %v4859 = vunpack.c.l.b16 %v4478
        %v4860 = vunpack.c.h.b16 %v4478
        %v4861 = vunpack.c.l.b16 %v4479
        %v4862 = vunpack.c.h.b16 %v4479
        %v4863 = vunpack.c.l.b16 %v4480
        %v4864 = vunpack.c.h.b16 %v4480
        %v4865 = vpack.c.b16 %v4613, %v4609
        %v4866 = vpack.c.b16 %v4614, %v4610
        %v4867 = vpack.c.b16 %v4615, %v4611
        %v4868 = vpack.c.b16 %v4616, %v4612
        %v4869 = vpack.c.b16 %v4621, %v4617
        %v4870 = vpack.c.b16 %v4622, %v4618
        %v4871 = vpack.c.b16 %v4623, %v4619
        %v4872 = vpack.c.b16 %v4624, %v4620
        %v4873 = vpack.c.b16 %v4629, %v4625
        %v4874 = vpack.c.b16 %v4630, %v4626
        %v4875 = vpack.c.b16 %v4631, %v4627
        %v4876 = vpack.c.b16 %v4632, %v4628
        %v4877 = vpack.c.b16 %v4637, %v4633
        %v4878 = vpack.c.b16 %v4638, %v4634
        %v4879 = vpack.c.b16 %v4639, %v4635
        %v4880 = vpack.c.b16 %v4640, %v4636
        %v4881 = vpack.c.b16 %v4645, %v4641
        %v4882 = vpack.c.b16 %v4646, %v4642
        %v4883 = vpack.c.b16 %v4647, %v4643
        %v4884 = vpack.c.b16 %v4648, %v4644
        %v4885 = vpack.c.b16 %v4653, %v4649
        %v4886 = vpack.c.b16 %v4654, %v4650
        %v4887 = vpack.c.b16 %v4655, %v4651
        %v4888 = vpack.c.b16 %v4656, %v4652
        %v4889 = vpack.c.b16 %v4661, %v4657
        %v4890 = vpack.c.b16 %v4662, %v4658
        %v4891 = vpack.c.b16 %v4663, %v4659
        %v4892 = vpack.c.b16 %v4664, %v4660
        %v4893 = vpack.c.b16 %v4669, %v4665
        %v4894 = vpack.c.b16 %v4670, %v4666
        %v4895 = vpack.c.b16 %v4671, %v4667
        %v4896 = vpack.c.b16 %v4672, %v4668
        %v4897 = vpack.c.b16 %v4677, %v4673
        %v4898 = vpack.c.b16 %v4678, %v4674
        %v4899 = vpack.c.b16 %v4679, %v4675
        %v4900 = vpack.c.b16 %v4680, %v4676
        %v4901 = vpack.c.b16 %v4685, %v4681
        %v4902 = vpack.c.b16 %v4686, %v4682
        %v4903 = vpack.c.b16 %v4687, %v4683
        %v4904 = vpack.c.b16 %v4688, %v4684
        %v4905 = vpack.c.b16 %v4693, %v4689
        %v4906 = vpack.c.b16 %v4694, %v4690
        %v4907 = vpack.c.b16 %v4695, %v4691
        %v4908 = vpack.c.b16 %v4696, %v4692
        %v4909 = vpack.c.b16 %v4701, %v4697
        %v4910 = vpack.c.b16 %v4702, %v4698
        %v4911 = vpack.c.b16 %v4703, %v4699
        %v4912 = vpack.c.b16 %v4704, %v4700
        %v4913 = vpack.c.b16 %v4709, %v4705
        %v4914 = vpack.c.b16 %v4710, %v4706
        %v4915 = vpack.c.b16 %v4711, %v4707
        %v4916 = vpack.c.b16 %v4712, %v4708
        %v4917 = vpack.c.b16 %v4717, %v4713
        %v4918 = vpack.c.b16 %v4718, %v4714
        %v4919 = vpack.c.b16 %v4719, %v4715
        %v4920 = vpack.c.b16 %v4720, %v4716
        %v4921 = vpack.c.b16 %v4725, %v4721
        %v4922 = vpack.c.b16 %v4726, %v4722
        %v4923 = vpack.c.b16 %v4727, %v4723
        %v4924 = vpack.c.b16 %v4728, %v4724
        %v4925 = vpack.c.b16 %v4733, %v4729
        %v4926 = vpack.c.b16 %v4734, %v4730
        %v4927 = vpack.c.b16 %v4735, %v4731
        %v4928 = vpack.c.b16 %v4736, %v4732
        %v4929 = vpack.c.b16 %v4741, %v4737
        %v4930 = vpack.c.b16 %v4742, %v4738
        %v4931 = vpack.c.b16 %v4743, %v4739
        %v4932 = vpack.c.b16 %v4744, %v4740
        %v4933 = vpack.c.b16 %v4749, %v4745
        %v4934 = vpack.c.b16 %v4750, %v4746
        %v4935 = vpack.c.b16 %v4751, %v4747
        %v4936 = vpack.c.b16 %v4752, %v4748
        %v4937 = vpack.c.b16 %v4757, %v4753
        %v4938 = vpack.c.b16 %v4758, %v4754
        %v4939 = vpack.c.b16 %v4759, %v4755
        %v4940 = vpack.c.b16 %v4760, %v4756
        %v4941 = vpack.c.b16 %v4765, %v4761
        %v4942 = vpack.c.b16 %v4766, %v4762
        %v4943 = vpack.c.b16 %v4767, %v4763
        %v4944 = vpack.c.b16 %v4768, %v4764
        %v4945 = vpack.c.b16 %v4773, %v4769
        %v4946 = vpack.c.b16 %v4774, %v4770
        %v4947 = vpack.c.b16 %v4775, %v4771
        %v4948 = vpack.c.b16 %v4776, %v4772
        %v4949 = vpack.c.b16 %v4781, %v4777
        %v4950 = vpack.c.b16 %v4782, %v4778
        %v4951 = vpack.c.b16 %v4783, %v4779
        %v4952 = vpack.c.b16 %v4784, %v4780
        %v4953 = vpack.c.b16 %v4789, %v4785
        %v4954 = vpack.c.b16 %v4790, %v4786
        %v4955 = vpack.c.b16 %v4791, %v4787
        %v4956 = vpack.c.b16 %v4792, %v4788
        %v4957 = vpack.c.b16 %v4797, %v4793
        %v4958 = vpack.c.b16 %v4798, %v4794
        %v4959 = vpack.c.b16 %v4799, %v4795
        %v4960 = vpack.c.b16 %v4800, %v4796
        %v4961 = vpack.c.b16 %v4805, %v4801
        %v4962 = vpack.c.b16 %v4806, %v4802
        %v4963 = vpack.c.b16 %v4807, %v4803
        %v4964 = vpack.c.b16 %v4808, %v4804
        %v4965 = vpack.c.b16 %v4813, %v4809
        %v4966 = vpack.c.b16 %v4814, %v4810
        %v4967 = vpack.c.b16 %v4815, %v4811
        %v4968 = vpack.c.b16 %v4816, %v4812
        %v4969 = vpack.c.b16 %v4821, %v4817
        %v4970 = vpack.c.b16 %v4822, %v4818
        %v4971 = vpack.c.b16 %v4823, %v4819
        %v4972 = vpack.c.b16 %v4824, %v4820
        %v4973 = vpack.c.b16 %v4829, %v4825
        %v4974 = vpack.c.b16 %v4830, %v4826
        %v4975 = vpack.c.b16 %v4831, %v4827
        %v4976 = vpack.c.b16 %v4832, %v4828
        %v4977 = vpack.c.b16 %v4837, %v4833
        %v4978 = vpack.c.b16 %v4838, %v4834
        %v4979 = vpack.c.b16 %v4839, %v4835
        %v4980 = vpack.c.b16 %v4840, %v4836
        %v4981 = vpack.c.b16 %v4845, %v4841
        %v4982 = vpack.c.b16 %v4846, %v4842
        %v4983 = vpack.c.b16 %v4847, %v4843
        %v4984 = vpack.c.b16 %v4848, %v4844
        %v4985 = vpack.c.b16 %v4853, %v4849
        %v4986 = vpack.c.b16 %v4854, %v4850
        %v4987 = vpack.c.b16 %v4855, %v4851
        %v4988 = vpack.c.b16 %v4856, %v4852
        %v4989 = vpack.c.b16 %v4861, %v4857
        %v4990 = vpack.c.b16 %v4862, %v4858
        %v4991 = vpack.c.b16 %v4863, %v4859
        %v4992 = vpack.c.b16 %v4864, %v4860
        %5121 = vmatprep.subr.bf16.mxu0 %v4866
        %5122 = vmatpush1.bf16.msra.mxu0 %v4865
        %5123 = vmatprep.subr.bf16.mxu0 %v4870
        %5124 = vmatpush1.bf16.msra.mxu0 %v4869
        %5125 = vmatprep.subr.bf16.mxu0 %v4874
        %5126 = vmatpush1.bf16.msra.mxu0 %v4873
        %5127 = vmatprep.subr.bf16.mxu0 %v4878
        %5128 = vmatpush1.bf16.msra.mxu0 %v4877
        %5129 = vmatprep.subr.bf16.mxu0 %v4882
        %5130 = vmatpush1.bf16.msra.mxu0 %v4881
        %5131 = vmatprep.subr.bf16.mxu0 %v4886
        %5132 = vmatpush1.bf16.msra.mxu0 %v4885
        %5133 = vmatprep.subr.bf16.mxu0 %v4890
        %5134 = vmatpush1.bf16.msra.mxu0 %v4889
        %5135 = vmatprep.subr.bf16.mxu0 %v4894
        %5136 = vmatpush1.bf16.msra.mxu0 %v4893
        %5137 = vmatprep.subr.bf16.mxu0 %v4898
        %5138 = vmatpush1.bf16.msra.mxu0 %v4897
        %5139 = vmatprep.subr.bf16.mxu0 %v4902
        %5140 = vmatpush1.bf16.msra.mxu0 %v4901
        %5141 = vmatprep.subr.bf16.mxu0 %v4906
        %5142 = vmatpush1.bf16.msra.mxu0 %v4905
        %5143 = vmatprep.subr.bf16.mxu0 %v4910
        %5144 = vmatpush1.bf16.msra.mxu0 %v4909
        %5145 = vmatprep.subr.bf16.mxu0 %v4914
        %5146 = vmatpush1.bf16.msra.mxu0 %v4913
        %5147 = vmatprep.subr.bf16.mxu0 %v4918
        %5148 = vmatpush1.bf16.msra.mxu0 %v4917
        %5149 = vmatprep.subr.bf16.mxu0 %v4922
        %5150 = vmatpush1.bf16.msra.mxu0 %v4921
        %5151 = vmatprep.subr.bf16.mxu0 %v4926
        %5152 = vmatpush1.bf16.msra.mxu0 %v4925
        %5153 = vmatprep.mubr.bf16.mxu0 %v4350
        %5154 = vmatmul.mubr.bf16.gmra.mrb[0].mxu0 %v4349
        %v5155 = vpop.f32.mrb[0].mxu0
        %v5156 = vadd.f32 0.0, %v5155
        %v5157 = vpop.f32.mrb[0].mxu0
        %v5158 = vadd.f32 0.0, %v5157
        %v5159 = vpop.f32.mrb[0].mxu0
        %v5160 = vadd.f32 0.0, %v5159
        %v5161 = vpop.f32.mrb[0].mxu0
        %v5162 = vadd.f32 0.0, %v5161
        %5163 = vdwg.mxu0
        %5164 = vmatprep.subr.bf16.mxu0 %v4930
        %5165 = vmatpush1.bf16.msra.mxu0 %v4929
        %5166 = vmatprep.subr.bf16.mxu0 %v4934
        %5167 = vmatpush1.bf16.msra.mxu0 %v4933
        %5168 = vmatprep.subr.bf16.mxu0 %v4938
        %5169 = vmatpush1.bf16.msra.mxu0 %v4937
        %5170 = vmatprep.subr.bf16.mxu0 %v4942
        %5171 = vmatpush1.bf16.msra.mxu0 %v4941
        %5172 = vmatprep.subr.bf16.mxu0 %v4946
        %5173 = vmatpush1.bf16.msra.mxu0 %v4945
        %5174 = vmatprep.subr.bf16.mxu0 %v4950
        %5175 = vmatpush1.bf16.msra.mxu0 %v4949
        %5176 = vmatprep.subr.bf16.mxu0 %v4954
        %5177 = vmatpush1.bf16.msra.mxu0 %v4953
        %5178 = vmatprep.subr.bf16.mxu0 %v4958
        %5179 = vmatpush1.bf16.msra.mxu0 %v4957
        %5180 = vmatprep.subr.bf16.mxu0 %v4962
        %5181 = vmatpush1.bf16.msra.mxu0 %v4961
        %5182 = vmatprep.subr.bf16.mxu0 %v4966
        %5183 = vmatpush1.bf16.msra.mxu0 %v4965
        %5184 = vmatprep.subr.bf16.mxu0 %v4970
        %5185 = vmatpush1.bf16.msra.mxu0 %v4969
        %5186 = vmatprep.subr.bf16.mxu0 %v4974
        %5187 = vmatpush1.bf16.msra.mxu0 %v4973
        %5188 = vmatprep.subr.bf16.mxu0 %v4978
        %5189 = vmatpush1.bf16.msra.mxu0 %v4977
        %5190 = vmatprep.subr.bf16.mxu0 %v4982
        %5191 = vmatpush1.bf16.msra.mxu0 %v4981
        %5192 = vmatprep.subr.bf16.mxu0 %v4986
        %5193 = vmatpush1.bf16.msra.mxu0 %v4985
        %5194 = vmatprep.subr.bf16.mxu0 %v4990
        %5195 = vmatpush1.bf16.msra.mxu0 %v4989
        %5196 = vmatprep.mubr.bf16.mxu0 %v4352
        %5197 = vmatmul.mubr.bf16.gmra.mrb[0].mxu0 %v4351
        %v5198 = vpop.f32.mrb[0].mxu0
        %v5199 = vadd.f32 %v5156, %v5198
        %v5200 = vpop.f32.mrb[0].mxu0
        %v5201 = vadd.f32 %v5158, %v5200
        %v5202 = vpop.f32.mrb[0].mxu0
        %v5203 = vadd.f32 %v5160, %v5202
        %v5204 = vpop.f32.mrb[0].mxu0
        %v5205 = vadd.f32 %v5162, %v5204
        %5206 = vdwg.mxu0
        %5207 = vmatprep.subr.bf16.mxu0 %v4868
        %5208 = vmatpush1.bf16.msra.mxu0 %v4867
        %5209 = vmatprep.subr.bf16.mxu0 %v4872
        %5210 = vmatpush1.bf16.msra.mxu0 %v4871
        %5211 = vmatprep.subr.bf16.mxu0 %v4876
        %5212 = vmatpush1.bf16.msra.mxu0 %v4875
        %5213 = vmatprep.subr.bf16.mxu0 %v4880
        %5214 = vmatpush1.bf16.msra.mxu0 %v4879
        %5215 = vmatprep.subr.bf16.mxu0 %v4884
        %5216 = vmatpush1.bf16.msra.mxu0 %v4883
        %5217 = vmatprep.subr.bf16.mxu0 %v4888
        %5218 = vmatpush1.bf16.msra.mxu0 %v4887
        %5219 = vmatprep.subr.bf16.mxu0 %v4892
        %5220 = vmatpush1.bf16.msra.mxu0 %v4891
        %5221 = vmatprep.subr.bf16.mxu0 %v4896
        %5222 = vmatpush1.bf16.msra.mxu0 %v4895
        %5223 = vmatprep.subr.bf16.mxu0 %v4900
        %5224 = vmatpush1.bf16.msra.mxu0 %v4899
        %5225 = vmatprep.subr.bf16.mxu0 %v4904
        %5226 = vmatpush1.bf16.msra.mxu0 %v4903
        %5227 = vmatprep.subr.bf16.mxu0 %v4908
        %5228 = vmatpush1.bf16.msra.mxu0 %v4907
        %5229 = vmatprep.subr.bf16.mxu0 %v4912
        %5230 = vmatpush1.bf16.msra.mxu0 %v4911
        %5231 = vmatprep.subr.bf16.mxu0 %v4916
        %5232 = vmatpush1.bf16.msra.mxu0 %v4915
        %5233 = vmatprep.subr.bf16.mxu0 %v4920
        %5234 = vmatpush1.bf16.msra.mxu0 %v4919
        %5235 = vmatprep.subr.bf16.mxu0 %v4924
        %5236 = vmatpush1.bf16.msra.mxu0 %v4923
        %5237 = vmatprep.subr.bf16.mxu0 %v4928
        %5238 = vmatpush1.bf16.msra.mxu0 %v4927
        %5239 = vmatprep.mubr.bf16.mxu0 %v4350
        %5240 = vmatmul.mubr.bf16.gmra.mrb[0].mxu0 %v4349
        %v5241 = vpop.f32.mrb[0].mxu0
        %v5242 = vadd.f32 0.0, %v5241
        %v5243 = vpop.f32.mrb[0].mxu0
        %v5244 = vadd.f32 0.0, %v5243
        %v5245 = vpop.f32.mrb[0].mxu0
        %v5246 = vadd.f32 0.0, %v5245
        %v5247 = vpop.f32.mrb[0].mxu0
        %v5248 = vadd.f32 0.0, %v5247
        %5249 = vdwg.mxu0
        %5250 = vmatprep.subr.bf16.mxu0 %v4932
        %5251 = vmatpush1.bf16.msra.mxu0 %v4931
        %5252 = vmatprep.subr.bf16.mxu0 %v4936
        %5253 = vmatpush1.bf16.msra.mxu0 %v4935
        %5254 = vmatprep.subr.bf16.mxu0 %v4940
        %5255 = vmatpush1.bf16.msra.mxu0 %v4939
        %5256 = vmatprep.subr.bf16.mxu0 %v4944
        %5257 = vmatpush1.bf16.msra.mxu0 %v4943
        %5258 = vmatprep.subr.bf16.mxu0 %v4948
        %5259 = vmatpush1.bf16.msra.mxu0 %v4947
        %5260 = vmatprep.subr.bf16.mxu0 %v4952
        %5261 = vmatpush1.bf16.msra.mxu0 %v4951
        %5262 = vmatprep.subr.bf16.mxu0 %v4956
        %5263 = vmatpush1.bf16.msra.mxu0 %v4955
        %5264 = vmatprep.subr.bf16.mxu0 %v4960
        %5265 = vmatpush1.bf16.msra.mxu0 %v4959
        %5266 = vmatprep.subr.bf16.mxu0 %v4964
        %5267 = vmatpush1.bf16.msra.mxu0 %v4963
        %5268 = vmatprep.subr.bf16.mxu0 %v4968
        %5269 = vmatpush1.bf16.msra.mxu0 %v4967
        %5270 = vmatprep.subr.bf16.mxu0 %v4972
        %5271 = vmatpush1.bf16.msra.mxu0 %v4971
        %5272 = vmatprep.subr.bf16.mxu0 %v4976
        %5273 = vmatpush1.bf16.msra.mxu0 %v4975
        %5274 = vmatprep.subr.bf16.mxu0 %v4980
        %5275 = vmatpush1.bf16.msra.mxu0 %v4979
        %5276 = vmatprep.subr.bf16.mxu0 %v4984
        %5277 = vmatpush1.bf16.msra.mxu0 %v4983
        %5278 = vmatprep.subr.bf16.mxu0 %v4988
        %5279 = vmatpush1.bf16.msra.mxu0 %v4987
        %5280 = vmatprep.subr.bf16.mxu0 %v4992
        %5281 = vmatpush1.bf16.msra.mxu0 %v4991
        %5282 = vmatprep.mubr.bf16.mxu0 %v4352
        %5283 = vmatmul.mubr.bf16.gmra.mrb[0].mxu0 %v4351
        %v5284 = vpop.f32.mrb[0].mxu0
        %v5285 = vadd.f32 %v5242, %v5284
        %v5286 = vpop.f32.mrb[0].mxu0
        %v5287 = vadd.f32 %v5244, %v5286
        %v5288 = vpop.f32.mrb[0].mxu0
        %v5289 = vadd.f32 %v5246, %v5288
        %v5290 = vpop.f32.mrb[0].mxu0
        %v5291 = vadd.f32 %v5248, %v5290
        %5292 = vdwg.mxu0
        %v5293 = vadd.f32 %v4341, %v5199
        %v5294 = vadd.f32 %v4342, %v5201
        %v5295 = vadd.f32 %v4343, %v5285
        %v5296 = vadd.f32 %v4344, %v5287
        %v5297 = vadd.f32 %v4345, %v5203
        %v5298 = vadd.f32 %v4346, %v5205
        %v5299 = vadd.f32 %v4347, %v5289
        %v5300 = vadd.f32 %v4348, %v5291
        %5301 = vst [vmem:[#allocation2] sm:$0xff] %v5293
        %5302 = vst [vmem:[#allocation2 + $0x8] sm:$0xff] %v5294
        %5303 = vst [vmem:[#allocation2 + $0x10] sm:$0xff] %v5295
        %5304 = vst [vmem:[#allocation2 + $0x18] sm:$0xff] %v5296
        %5305 = vst [vmem:[#allocation2 + $0x20] sm:$0xff] %v5297
        %5306 = vst [vmem:[#allocation2 + $0x28] sm:$0xff] %v5298
        %5307 = vst [vmem:[#allocation2 + $0x30] sm:$0xff] %v5299
        %5308 = vst [vmem:[#allocation2 + $0x38] sm:$0xff] %v5300
        %p5309 = scmp.eq.s32.totalorder %s23, 1
        // Predicated region
        $region76: #{forward.5} parent=66 // pred_check
          %p5310 = pneg %p5309
        $region77: #{forward.5} parent=66 // pred_check_branch
          %5312 = sbr.rel (%p5310) target = $region79
        $region78: #{forward.5} parent=66 // pred_region
          %v5313 = vld [vmem:[#allocation2] sm:$0xff]
          %v5314 = vld [vmem:[#allocation2 + $0x8] sm:$0xff]
          %v5315 = vld [vmem:[#allocation2 + $0x10] sm:$0xff]
          %v5316 = vld [vmem:[#allocation2 + $0x18] sm:$0xff]
          %v5317 = vld [vmem:[#allocation2 + $0x20] sm:$0xff]
          %v5318 = vld [vmem:[#allocation2 + $0x28] sm:$0xff]
          %v5319 = vld [vmem:[#allocation2 + $0x30] sm:$0xff]
          %v5320 = vld [vmem:[#allocation2 + $0x38] sm:$0xff]
          %v5321 = vld [vmem:[%s4] sm:$0xf]
          %v5323 = vlaneseq
          %v5324 = vshrl.u32 %v5323, 7
          %v5325 = vsub.s32 0, %v5324
          %v5326 = vrot.slane %v5321, %v5325
          %v5327 = vlaneseq
          %v5328 = vshrl.u32 %v5327, 7
          %v5329 = vsub.s32 1, %v5328
          %v5330 = vrot.slane %v5321, %v5329
          %v5331 = vlaneseq
          %v5332 = vshrl.u32 %v5331, 7
          %v5333 = vsub.s32 2, %v5332
          %v5334 = vrot.slane %v5321, %v5333
          %v5335 = vlaneseq
          %v5336 = vshrl.u32 %v5335, 7
          %v5337 = vsub.s32 3, %v5336
          %v5338 = vrot.slane %v5321, %v5337
          %v5343 = vadd.f32 %v5313, %v5326
          %v5344 = vadd.f32 %v5314, %v5330
          %v5345 = vadd.f32 %v5315, %v5334
          %v5346 = vadd.f32 %v5316, %v5338
          %v5347 = vadd.f32 %v5317, %v5326
          %v5348 = vadd.f32 %v5318, %v5330
          %v5349 = vadd.f32 %v5319, %v5334
          %v5350 = vadd.f32 %v5320, %v5338
          %v5351 = vmax.f32 %v5343, 0.0
          %v5352 = vmax.f32 %v5344, 0.0
          %v5353 = vmax.f32 %v5345, 0.0
          %v5354 = vmax.f32 %v5346, 0.0
          %v5355 = vmax.f32 %v5347, 0.0
          %v5356 = vmax.f32 %v5348, 0.0
          %v5357 = vmax.f32 %v5349, 0.0
          %v5358 = vmax.f32 %v5350, 0.0
          %v5359 = vpack.c.bf16 %v5355, %v5351
          %v5360 = vpack.c.bf16 %v5356, %v5352
          %v5361 = vpack.c.bf16 %v5357, %v5353
          %v5362 = vpack.c.bf16 %v5358, %v5354
          %v5363 = vld [vmem:[%s5] sm:$0xf]
          %v5364 = vld [vmem:[%s5 + $0x4] sm:$0xf]
          %v5365 = vld [vmem:[%s5 + $0x8] sm:$0xf]
          %v5366 = vld [vmem:[%s5 + $0xc] sm:$0xf]
          %v5367 = vld [vmem:[%s5 + $0x10] sm:$0xf]
          %v5368 = vld [vmem:[%s5 + $0x14] sm:$0xf]
          %v5369 = vld [vmem:[%s5 + $0x18] sm:$0xf]
          %v5370 = vld [vmem:[%s5 + $0x1c] sm:$0xf]
          %v5371 = vld [vmem:[%s5 + $0x20] sm:$0xf]
          %v5372 = vld [vmem:[%s5 + $0x24] sm:$0xf]
          %v5373 = vld [vmem:[%s5 + $0x28] sm:$0xf]
          %v5374 = vld [vmem:[%s5 + $0x2c] sm:$0xf]
          %v5375 = vld [vmem:[%s5 + $0x30] sm:$0xf]
          %v5376 = vld [vmem:[%s5 + $0x34] sm:$0xf]
          %v5377 = vld [vmem:[%s5 + $0x38] sm:$0xf]
          %v5378 = vld [vmem:[%s5 + $0x3c] sm:$0xf]
          %v5379 = vld [vmem:[%s5 + $0x40] sm:$0xf]
          %v5380 = vld [vmem:[%s5 + $0x44] sm:$0xf]
          %v5381 = vld [vmem:[%s5 + $0x48] sm:$0xf]
          %v5382 = vld [vmem:[%s5 + $0x4c] sm:$0xf]
          %v5383 = vld [vmem:[%s5 + $0x50] sm:$0xf]
          %v5384 = vld [vmem:[%s5 + $0x54] sm:$0xf]
          %v5385 = vld [vmem:[%s5 + $0x58] sm:$0xf]
          %v5386 = vld [vmem:[%s5 + $0x5c] sm:$0xf]
          %v5387 = vld [vmem:[%s5 + $0x60] sm:$0xf]
          %v5388 = vld [vmem:[%s5 + $0x64] sm:$0xf]
          %v5389 = vld [vmem:[%s5 + $0x68] sm:$0xf]
          %v5390 = vld [vmem:[%s5 + $0x6c] sm:$0xf]
          %v5391 = vld [vmem:[%s5 + $0x70] sm:$0xf]
          %v5392 = vld [vmem:[%s5 + $0x74] sm:$0xf]
          %v5393 = vld [vmem:[%s5 + $0x78] sm:$0xf]
          %v5394 = vld [vmem:[%s5 + $0x7c] sm:$0xf]
          %v5395 = vld [vmem:[%s5 + $0x80] sm:$0xf]
          %v5396 = vld [vmem:[%s5 + $0x84] sm:$0xf]
          %v5397 = vld [vmem:[%s5 + $0x88] sm:$0xf]
          %v5398 = vld [vmem:[%s5 + $0x8c] sm:$0xf]
          %v5399 = vld [vmem:[%s5 + $0x90] sm:$0xf]
          %v5400 = vld [vmem:[%s5 + $0x94] sm:$0xf]
          %v5401 = vld [vmem:[%s5 + $0x98] sm:$0xf]
          %v5402 = vld [vmem:[%s5 + $0x9c] sm:$0xf]
          %v5403 = vld [vmem:[%s5 + $0xa0] sm:$0xf]
          %v5404 = vld [vmem:[%s5 + $0xa4] sm:$0xf]
          %v5405 = vld [vmem:[%s5 + $0xa8] sm:$0xf]
          %v5406 = vld [vmem:[%s5 + $0xac] sm:$0xf]
          %v5407 = vld [vmem:[%s5 + $0xb0] sm:$0xf]
          %v5408 = vld [vmem:[%s5 + $0xb4] sm:$0xf]
          %v5409 = vld [vmem:[%s5 + $0xb8] sm:$0xf]
          %v5410 = vld [vmem:[%s5 + $0xbc] sm:$0xf]
          %v5411 = vld [vmem:[%s5 + $0xc0] sm:$0xf]
          %v5412 = vld [vmem:[%s5 + $0xc4] sm:$0xf]
          %v5413 = vld [vmem:[%s5 + $0xc8] sm:$0xf]
          %v5414 = vld [vmem:[%s5 + $0xcc] sm:$0xf]
          %v5415 = vld [vmem:[%s5 + $0xd0] sm:$0xf]
          %v5416 = vld [vmem:[%s5 + $0xd4] sm:$0xf]
          %v5417 = vld [vmem:[%s5 + $0xd8] sm:$0xf]
          %v5418 = vld [vmem:[%s5 + $0xdc] sm:$0xf]
          %v5419 = vld [vmem:[%s5 + $0xe0] sm:$0xf]
          %v5420 = vld [vmem:[%s5 + $0xe4] sm:$0xf]
          %v5421 = vld [vmem:[%s5 + $0xe8] sm:$0xf]
          %v5422 = vld [vmem:[%s5 + $0xec] sm:$0xf]
          %v5423 = vld [vmem:[%s5 + $0xf0] sm:$0xf]
          %v5424 = vld [vmem:[%s5 + $0xf4] sm:$0xf]
          %v5425 = vld [vmem:[%s5 + $0xf8] sm:$0xf]
          %v5426 = vld [vmem:[%s5 + $0xfc] sm:$0xf]
          %v5427 = vld [vmem:[%s6] sm:$0x1]
          %v5429 = vlaneseq
          %v5430 = vshrl.u32 %v5429, 7
          %v5431 = vsub.s32 0, %v5430
          %v5432 = vrot.slane %v5427, %v5431
          %v5498 = vunpack.c.l.b16 %v5363
          %v5499 = vunpack.c.l.b16 %v5364
          %v5500 = vunpack.c.l.b16 %v5365
          %v5501 = vunpack.c.l.b16 %v5366
          %v5502 = vunpack.c.l.b16 %v5367
          %v5503 = vunpack.c.l.b16 %v5368
          %v5504 = vunpack.c.l.b16 %v5369
          %v5505 = vunpack.c.l.b16 %v5370
          %v5506 = vunpack.c.l.b16 %v5371
          %v5507 = vunpack.c.l.b16 %v5372
          %v5508 = vunpack.c.l.b16 %v5373
          %v5509 = vunpack.c.l.b16 %v5374
          %v5510 = vunpack.c.l.b16 %v5375
          %v5511 = vunpack.c.l.b16 %v5376
          %v5512 = vunpack.c.l.b16 %v5377
          %v5513 = vunpack.c.l.b16 %v5378
          %v5514 = vunpack.c.l.b16 %v5379
          %v5515 = vunpack.c.l.b16 %v5380
          %v5516 = vunpack.c.l.b16 %v5381
          %v5517 = vunpack.c.l.b16 %v5382
          %v5518 = vunpack.c.l.b16 %v5383
          %v5519 = vunpack.c.l.b16 %v5384
          %v5520 = vunpack.c.l.b16 %v5385
          %v5521 = vunpack.c.l.b16 %v5386
          %v5522 = vunpack.c.l.b16 %v5387
          %v5523 = vunpack.c.l.b16 %v5388
          %v5524 = vunpack.c.l.b16 %v5389
          %v5525 = vunpack.c.l.b16 %v5390
          %v5526 = vunpack.c.l.b16 %v5391
          %v5527 = vunpack.c.l.b16 %v5392
          %v5528 = vunpack.c.l.b16 %v5393
          %v5529 = vunpack.c.l.b16 %v5394
          %v5530 = vunpack.c.l.b16 %v5395
          %v5531 = vunpack.c.l.b16 %v5396
          %v5532 = vunpack.c.l.b16 %v5397
          %v5533 = vunpack.c.l.b16 %v5398
          %v5534 = vunpack.c.l.b16 %v5399
          %v5535 = vunpack.c.l.b16 %v5400
          %v5536 = vunpack.c.l.b16 %v5401
          %v5537 = vunpack.c.l.b16 %v5402
          %v5538 = vunpack.c.l.b16 %v5403
          %v5539 = vunpack.c.l.b16 %v5404
          %v5540 = vunpack.c.l.b16 %v5405
          %v5541 = vunpack.c.l.b16 %v5406
          %v5542 = vunpack.c.l.b16 %v5407
          %v5543 = vunpack.c.l.b16 %v5408
          %v5544 = vunpack.c.l.b16 %v5409
          %v5545 = vunpack.c.l.b16 %v5410
          %v5546 = vunpack.c.l.b16 %v5411
          %v5547 = vunpack.c.l.b16 %v5412
          %v5548 = vunpack.c.l.b16 %v5413
          %v5549 = vunpack.c.l.b16 %v5414
          %v5550 = vunpack.c.l.b16 %v5415
          %v5551 = vunpack.c.l.b16 %v5416
          %v5552 = vunpack.c.l.b16 %v5417
          %v5553 = vunpack.c.l.b16 %v5418
          %v5554 = vunpack.c.l.b16 %v5419
          %v5555 = vunpack.c.l.b16 %v5420
          %v5556 = vunpack.c.l.b16 %v5421
          %v5557 = vunpack.c.l.b16 %v5422
          %v5558 = vunpack.c.l.b16 %v5423
          %v5559 = vunpack.c.l.b16 %v5424
          %v5560 = vunpack.c.l.b16 %v5425
          %v5561 = vunpack.c.l.b16 %v5426
          %v5562 = vpack.c.b16 %v5499, %v5498
          %v5563 = vpack.c.b16 %v5501, %v5500
          %v5564 = vpack.c.b16 %v5503, %v5502
          %v5565 = vpack.c.b16 %v5505, %v5504
          %v5566 = vpack.c.b16 %v5507, %v5506
          %v5567 = vpack.c.b16 %v5509, %v5508
          %v5568 = vpack.c.b16 %v5511, %v5510
          %v5569 = vpack.c.b16 %v5513, %v5512
          %v5570 = vpack.c.b16 %v5515, %v5514
          %v5571 = vpack.c.b16 %v5517, %v5516
          %v5572 = vpack.c.b16 %v5519, %v5518
          %v5573 = vpack.c.b16 %v5521, %v5520
          %v5574 = vpack.c.b16 %v5523, %v5522
          %v5575 = vpack.c.b16 %v5525, %v5524
          %v5576 = vpack.c.b16 %v5527, %v5526
          %v5577 = vpack.c.b16 %v5529, %v5528
          %v5578 = vpack.c.b16 %v5531, %v5530
          %v5579 = vpack.c.b16 %v5533, %v5532
          %v5580 = vpack.c.b16 %v5535, %v5534
          %v5581 = vpack.c.b16 %v5537, %v5536
          %v5582 = vpack.c.b16 %v5539, %v5538
          %v5583 = vpack.c.b16 %v5541, %v5540
          %v5584 = vpack.c.b16 %v5543, %v5542
          %v5585 = vpack.c.b16 %v5545, %v5544
          %v5586 = vpack.c.b16 %v5547, %v5546
          %v5587 = vpack.c.b16 %v5549, %v5548
          %v5588 = vpack.c.b16 %v5551, %v5550
          %v5589 = vpack.c.b16 %v5553, %v5552
          %v5590 = vpack.c.b16 %v5555, %v5554
          %v5591 = vpack.c.b16 %v5557, %v5556
          %v5592 = vpack.c.b16 %v5559, %v5558
          %v5593 = vpack.c.b16 %v5561, %v5560
          %5626 = vmatprep.subr.bf16.mxu0 0
          %5627 = vmatpush1.bf16.msra.mxu0 %v5562
          %5628 = vmatprep.subr.bf16.mxu0 0
          %5629 = vmatpush1.bf16.msra.mxu0 %v5563
          %5630 = vmatprep.subr.bf16.mxu0 0
          %5631 = vmatpush1.bf16.msra.mxu0 %v5564
          %5632 = vmatprep.subr.bf16.mxu0 0
          %5633 = vmatpush1.bf16.msra.mxu0 %v5565
          %5634 = vmatprep.subr.bf16.mxu0 0
          %5635 = vmatpush1.bf16.msra.mxu0 %v5566
          %5636 = vmatprep.subr.bf16.mxu0 0
          %5637 = vmatpush1.bf16.msra.mxu0 %v5567
          %5638 = vmatprep.subr.bf16.mxu0 0
          %5639 = vmatpush1.bf16.msra.mxu0 %v5568
          %5640 = vmatprep.subr.bf16.mxu0 0
          %5641 = vmatpush1.bf16.msra.mxu0 %v5569
          %5642 = vmatprep.subr.bf16.mxu0 0
          %5643 = vmatpush1.bf16.msra.mxu0 %v5570
          %5644 = vmatprep.subr.bf16.mxu0 0
          %5645 = vmatpush1.bf16.msra.mxu0 %v5571
          %5646 = vmatprep.subr.bf16.mxu0 0
          %5647 = vmatpush1.bf16.msra.mxu0 %v5572
          %5648 = vmatprep.subr.bf16.mxu0 0
          %5649 = vmatpush1.bf16.msra.mxu0 %v5573
          %5650 = vmatprep.subr.bf16.mxu0 0
          %5651 = vmatpush1.bf16.msra.mxu0 %v5574
          %5652 = vmatprep.subr.bf16.mxu0 0
          %5653 = vmatpush1.bf16.msra.mxu0 %v5575
          %5654 = vmatprep.subr.bf16.mxu0 0
          %5655 = vmatpush1.bf16.msra.mxu0 %v5576
          %5656 = vmatprep.subr.bf16.mxu0 0
          %5657 = vmatpush1.bf16.msra.mxu0 %v5577
          %5658 = vmatprep.mubr.bf16.mxu0 %v5360
          %5659 = vmatmul.mubr.bf16.gmra.mrb[0].mxu0 %v5359
          %v5660 = vpop.f32.mrb[0].mxu0
          %v5661 = vadd.f32 %v5432, %v5660
          %v5662 = vpop.f32.mrb[0].mxu0
          %v5663 = vpop.f32.mrb[0].mxu0
          %v5664 = vadd.f32 %v5432, %v5663
          %v5665 = vpop.f32.mrb[0].mxu0
          %5666 = vdwg.mxu0
          %5667 = vmatprep.subr.bf16.mxu0 0
          %5668 = vmatpush1.bf16.msra.mxu0 %v5578
          %5669 = vmatprep.subr.bf16.mxu0 0
          %5670 = vmatpush1.bf16.msra.mxu0 %v5579
          %5671 = vmatprep.subr.bf16.mxu0 0
          %5672 = vmatpush1.bf16.msra.mxu0 %v5580
          %5673 = vmatprep.subr.bf16.mxu0 0
          %5674 = vmatpush1.bf16.msra.mxu0 %v5581
          %5675 = vmatprep.subr.bf16.mxu0 0
          %5676 = vmatpush1.bf16.msra.mxu0 %v5582
          %5677 = vmatprep.subr.bf16.mxu0 0
          %5678 = vmatpush1.bf16.msra.mxu0 %v5583
          %5679 = vmatprep.subr.bf16.mxu0 0
          %5680 = vmatpush1.bf16.msra.mxu0 %v5584
          %5681 = vmatprep.subr.bf16.mxu0 0
          %5682 = vmatpush1.bf16.msra.mxu0 %v5585
          %5683 = vmatprep.subr.bf16.mxu0 0
          %5684 = vmatpush1.bf16.msra.mxu0 %v5586
          %5685 = vmatprep.subr.bf16.mxu0 0
          %5686 = vmatpush1.bf16.msra.mxu0 %v5587
          %5687 = vmatprep.subr.bf16.mxu0 0
          %5688 = vmatpush1.bf16.msra.mxu0 %v5588
          %5689 = vmatprep.subr.bf16.mxu0 0
          %5690 = vmatpush1.bf16.msra.mxu0 %v5589
          %5691 = vmatprep.subr.bf16.mxu0 0
          %5692 = vmatpush1.bf16.msra.mxu0 %v5590
          %5693 = vmatprep.subr.bf16.mxu0 0
          %5694 = vmatpush1.bf16.msra.mxu0 %v5591
          %5695 = vmatprep.subr.bf16.mxu0 0
          %5696 = vmatpush1.bf16.msra.mxu0 %v5592
          %5697 = vmatprep.subr.bf16.mxu0 0
          %5698 = vmatpush1.bf16.msra.mxu0 %v5593
          %5699 = vmatprep.mubr.bf16.mxu0 %v5362
          %5700 = vmatmul.mubr.bf16.gmra.mrb[0].mxu0 %v5361
          %v5701 = vpop.f32.mrb[0].mxu0
          %v5702 = vadd.f32 %v5661, %v5701
          %v5703 = vpop.f32.mrb[0].mxu0
          %v5704 = vpop.f32.mrb[0].mxu0
          %v5705 = vadd.f32 %v5664, %v5704
          %v5706 = vpop.f32.mrb[0].mxu0
          %5707 = vdwg.mxu0
          %5708 = vst [vmem:[%s420] sm:$0xff] %v5702
          %5709 = vst [vmem:[%s420 + $0x8] sm:$0xff] %v5705
        $region79: #{forward.5} parent=66 // pred_fallthru
          _
        %s5710 = smul.u32 2, %s22
        %p5711 = scmp.lt.s32.totalorder %s5710, 1
        %s5712 = scalar_select %p5711, %s5710, 1
        %s5713 = smul.addr %s5712, 8
        %s5714 = scalar_lea.vmem %s7, %s5713
        // Predicated region
        $region80: #{forward.5} parent=66 // pred_check
          %p5715 = pneg %p207
        $region81: #{forward.5} parent=66 // pred_check_branch
          %5717 = sbr.rel (%p5715) target = $region83
        $region82: #{forward.5} parent=66 // pred_region
          %s5718 = smul.u32 2, %s22
        $region83: #{forward.5} parent=66 // pred_fallthru
          _
        // Predicated region
        $region84: #{forward.5} parent=66 // pred_check
          %p5719 = pneg %p207
        $region85: #{forward.5} parent=66 // pred_check_branch
          %5721 = sbr.rel (%p5719) target = $region87
        $region86: #{forward.5} parent=66 // pred_region
          %s5722 = smul.u32 2, %s22
          %p5723 = scmp.lt.s32.totalorder %s5722, 1
          %s5724 = scalar_select %p5723, %s5722, 1
          %s5725 = smul.addr %s5724, 8
          %s5726 = scalar_lea.vmem %s7, %s5725
        $region87: #{forward.5} parent=66 // pred_fallthru
          _
      $region67: #{forward.5} parent=5 // pred_fallthru
        _
      %p5727 = scmp.le.s32.totalorder 2, %s13
      // Predicated region
      $region88: #{forward.5} parent=5 // pred_check
        %p5728 = pneg %p5727
      $region89: #{forward.5} parent=5 // pred_check_branch
        %5730 = sbr.rel (%p5728) target = $region91
      $region90: #{forward.5} parent=5 // pred_region
        %s5731 = ssub.s32 %s13, 2
      $region91: #{forward.5} parent=5 // pred_fallthru
        _
    $region6: #{forward.5} parent=1 // loop_footer
      %s17 = sadd.s32 1, %s13
    $region7: #{forward.5} parent=1 // loop_footer_branch
      %12 = sbr.rel target = $region3
    $region8: #{forward.5} parent=1 // loop_exit
      _

</llo_original>
